<compile_context>
chip_gen: v7x
topology: tpu7x:2x2x1
jax: 0.10.0
libtpu: 0.0.40
codegen_flags: <defaults>
</compile_context>

<pallas_src>
import functools

import jax
import jax.numpy as jnp
from jax import lax
from jax.experimental import pallas as pl
from jax.experimental.pallas import tpu as pltpu

# ---- constants fixed by the PyTorch module ----
K = 3
NUM_GRAPHS = K * 2          # 6 graphs per sample
C = 128                     # ggnn_args['out_channels']
NUM_BINS = 21
BIN_WIDTH = 2.0 / NUM_BINS
LANE = 128


def _log_softmax(z):
    m = jnp.max(z, axis=1, keepdims=True)
    return z - (m + jnp.log(jnp.sum(jnp.exp(z - m), axis=1, keepdims=True)))


# ----------------------------------------------------------------------------
# Fused kernel: GNNLayer (all 6 graphs) + pairwise similarity + backnet head.
# One grid step per sample.
# ----------------------------------------------------------------------------
def fused_net_kernel(n, a_ref, x_ref, pt_ref, wg_ref, bg_ref, ws_ref,
                     w1_ref, b1_ref, wfc_ref, bfc_ref,
                     w2_ref, b2_ref, wsim_ref, bsim_ref, out_ref):
    # a_ref : (1, 5, P, P)  block-diag normalized adjacencies, P = pad(6N,128)
    #         (4 edge-weighted + 1 cfg-filtered)
    # x_ref : (1, P, Fin)   node features of the 6 graphs, stacked + zero-pad
    # pt_ref: (6, P)        graph-membership indicator (1.0 on real rows of g)
    # wg    : (Fin, 4C)     concatenated GCN weights [Wg0|Wg1|Wg2|Wg3]
    # bg    : (4, C)        GCN biases
    # ws    : (5C, C)       stacked mixing weights [Ws0;Ws1;Ws2;Ws3;Ws3]
    # w1/w2 : (6, C, 20) / (6, C, 6)  backnet code-linear weights, graph-major
    # out   : (1, 1, 2)
    x = x_ref[0]                                        # (P, Fin)

    # ---- GNNLayer --------------------------------------------------------
    # (a) one big-K dot: X @ [Wg0|Wg1|Wg2|Wg3]  -> (P, 4C)
    xw = jnp.dot(x, wg_ref[...], preferred_element_type=jnp.float32)

    # (b) 5 adjacency matmuls (4 weighted GCN branches + cfg branch); bias and
    #     relu applied per branch, then ONE (P,5C)@(5C,C) mixing dot.
    hs = []
    for i in range(4):
        h = jnp.dot(a_ref[0, i], xw[:, i * C:(i + 1) * C],
                    preferred_element_type=jnp.float32)
        hs.append(jnp.maximum(h + bg_ref[i:i + 1, :], 0.0))        # +bias, relu
    # cfg_net branch: gcns[3] over bool(ea[:,3])-filtered edges, NO relu.
    h_cfg = jnp.dot(a_ref[0, 4], xw[:, 3 * C:4 * C],
                    preferred_element_type=jnp.float32) + bg_ref[3:4, :]
    hs.append(h_cfg)
    acc = jnp.dot(jnp.concatenate(hs, axis=1), ws_ref[...],
                  preferred_element_type=jnp.float32)              # (P, C)

    pT = pt_ref[...]                                               # (6, P)

    # g_r: per-graph node mean of PRE-normalization features -> (6, C)
    gr = jnp.dot(pT, acc, preferred_element_type=jnp.float32) * (1.0 / n)

    # L2 row-normalization (F.normalize p=2, eps=1e-12) via rsqrt (EUP slot)
    sumsq = jnp.sum(acc * acc, axis=1, keepdims=True)
    xn = acc * lax.rsqrt(jnp.maximum(sumsq, 1e-24))

    # ---- pairwise similarity: one Gram matrix + histc-as-quantization ----
    s = lax.dot_general(xn, xn, (((1,), (1,)), ((), ())),
                        preferred_element_type=jnp.float32)        # (P, P)
    t = jnp.tanh(s)
    # torch.histc(bins=21,min=-1,max=1) followed by dot with [-1,-0.9,...,1.0]
    # == map each value to its bin's table entry, then sum per graph pair.
    idx = jnp.clip(jnp.floor((t + 1.0) / BIN_WIDTH), 0.0, NUM_BINS - 1.0)
    vals = -1.0 + 0.1 * idx
    blk = jnp.dot(pT, vals, preferred_element_type=jnp.float32)    # (6, P)
    sim = lax.dot_general(blk, pT, (((1,), (1,)), ((), ())),
                          preferred_element_type=jnp.float32) * (1.0 / (n * n))

    # ---- Net.backnet head (sim / g_r stay in VMEM) -----------------------
    ch = jnp.zeros((1, w1_ref.shape[2]), jnp.float32)
    st = jnp.zeros((1, NUM_GRAPHS), jnp.float32)
    for g in range(NUM_GRAPHS):                 # code vector is graph-major:
        grg = gr[g:g + 1, :]                    # code[g*C:(g+1)*C] == gr[g]
        ch = ch + jnp.dot(grg, w1_ref[g], preferred_element_type=jnp.float32)
        st = st + jnp.dot(grg, w2_ref[g], preferred_element_type=jnp.float32)
    c = jnp.maximum(ch + b1_ref[...], 0.0)                          # relu
    c = jnp.dot(c, wfc_ref[...], preferred_element_type=jnp.float32) + bfc_ref[...]
    code_res = _log_softmax(c)                                      # (1, 2)

    strength = st + b2_ref[...]                                     # (1, 6)
    ones6 = jnp.full((1, NUM_GRAPHS), 1.0 / NUM_GRAPHS, jnp.float32)
    sim_vec = lax.dot_general(ones6, sim, (((1,), (1,)), ((), ())),
                              preferred_element_type=jnp.float32)   # row means
    sres = jnp.dot(sim_vec * strength, wsim_ref[...],
                   preferred_element_type=jnp.float32) + bsim_ref[...]
    sim_res = _log_softmax(sres)                                    # (1, 2)

    out_ref[0] = code_res * 0.4 + sim_res * 0.6


def fused_net_pallas(n, a_bd, x_flat, pT, wg, bg, ws, w1r, b1, wfc, bfc,
                     w2r, b2, wsim, bsim):
    B, _, P, _ = a_bd.shape
    Fin = x_flat.shape[-1]

    def rep(arr):       # constant blocks: full array, same block every step ->
        nd = arr.ndim   # Pallas does not re-issue their DMAs across grid steps
        return pl.BlockSpec(arr.shape, lambda b, _nd=nd: (0,) * _nd)

    consts = (pT, wg, bg, ws, w1r, b1, wfc, bfc, w2r, b2, wsim, bsim)
    out = pl.pallas_call(
        functools.partial(fused_net_kernel, n),
        out_shape=jax.ShapeDtypeStruct((B, 1, 2), jnp.float32),
        grid_spec=pltpu.PrefetchScalarGridSpec(
            num_scalar_prefetch=0,
            grid=(B,),
            in_specs=[pl.BlockSpec((1, 5, P, P), lambda b: (b, 0, 0, 0)),
                      pl.BlockSpec((1, P, Fin), lambda b: (b, 0, 0))]
                     + [rep(w) for w in consts],
            out_specs=pl.BlockSpec((1, 1, 2), lambda b: (b, 0, 0))),
        compiler_params=pltpu.CompilerParams(
            dimension_semantics=("parallel",)),   # one sample per TC on v7x
    )(a_bd, x_flat, *consts)
    return out.reshape(B, 2)


# ----------------------------------------------------------------------------
# Glue: block-diagonal normalized adjacencies (PyG gcn_norm semantics) built
# with ONE offset scatter per sample directly into the padded (5, P, P) slab.
# NOTE: for large N the dense (1,5,P,P) f32 block is double-buffered in VMEM;
# on v7x (64 MiB) switch to a batched per-graph (6,N,N) layout / bf16 operands
# well before it fits v6e.
# ----------------------------------------------------------------------------
def build_block_diag_adjs(edge_index, edge_attr, n, p):
    # edge_index: (6, 2, E) int32, edge_attr: (6, E, 4)  ->  (5, P, P)
    g6 = edge_index.shape[0]
    gn = g6 * n
    offs = (jnp.arange(g6, dtype=edge_index.dtype) * n)[:, None]
    src = (edge_index[:, 0, :] + offs).reshape(-1)                  # (6E,)
    dst = (edge_index[:, 1, :] + offs).reshape(-1)
    cfg_w = (edge_attr[..., 3] != 0).astype(jnp.float32)            # bool filter
    w5 = jnp.concatenate([edge_attr, cfg_w[..., None]], axis=-1).reshape(-1, 5)
    a = jnp.zeros((5, p, p), jnp.float32).at[:, dst, src].add(w5.T)
    # add_remaining_self_loops (weight 1): only for real nodes that do not
    # already carry a self-loop edge.
    diag = jnp.diagonal(a, axis1=1, axis2=2)                        # (5, p)
    real = (jnp.arange(p) < gn).astype(jnp.float32)
    add = jnp.where(diag == 0.0, real[None, :], 0.0)
    ii = jnp.arange(p)
    a = a.at[:, ii, ii].add(add)
    # symmetric gcn_norm: D^-1/2 (A+I) D^-1/2, zero for isolated/padded nodes
    deg = jnp.sum(a, axis=2)
    dinv = jnp.where(deg > 0.0, lax.rsqrt(jnp.maximum(deg, 1e-30)), 0.0)
    return a * dinv[:, :, None] * dinv[:, None, :]


# ----------------------------------------------------------------------------
# Full Net forward
# ----------------------------------------------------------------------------
def net_forward(params, x_feat, edge_index, edge_attr):
    # x_feat: (B, 6, N, Fin), edge_index: (B, 6, 2, E), edge_attr: (B, 6, E, 4)
    B, G6, N, Fin = x_feat.shape
    GN = G6 * N
    P = ((GN + LANE - 1) // LANE) * LANE          # pad stacked nodes to 128-mult

    a_bd = jax.vmap(lambda ei, ea: build_block_diag_adjs(ei, ea, N, P))(
        edge_index, edge_attr)                    # (B, 5, P, P)
    x_flat = jnp.pad(x_feat.reshape(B, GN, Fin), ((0, 0), (0, P - GN), (0, 0)))

    # graph-membership indicator pT[g, r] = 1.0 iff row r belongs to graph g
    rows = jnp.arange(P)[None, :]
    g = jnp.arange(G6)[:, None]
    pT = ((rows >= g * N) & (rows < (g + 1) * N)).astype(jnp.float32)  # (6, P)

    # pack weights for the two big-K dots
    wg_cat = jnp.concatenate([params['wg'][i] for i in range(4)], axis=1)  # (Fin,4C)
    ws_cat = jnp.concatenate([params['ws'][0], params['ws'][1], params['ws'][2],
                              params['ws'][3], params['ws'][3]], axis=0)   # (5C, C)
    w1r = params['w1'].reshape(G6, C, -1)         # (6, C, 20) graph-major slabs
    w2r = params['w2'].reshape(G6, C, -1)         # (6, C, 6)
    return fused_net_pallas(N, a_bd, x_flat, pT, wg_cat, params['bg'], ws_cat,
                            w1r, params['b1'], params['wfc'], params['bfc'],
                            w2r, params['b2'], params['wsim'], params['bsim'])


# ----------------------------------------------------------------------------
# Deterministic parameter init (shapes follow the PyTorch __init__)
# ----------------------------------------------------------------------------
def init_params(key, fin):
    ks = jax.random.split(key, 10)

    def u(k, shape, scale):
        return jax.random.uniform(k, shape, jnp.float32, -1.0, 1.0) * scale

    D = C * NUM_GRAPHS
    p = {
        'wg':  u(ks[0], (4, fin, C), (6.0 / (fin + C)) ** 0.5),   # GCN glorot
        'bg':  jnp.zeros((4, C), jnp.float32),                    # GCN bias init
        'ws':  u(ks[1], (4, C, C), 1.414 * (6.0 / (2 * C)) ** 0.5),
        'w1':  u(ks[2], (D, 20), (1.0 / D) ** 0.5),
        'b1':  u(ks[3], (1, 20), (1.0 / D) ** 0.5),
        'wfc': u(ks[4], (20, 2), (1.0 / 20) ** 0.5),
        'bfc': u(ks[5], (1, 2), (1.0 / 20) ** 0.5),
        'w2':  u(ks[6], (D, NUM_GRAPHS), (1.0 / D) ** 0.5),
        'b2':  u(ks[7], (1, NUM_GRAPHS), (1.0 / D) ** 0.5),
        'wsim': u(ks[8], (NUM_GRAPHS, 2), (1.0 / NUM_GRAPHS) ** 0.5),
        'bsim': u(ks[9], (1, 2), (1.0 / NUM_GRAPHS) ** 0.5),
    }
    return p


if __name__ == "__main__":
    key = jax.random.PRNGKey(0)
    B, N, Fin, E = 2, 16, 32, 24          # B samples, each with 6 small graphs
    kp, kx, ke, ka = jax.random.split(key, 4)

    params = init_params(kp, Fin)
    x_feat = jax.random.normal(kx, (B, NUM_GRAPHS, N, Fin), jnp.float32)
    edge_index = jax.random.randint(ke, (B, NUM_GRAPHS, 2, E), 0, N, jnp.int32)
    edge_attr = jax.random.uniform(ka, (B, NUM_GRAPHS, E, 4), jnp.float32,
                                   0.1, 1.0)

    out = jax.jit(net_forward)(params, x_feat, edge_index, edge_attr)
    out = jax.block_until_ready(out)
    assert out.shape == (B, 2) and out.dtype == jnp.float32
    assert bool(jnp.all(jnp.isfinite(out)))
    print("KERNEL_OK")
</pallas_src>

<mosaic_0001>
module attributes {stable_mosaic.version = 11 : i64} {
  func.func @fused_net_kernel(%arg0: i32, %arg1: memref<1x5x128x128xf32, #tpu.memory_space<vmem>>, %arg2: memref<1x128x32xf32, #tpu.memory_space<vmem>>, %arg3: memref<6x128xf32, #tpu.memory_space<vmem>>, %arg4: memref<32x512xf32, #tpu.memory_space<vmem>>, %arg5: memref<4x128xf32, #tpu.memory_space<vmem>>, %arg6: memref<640x128xf32, #tpu.memory_space<vmem>>, %arg7: memref<6x128x20xf32, #tpu.memory_space<vmem>>, %arg8: memref<1x20xf32, #tpu.memory_space<vmem>>, %arg9: memref<20x2xf32, #tpu.memory_space<vmem>>, %arg10: memref<1x2xf32, #tpu.memory_space<vmem>>, %arg11: memref<6x128x6xf32, #tpu.memory_space<vmem>>, %arg12: memref<1x6xf32, #tpu.memory_space<vmem>>, %arg13: memref<6x2xf32, #tpu.memory_space<vmem>>, %arg14: memref<1x2xf32, #tpu.memory_space<vmem>>, %arg15: memref<1x1x2xf32, #tpu.memory_space<vmem>>) attributes {dimension_semantics = [#tpu.dimension_semantics<parallel>], iteration_bounds = array<i64: 2>, scalar_prefetch = 0 : i64, scratch_operands = 0 : i64, tpu.core_type = #tpu.core_type<tc>, window_params = [{transform_indices = @transform_0, window_bounds = array<i64: 1, 5, 128, 128>}, {transform_indices = @transform_1, window_bounds = array<i64: 1, 128, 32>}, {pipeline_mode = #tpu.pipeline_mode<synchronous>, transform_indices = @transform_2, window_bounds = array<i64: 6, 128>}, {pipeline_mode = #tpu.pipeline_mode<synchronous>, transform_indices = @transform_3, window_bounds = array<i64: 32, 512>}, {pipeline_mode = #tpu.pipeline_mode<synchronous>, transform_indices = @transform_4, window_bounds = array<i64: 4, 128>}, {pipeline_mode = #tpu.pipeline_mode<synchronous>, transform_indices = @transform_5, window_bounds = array<i64: 640, 128>}, {pipeline_mode = #tpu.pipeline_mode<synchronous>, transform_indices = @transform_6, window_bounds = array<i64: 6, 128, 20>}, {pipeline_mode = #tpu.pipeline_mode<synchronous>, transform_indices = @transform_7, window_bounds = array<i64: 1, 20>}, {pipeline_mode = #tpu.pipeline_mode<synchronous>, transform_indices = @transform_8, window_bounds = array<i64: 20, 2>}, {pipeline_mode = #tpu.pipeline_mode<synchronous>, transform_indices = @transform_9, window_bounds = array<i64: 1, 2>}, {pipeline_mode = #tpu.pipeline_mode<synchronous>, transform_indices = @transform_10, window_bounds = array<i64: 6, 128, 6>}, {pipeline_mode = #tpu.pipeline_mode<synchronous>, transform_indices = @transform_11, window_bounds = array<i64: 1, 6>}, {pipeline_mode = #tpu.pipeline_mode<synchronous>, transform_indices = @transform_12, window_bounds = array<i64: 6, 2>}, {pipeline_mode = #tpu.pipeline_mode<synchronous>, transform_indices = @transform_13, window_bounds = array<i64: 1, 2>}, {transform_indices = @transform_14, window_bounds = array<i64: 1, 1, 2>}]} {
    %c0 = arith.constant 0 : index
    %c0_0 = arith.constant 0 : index
    %c0_1 = arith.constant 0 : index
    %0 = vector.load %arg2[%c0, %c0_0, %c0_1] : memref<1x128x32xf32, #tpu.memory_space<vmem>>, vector<1x128x32xf32>
    %1 = vector.shape_cast %0 : vector<1x128x32xf32> to vector<128x32xf32>
    %c0_2 = arith.constant 0 : index
    %c0_3 = arith.constant 0 : index
    %2 = vector.load %arg4[%c0_2, %c0_3] : memref<32x512xf32, #tpu.memory_space<vmem>>, vector<32x512xf32>
    %cst = arith.constant dense<0.000000e+00> : vector<128x512xf32>
    %3 = tpu.matmul %1, %2, %cst {dimension_numbers = #tpu.dot_dimension_numbers<[1], [0], [0], [1], [0, 0, 1, 1], [], []>} : vector<128x32xf32>, vector<32x512xf32>, vector<128x512xf32> -> vector<128x512xf32>
    %c0_4 = arith.constant 0 : index
    %c0_5 = arith.constant 0 : index
    %c0_6 = arith.constant 0 : index
    %c0_7 = arith.constant 0 : index
    %4 = vector.load %arg1[%c0_4, %c0_5, %c0_6, %c0_7] : memref<1x5x128x128xf32, #tpu.memory_space<vmem>>, vector<1x1x128x128xf32>
    %5 = vector.shape_cast %4 : vector<1x1x128x128xf32> to vector<128x128xf32>
    %6 = vector.extract_strided_slice %3 {offsets = [0, 0], sizes = [128, 128], strides = [1, 1]} : vector<128x512xf32> to vector<128x128xf32>
    %cst_8 = arith.constant dense<0.000000e+00> : vector<128x128xf32>
    %7 = tpu.matmul %5, %6, %cst_8 {dimension_numbers = #tpu.dot_dimension_numbers<[1], [0], [0], [1], [0, 0, 1, 1], [], []>} : vector<128x128xf32>, vector<128x128xf32>, vector<128x128xf32> -> vector<128x128xf32>
    %c0_9 = arith.constant 0 : index
    %c0_10 = arith.constant 0 : index
    %8 = vector.load %arg5[%c0_9, %c0_10] : memref<4x128xf32, #tpu.memory_space<vmem>>, vector<1x128xf32>
    %9 = vector.broadcast %8 : vector<1x128xf32> to vector<128x128xf32>
    %10 = arith.addf %7, %9 : vector<128x128xf32>
    %cst_11 = arith.constant 0.000000e+00 : f32
    %11 = vector.broadcast %cst_11 : f32 to vector<128x128xf32>
    %12 = arith.maximumf %10, %11 : vector<128x128xf32>
    %c0_12 = arith.constant 0 : index
    %c1 = arith.constant 1 : index
    %c0_13 = arith.constant 0 : index
    %c0_14 = arith.constant 0 : index
    %13 = vector.load %arg1[%c0_12, %c1, %c0_13, %c0_14] : memref<1x5x128x128xf32, #tpu.memory_space<vmem>>, vector<1x1x128x128xf32>
    %14 = vector.shape_cast %13 : vector<1x1x128x128xf32> to vector<128x128xf32>
    %15 = vector.extract_strided_slice %3 {offsets = [0, 128], sizes = [128, 128], strides = [1, 1]} : vector<128x512xf32> to vector<128x128xf32>
    %cst_15 = arith.constant dense<0.000000e+00> : vector<128x128xf32>
    %16 = tpu.matmul %14, %15, %cst_15 {dimension_numbers = #tpu.dot_dimension_numbers<[1], [0], [0], [1], [0, 0, 1, 1], [], []>} : vector<128x128xf32>, vector<128x128xf32>, vector<128x128xf32> -> vector<128x128xf32>
    %c1_16 = arith.constant 1 : index
    %c0_17 = arith.constant 0 : index
    %17 = vector.load %arg5[%c1_16, %c0_17] : memref<4x128xf32, #tpu.memory_space<vmem>>, vector<1x128xf32>
    %18 = vector.broadcast %17 : vector<1x128xf32> to vector<128x128xf32>
    %19 = arith.addf %16, %18 : vector<128x128xf32>
    %cst_18 = arith.constant 0.000000e+00 : f32
    %20 = vector.broadcast %cst_18 : f32 to vector<128x128xf32>
    %21 = arith.maximumf %19, %20 : vector<128x128xf32>
    %c0_19 = arith.constant 0 : index
    %c2 = arith.constant 2 : index
    %c0_20 = arith.constant 0 : index
    %c0_21 = arith.constant 0 : index
    %22 = vector.load %arg1[%c0_19, %c2, %c0_20, %c0_21] : memref<1x5x128x128xf32, #tpu.memory_space<vmem>>, vector<1x1x128x128xf32>
    %23 = vector.shape_cast %22 : vector<1x1x128x128xf32> to vector<128x128xf32>
    %24 = vector.extract_strided_slice %3 {offsets = [0, 256], sizes = [128, 128], strides = [1, 1]} : vector<128x512xf32> to vector<128x128xf32>
    %cst_22 = arith.constant dense<0.000000e+00> : vector<128x128xf32>
    %25 = tpu.matmul %23, %24, %cst_22 {dimension_numbers = #tpu.dot_dimension_numbers<[1], [0], [0], [1], [0, 0, 1, 1], [], []>} : vector<128x128xf32>, vector<128x128xf32>, vector<128x128xf32> -> vector<128x128xf32>
    %c2_23 = arith.constant 2 : index
    %c0_24 = arith.constant 0 : index
    %26 = vector.load %arg5[%c2_23, %c0_24] : memref<4x128xf32, #tpu.memory_space<vmem>>, vector<1x128xf32>
    %27 = vector.broadcast %26 : vector<1x128xf32> to vector<128x128xf32>
    %28 = arith.addf %25, %27 : vector<128x128xf32>
    %cst_25 = arith.constant 0.000000e+00 : f32
    %29 = vector.broadcast %cst_25 : f32 to vector<128x128xf32>
    %30 = arith.maximumf %28, %29 : vector<128x128xf32>
    %c0_26 = arith.constant 0 : index
    %c3 = arith.constant 3 : index
    %c0_27 = arith.constant 0 : index
    %c0_28 = arith.constant 0 : index
    %31 = vector.load %arg1[%c0_26, %c3, %c0_27, %c0_28] : memref<1x5x128x128xf32, #tpu.memory_space<vmem>>, vector<1x1x128x128xf32>
    %32 = vector.shape_cast %31 : vector<1x1x128x128xf32> to vector<128x128xf32>
    %33 = vector.extract_strided_slice %3 {offsets = [0, 384], sizes = [128, 128], strides = [1, 1]} : vector<128x512xf32> to vector<128x128xf32>
    %cst_29 = arith.constant dense<0.000000e+00> : vector<128x128xf32>
    %34 = tpu.matmul %32, %33, %cst_29 {dimension_numbers = #tpu.dot_dimension_numbers<[1], [0], [0], [1], [0, 0, 1, 1], [], []>} : vector<128x128xf32>, vector<128x128xf32>, vector<128x128xf32> -> vector<128x128xf32>
    %c3_30 = arith.constant 3 : index
    %c0_31 = arith.constant 0 : index
    %35 = vector.load %arg5[%c3_30, %c0_31] : memref<4x128xf32, #tpu.memory_space<vmem>>, vector<1x128xf32>
    %36 = vector.broadcast %35 : vector<1x128xf32> to vector<128x128xf32>
    %37 = arith.addf %34, %36 : vector<128x128xf32>
    %cst_32 = arith.constant 0.000000e+00 : f32
    %38 = vector.broadcast %cst_32 : f32 to vector<128x128xf32>
    %39 = arith.maximumf %37, %38 : vector<128x128xf32>
    %c0_33 = arith.constant 0 : index
    %c4 = arith.constant 4 : index
    %c0_34 = arith.constant 0 : index
    %c0_35 = arith.constant 0 : index
    %40 = vector.load %arg1[%c0_33, %c4, %c0_34, %c0_35] : memref<1x5x128x128xf32, #tpu.memory_space<vmem>>, vector<1x1x128x128xf32>
    %41 = vector.shape_cast %40 : vector<1x1x128x128xf32> to vector<128x128xf32>
    %42 = vector.extract_strided_slice %3 {offsets = [0, 384], sizes = [128, 128], strides = [1, 1]} : vector<128x512xf32> to vector<128x128xf32>
    %cst_36 = arith.constant dense<0.000000e+00> : vector<128x128xf32>
    %43 = tpu.matmul %41, %42, %cst_36 {dimension_numbers = #tpu.dot_dimension_numbers<[1], [0], [0], [1], [0, 0, 1, 1], [], []>} : vector<128x128xf32>, vector<128x128xf32>, vector<128x128xf32> -> vector<128x128xf32>
    %c3_37 = arith.constant 3 : index
    %c0_38 = arith.constant 0 : index
    %44 = vector.load %arg5[%c3_37, %c0_38] : memref<4x128xf32, #tpu.memory_space<vmem>>, vector<1x128xf32>
    %45 = vector.broadcast %44 : vector<1x128xf32> to vector<128x128xf32>
    %46 = arith.addf %43, %45 : vector<128x128xf32>
    %47 = tpu.concatenate %12, %21, %30, %39, %46 in 1 : vector<128x128xf32>, vector<128x128xf32>, vector<128x128xf32>, vector<128x128xf32>, vector<128x128xf32> -> vector<128x640xf32>
    %c0_39 = arith.constant 0 : index
    %c0_40 = arith.constant 0 : index
    %48 = vector.load %arg6[%c0_39, %c0_40] : memref<640x128xf32, #tpu.memory_space<vmem>>, vector<640x128xf32>
    %cst_41 = arith.constant dense<0.000000e+00> : vector<128x128xf32>
    %49 = tpu.matmul %47, %48, %cst_41 {dimension_numbers = #tpu.dot_dimension_numbers<[1], [0], [0], [1], [0, 0, 1, 1], [], []>} : vector<128x640xf32>, vector<640x128xf32>, vector<128x128xf32> -> vector<128x128xf32>
    %c0_42 = arith.constant 0 : index
    %c0_43 = arith.constant 0 : index
    %50 = vector.load %arg3[%c0_42, %c0_43] : memref<6x128xf32, #tpu.memory_space<vmem>>, vector<6x128xf32>
    %cst_44 = arith.constant dense<0.000000e+00> : vector<6x128xf32>
    %51 = tpu.matmul %50, %49, %cst_44 {dimension_numbers = #tpu.dot_dimension_numbers<[1], [0], [0], [1], [0, 0, 1, 1], [], []>} : vector<6x128xf32>, vector<128x128xf32>, vector<6x128xf32> -> vector<6x128xf32>
    %cst_45 = arith.constant 6.250000e-02 : f32
    %52 = vector.broadcast %cst_45 : f32 to vector<6x128xf32>
    %53 = arith.mulf %51, %52 : vector<6x128xf32>
    %54 = arith.mulf %49, %49 : vector<128x128xf32>
    %cst_46 = arith.constant dense<0.000000e+00> : vector<128xf32>
    %55 = vector.multi_reduction <add>, %54, %cst_46 [1] : vector<128x128xf32> to vector<128xf32>
    %56 = vector.shape_cast %55 : vector<128xf32> to vector<128x1xf32>
    %cst_47 = arith.constant 1.000000e-24 : f32
    %57 = vector.broadcast %cst_47 : f32 to vector<128x1xf32>
    %58 = arith.maximumf %56, %57 : vector<128x1xf32>
    %59 = math.rsqrt %58 : vector<128x1xf32>
    %60 = vector.broadcast %59 : vector<128x1xf32> to vector<128x128xf32>
    %61 = arith.mulf %49, %60 : vector<128x128xf32>
    %cst_48 = arith.constant dense<0.000000e+00> : vector<128x128xf32>
    %62 = tpu.matmul %61, %61, %cst_48 {dimension_numbers = #tpu.dot_dimension_numbers<[1], [1], [0], [0], [0, 0, 1, 0], [], []>} : vector<128x128xf32>, vector<128x128xf32>, vector<128x128xf32> -> vector<128x128xf32>
    %63 = math.tanh %62 : vector<128x128xf32>
    %cst_49 = arith.constant 1.000000e+00 : f32
    %64 = vector.broadcast %cst_49 : f32 to vector<128x128xf32>
    %65 = arith.addf %63, %64 : vector<128x128xf32>
    %cst_50 = arith.constant 0.095238097 : f32
    %66 = vector.broadcast %cst_50 : f32 to vector<128x128xf32>
    %67 = arith.divf %65, %66 : vector<128x128xf32>
    %68 = math.floor %67 : vector<128x128xf32>
    %cst_51 = arith.constant 0.000000e+00 : f32
    %cst_52 = arith.constant 2.000000e+01 : f32
    %69 = vector.broadcast %cst_51 : f32 to vector<128x128xf32>
    %70 = arith.maximumf %69, %68 : vector<128x128xf32>
    %71 = vector.broadcast %cst_52 : f32 to vector<128x128xf32>
    %72 = arith.minimumf %71, %70 : vector<128x128xf32>
    %cst_53 = arith.constant 1.000000e-01 : f32
    %73 = vector.broadcast %cst_53 : f32 to vector<128x128xf32>
    %74 = arith.mulf %73, %72 : vector<128x128xf32>
    %cst_54 = arith.constant -1.000000e+00 : f32
    %75 = vector.broadcast %cst_54 : f32 to vector<128x128xf32>
    %76 = arith.addf %75, %74 : vector<128x128xf32>
    %cst_55 = arith.constant dense<0.000000e+00> : vector<6x128xf32>
    %77 = tpu.matmul %50, %76, %cst_55 {dimension_numbers = #tpu.dot_dimension_numbers<[1], [0], [0], [1], [0, 0, 1, 1], [], []>} : vector<6x128xf32>, vector<128x128xf32>, vector<6x128xf32> -> vector<6x128xf32>
    %cst_56 = arith.constant dense<0.000000e+00> : vector<6x6xf32>
    %78 = tpu.matmul %77, %50, %cst_56 {dimension_numbers = #tpu.dot_dimension_numbers<[1], [1], [0], [0], [0, 0, 1, 0], [], []>} : vector<6x128xf32>, vector<6x128xf32>, vector<6x6xf32> -> vector<6x6xf32>
    %cst_57 = arith.constant 3.906250e-03 : f32
    %79 = vector.broadcast %cst_57 : f32 to vector<6x6xf32>
    %80 = arith.mulf %78, %79 : vector<6x6xf32>
    %cst_58 = arith.constant 0.000000e+00 : f32
    %81 = vector.broadcast %cst_58 : f32 to vector<1x20xf32>
    %cst_59 = arith.constant 0.000000e+00 : f32
    %82 = vector.broadcast %cst_59 : f32 to vector<1x6xf32>
    %83 = vector.extract_strided_slice %53 {offsets = [0, 0], sizes = [1, 128], strides = [1, 1]} : vector<6x128xf32> to vector<1x128xf32>
    %c0_60 = arith.constant 0 : index
    %c0_61 = arith.constant 0 : index
    %c0_62 = arith.constant 0 : index
    %84 = vector.load %arg7[%c0_60, %c0_61, %c0_62] : memref<6x128x20xf32, #tpu.memory_space<vmem>>, vector<1x128x20xf32>
    %85 = vector.shape_cast %84 : vector<1x128x20xf32> to vector<128x20xf32>
    %cst_63 = arith.constant dense<0.000000e+00> : vector<1x20xf32>
    %86 = tpu.matmul %83, %85, %cst_63 {dimension_numbers = #tpu.dot_dimension_numbers<[1], [0], [0], [1], [0, 0, 1, 1], [], []>} : vector<1x128xf32>, vector<128x20xf32>, vector<1x20xf32> -> vector<1x20xf32>
    %87 = arith.addf %81, %86 : vector<1x20xf32>
    %c0_64 = arith.constant 0 : index
    %c0_65 = arith.constant 0 : index
    %c0_66 = arith.constant 0 : index
    %88 = vector.load %arg11[%c0_64, %c0_65, %c0_66] : memref<6x128x6xf32, #tpu.memory_space<vmem>>, vector<1x128x6xf32>
    %89 = vector.shape_cast %88 : vector<1x128x6xf32> to vector<128x6xf32>
    %cst_67 = arith.constant dense<0.000000e+00> : vector<1x6xf32>
    %90 = tpu.matmul %83, %89, %cst_67 {dimension_numbers = #tpu.dot_dimension_numbers<[1], [0], [0], [1], [0, 0, 1, 1], [], []>} : vector<1x128xf32>, vector<128x6xf32>, vector<1x6xf32> -> vector<1x6xf32>
    %91 = arith.addf %82, %90 : vector<1x6xf32>
    %92 = vector.extract_strided_slice %53 {offsets = [1, 0], sizes = [1, 128], strides = [1, 1]} : vector<6x128xf32> to vector<1x128xf32>
    %c1_68 = arith.constant 1 : index
    %c0_69 = arith.constant 0 : index
    %c0_70 = arith.constant 0 : index
    %93 = vector.load %arg7[%c1_68, %c0_69, %c0_70] : memref<6x128x20xf32, #tpu.memory_space<vmem>>, vector<1x128x20xf32>
    %94 = vector.shape_cast %93 : vector<1x128x20xf32> to vector<128x20xf32>
    %cst_71 = arith.constant dense<0.000000e+00> : vector<1x20xf32>
    %95 = tpu.matmul %92, %94, %cst_71 {dimension_numbers = #tpu.dot_dimension_numbers<[1], [0], [0], [1], [0, 0, 1, 1], [], []>} : vector<1x128xf32>, vector<128x20xf32>, vector<1x20xf32> -> vector<1x20xf32>
    %96 = arith.addf %87, %95 : vector<1x20xf32>
    %c1_72 = arith.constant 1 : index
    %c0_73 = arith.constant 0 : index
    %c0_74 = arith.constant 0 : index
    %97 = vector.load %arg11[%c1_72, %c0_73, %c0_74] : memref<6x128x6xf32, #tpu.memory_space<vmem>>, vector<1x128x6xf32>
    %98 = vector.shape_cast %97 : vector<1x128x6xf32> to vector<128x6xf32>
    %cst_75 = arith.constant dense<0.000000e+00> : vector<1x6xf32>
    %99 = tpu.matmul %92, %98, %cst_75 {dimension_numbers = #tpu.dot_dimension_numbers<[1], [0], [0], [1], [0, 0, 1, 1], [], []>} : vector<1x128xf32>, vector<128x6xf32>, vector<1x6xf32> -> vector<1x6xf32>
    %100 = arith.addf %91, %99 : vector<1x6xf32>
    %101 = vector.extract_strided_slice %53 {offsets = [2, 0], sizes = [1, 128], strides = [1, 1]} : vector<6x128xf32> to vector<1x128xf32>
    %c2_76 = arith.constant 2 : index
    %c0_77 = arith.constant 0 : index
    %c0_78 = arith.constant 0 : index
    %102 = vector.load %arg7[%c2_76, %c0_77, %c0_78] : memref<6x128x20xf32, #tpu.memory_space<vmem>>, vector<1x128x20xf32>
    %103 = vector.shape_cast %102 : vector<1x128x20xf32> to vector<128x20xf32>
    %cst_79 = arith.constant dense<0.000000e+00> : vector<1x20xf32>
    %104 = tpu.matmul %101, %103, %cst_79 {dimension_numbers = #tpu.dot_dimension_numbers<[1], [0], [0], [1], [0, 0, 1, 1], [], []>} : vector<1x128xf32>, vector<128x20xf32>, vector<1x20xf32> -> vector<1x20xf32>
    %105 = arith.addf %96, %104 : vector<1x20xf32>
    %c2_80 = arith.constant 2 : index
    %c0_81 = arith.constant 0 : index
    %c0_82 = arith.constant 0 : index
    %106 = vector.load %arg11[%c2_80, %c0_81, %c0_82] : memref<6x128x6xf32, #tpu.memory_space<vmem>>, vector<1x128x6xf32>
    %107 = vector.shape_cast %106 : vector<1x128x6xf32> to vector<128x6xf32>
    %cst_83 = arith.constant dense<0.000000e+00> : vector<1x6xf32>
    %108 = tpu.matmul %101, %107, %cst_83 {dimension_numbers = #tpu.dot_dimension_numbers<[1], [0], [0], [1], [0, 0, 1, 1], [], []>} : vector<1x128xf32>, vector<128x6xf32>, vector<1x6xf32> -> vector<1x6xf32>
    %109 = arith.addf %100, %108 : vector<1x6xf32>
    %110 = vector.extract_strided_slice %53 {offsets = [3, 0], sizes = [1, 128], strides = [1, 1]} : vector<6x128xf32> to vector<1x128xf32>
    %c3_84 = arith.constant 3 : index
    %c0_85 = arith.constant 0 : index
    %c0_86 = arith.constant 0 : index
    %111 = vector.load %arg7[%c3_84, %c0_85, %c0_86] : memref<6x128x20xf32, #tpu.memory_space<vmem>>, vector<1x128x20xf32>
    %112 = vector.shape_cast %111 : vector<1x128x20xf32> to vector<128x20xf32>
    %cst_87 = arith.constant dense<0.000000e+00> : vector<1x20xf32>
    %113 = tpu.matmul %110, %112, %cst_87 {dimension_numbers = #tpu.dot_dimension_numbers<[1], [0], [0], [1], [0, 0, 1, 1], [], []>} : vector<1x128xf32>, vector<128x20xf32>, vector<1x20xf32> -> vector<1x20xf32>
    %114 = arith.addf %105, %113 : vector<1x20xf32>
    %c3_88 = arith.constant 3 : index
    %c0_89 = arith.constant 0 : index
    %c0_90 = arith.constant 0 : index
    %115 = vector.load %arg11[%c3_88, %c0_89, %c0_90] : memref<6x128x6xf32, #tpu.memory_space<vmem>>, vector<1x128x6xf32>
    %116 = vector.shape_cast %115 : vector<1x128x6xf32> to vector<128x6xf32>
    %cst_91 = arith.constant dense<0.000000e+00> : vector<1x6xf32>
    %117 = tpu.matmul %110, %116, %cst_91 {dimension_numbers = #tpu.dot_dimension_numbers<[1], [0], [0], [1], [0, 0, 1, 1], [], []>} : vector<1x128xf32>, vector<128x6xf32>, vector<1x6xf32> -> vector<1x6xf32>
    %118 = arith.addf %109, %117 : vector<1x6xf32>
    %119 = vector.extract_strided_slice %53 {offsets = [4, 0], sizes = [1, 128], strides = [1, 1]} : vector<6x128xf32> to vector<1x128xf32>
    %c4_92 = arith.constant 4 : index
    %c0_93 = arith.constant 0 : index
    %c0_94 = arith.constant 0 : index
    %120 = vector.load %arg7[%c4_92, %c0_93, %c0_94] : memref<6x128x20xf32, #tpu.memory_space<vmem>>, vector<1x128x20xf32>
    %121 = vector.shape_cast %120 : vector<1x128x20xf32> to vector<128x20xf32>
    %cst_95 = arith.constant dense<0.000000e+00> : vector<1x20xf32>
    %122 = tpu.matmul %119, %121, %cst_95 {dimension_numbers = #tpu.dot_dimension_numbers<[1], [0], [0], [1], [0, 0, 1, 1], [], []>} : vector<1x128xf32>, vector<128x20xf32>, vector<1x20xf32> -> vector<1x20xf32>
    %123 = arith.addf %114, %122 : vector<1x20xf32>
    %c4_96 = arith.constant 4 : index
    %c0_97 = arith.constant 0 : index
    %c0_98 = arith.constant 0 : index
    %124 = vector.load %arg11[%c4_96, %c0_97, %c0_98] : memref<6x128x6xf32, #tpu.memory_space<vmem>>, vector<1x128x6xf32>
    %125 = vector.shape_cast %124 : vector<1x128x6xf32> to vector<128x6xf32>
    %cst_99 = arith.constant dense<0.000000e+00> : vector<1x6xf32>
    %126 = tpu.matmul %119, %125, %cst_99 {dimension_numbers = #tpu.dot_dimension_numbers<[1], [0], [0], [1], [0, 0, 1, 1], [], []>} : vector<1x128xf32>, vector<128x6xf32>, vector<1x6xf32> -> vector<1x6xf32>
    %127 = arith.addf %118, %126 : vector<1x6xf32>
    %128 = vector.extract_strided_slice %53 {offsets = [5, 0], sizes = [1, 128], strides = [1, 1]} : vector<6x128xf32> to vector<1x128xf32>
    %c5 = arith.constant 5 : index
    %c0_100 = arith.constant 0 : index
    %c0_101 = arith.constant 0 : index
    %129 = vector.load %arg7[%c5, %c0_100, %c0_101] : memref<6x128x20xf32, #tpu.memory_space<vmem>>, vector<1x128x20xf32>
    %130 = vector.shape_cast %129 : vector<1x128x20xf32> to vector<128x20xf32>
    %cst_102 = arith.constant dense<0.000000e+00> : vector<1x20xf32>
    %131 = tpu.matmul %128, %130, %cst_102 {dimension_numbers = #tpu.dot_dimension_numbers<[1], [0], [0], [1], [0, 0, 1, 1], [], []>} : vector<1x128xf32>, vector<128x20xf32>, vector<1x20xf32> -> vector<1x20xf32>
    %132 = arith.addf %123, %131 : vector<1x20xf32>
    %c5_103 = arith.constant 5 : index
    %c0_104 = arith.constant 0 : index
    %c0_105 = arith.constant 0 : index
    %133 = vector.load %arg11[%c5_103, %c0_104, %c0_105] : memref<6x128x6xf32, #tpu.memory_space<vmem>>, vector<1x128x6xf32>
    %134 = vector.shape_cast %133 : vector<1x128x6xf32> to vector<128x6xf32>
    %cst_106 = arith.constant dense<0.000000e+00> : vector<1x6xf32>
    %135 = tpu.matmul %128, %134, %cst_106 {dimension_numbers = #tpu.dot_dimension_numbers<[1], [0], [0], [1], [0, 0, 1, 1], [], []>} : vector<1x128xf32>, vector<128x6xf32>, vector<1x6xf32> -> vector<1x6xf32>
    %136 = arith.addf %127, %135 : vector<1x6xf32>
    %c0_107 = arith.constant 0 : index
    %c0_108 = arith.constant 0 : index
    %137 = vector.load %arg8[%c0_107, %c0_108] : memref<1x20xf32, #tpu.memory_space<vmem>>, vector<1x20xf32>
    %138 = arith.addf %132, %137 : vector<1x20xf32>
    %cst_109 = arith.constant 0.000000e+00 : f32
    %139 = vector.broadcast %cst_109 : f32 to vector<1x20xf32>
    %140 = arith.maximumf %138, %139 : vector<1x20xf32>
    %c0_110 = arith.constant 0 : index
    %c0_111 = arith.constant 0 : index
    %141 = vector.load %arg9[%c0_110, %c0_111] : memref<20x2xf32, #tpu.memory_space<vmem>>, vector<20x2xf32>
    %cst_112 = arith.constant dense<0.000000e+00> : vector<1x2xf32>
    %142 = tpu.matmul %140, %141, %cst_112 {dimension_numbers = #tpu.dot_dimension_numbers<[1], [0], [0], [1], [0, 0, 1, 1], [], []>} : vector<1x20xf32>, vector<20x2xf32>, vector<1x2xf32> -> vector<1x2xf32>
    %c0_113 = arith.constant 0 : index
    %c0_114 = arith.constant 0 : index
    %143 = vector.load %arg10[%c0_113, %c0_114] : memref<1x2xf32, #tpu.memory_space<vmem>>, vector<1x2xf32>
    %144 = arith.addf %142, %143 : vector<1x2xf32>
    %cst_115 = arith.constant dense<0xFF800000> : vector<1xf32>
    %145 = vector.multi_reduction <maximumf>, %144, %cst_115 [1] : vector<1x2xf32> to vector<1xf32>
    %146 = vector.shape_cast %145 : vector<1xf32> to vector<1x1xf32>
    %147 = vector.broadcast %146 : vector<1x1xf32> to vector<1x2xf32>
    %148 = arith.subf %144, %147 : vector<1x2xf32>
    %149 = math.exp %148 : vector<1x2xf32>
    %cst_116 = arith.constant dense<0.000000e+00> : vector<1xf32>
    %150 = vector.multi_reduction <add>, %149, %cst_116 [1] : vector<1x2xf32> to vector<1xf32>
    %151 = vector.shape_cast %150 : vector<1xf32> to vector<1x1xf32>
    %152 = math.log %151 : vector<1x1xf32>
    %153 = arith.addf %146, %152 : vector<1x1xf32>
    %154 = vector.broadcast %153 : vector<1x1xf32> to vector<1x2xf32>
    %155 = arith.subf %144, %154 : vector<1x2xf32>
    %c0_117 = arith.constant 0 : index
    %c0_118 = arith.constant 0 : index
    %156 = vector.load %arg12[%c0_117, %c0_118] : memref<1x6xf32, #tpu.memory_space<vmem>>, vector<1x6xf32>
    %157 = arith.addf %136, %156 : vector<1x6xf32>
    %cst_119 = arith.constant 0.166666672 : f32
    %158 = vector.broadcast %cst_119 : f32 to vector<1x6xf32>
    %cst_120 = arith.constant dense<0.000000e+00> : vector<1x6xf32>
    %159 = tpu.matmul %158, %80, %cst_120 {dimension_numbers = #tpu.dot_dimension_numbers<[1], [1], [0], [0], [0, 0, 1, 0], [], []>} : vector<1x6xf32>, vector<6x6xf32>, vector<1x6xf32> -> vector<1x6xf32>
    %160 = arith.mulf %159, %157 : vector<1x6xf32>
    %c0_121 = arith.constant 0 : index
    %c0_122 = arith.constant 0 : index
    %161 = vector.load %arg13[%c0_121, %c0_122] : memref<6x2xf32, #tpu.memory_space<vmem>>, vector<6x2xf32>
    %cst_123 = arith.constant dense<0.000000e+00> : vector<1x2xf32>
    %162 = tpu.matmul %160, %161, %cst_123 {dimension_numbers = #tpu.dot_dimension_numbers<[1], [0], [0], [1], [0, 0, 1, 1], [], []>} : vector<1x6xf32>, vector<6x2xf32>, vector<1x2xf32> -> vector<1x2xf32>
    %c0_124 = arith.constant 0 : index
    %c0_125 = arith.constant 0 : index
    %163 = vector.load %arg14[%c0_124, %c0_125] : memref<1x2xf32, #tpu.memory_space<vmem>>, vector<1x2xf32>
    %164 = arith.addf %162, %163 : vector<1x2xf32>
    %cst_126 = arith.constant dense<0xFF800000> : vector<1xf32>
    %165 = vector.multi_reduction <maximumf>, %164, %cst_126 [1] : vector<1x2xf32> to vector<1xf32>
    %166 = vector.shape_cast %165 : vector<1xf32> to vector<1x1xf32>
    %167 = vector.broadcast %166 : vector<1x1xf32> to vector<1x2xf32>
    %168 = arith.subf %164, %167 : vector<1x2xf32>
    %169 = math.exp %168 : vector<1x2xf32>
    %cst_127 = arith.constant dense<0.000000e+00> : vector<1xf32>
    %170 = vector.multi_reduction <add>, %169, %cst_127 [1] : vector<1x2xf32> to vector<1xf32>
    %171 = vector.shape_cast %170 : vector<1xf32> to vector<1x1xf32>
    %172 = math.log %171 : vector<1x1xf32>
    %173 = arith.addf %166, %172 : vector<1x1xf32>
    %174 = vector.broadcast %173 : vector<1x1xf32> to vector<1x2xf32>
    %175 = arith.subf %164, %174 : vector<1x2xf32>
    %cst_128 = arith.constant 4.000000e-01 : f32
    %176 = vector.broadcast %cst_128 : f32 to vector<1x2xf32>
    %177 = arith.mulf %155, %176 : vector<1x2xf32>
    %cst_129 = arith.constant 6.000000e-01 : f32
    %178 = vector.broadcast %cst_129 : f32 to vector<1x2xf32>
    %179 = arith.mulf %175, %178 : vector<1x2xf32>
    %180 = arith.addf %177, %179 : vector<1x2xf32>
    %c0_130 = arith.constant 0 : index
    %c0_131 = arith.constant 0 : index
    %c0_132 = arith.constant 0 : index
    %181 = vector.load %arg15[%c0_130, %c0_131, %c0_132] : memref<1x1x2xf32, #tpu.memory_space<vmem>>, vector<1x1x2xf32>
    %182 = vector.shape_cast %181 : vector<1x1x2xf32> to vector<1x2xf32>
    %183 = vector.shape_cast %180 : vector<1x2xf32> to vector<1x1x2xf32>
    tpu.vector_store %arg15[%c0_130, %c0_131, %c0_132], %183 {strides = array<i32>} : memref<1x1x2xf32, #tpu.memory_space<vmem>>, vector<1x1x2xf32>,
    return
  }
  func.func @transform_0(%arg0: i32) -> (i32, i32, i32, i32) {
    %c0_i32 = arith.constant 0 : i32
    %c0_i32_0 = arith.constant 0 : i32
    %c0_i32_1 = arith.constant 0 : i32
    %c0_i32_2 = arith.constant 0 : i32
    return %arg0, %c0_i32, %c0_i32_0, %c0_i32_1 : i32, i32, i32, i32
  }
  func.func @transform_1(%arg0: i32) -> (i32, i32, i32) {
    %c0_i32 = arith.constant 0 : i32
    %c0_i32_0 = arith.constant 0 : i32
    %c0_i32_1 = arith.constant 0 : i32
    return %arg0, %c0_i32, %c0_i32_0 : i32, i32, i32
  }
  func.func @transform_2(%arg0: i32) -> (i32, i32) {
    %c0_i32 = arith.constant 0 : i32
    %c0_i32_0 = arith.constant 0 : i32
    %c0_i32_1 = arith.constant 0 : i32
    return %c0_i32, %c0_i32_0 : i32, i32
  }
  func.func @transform_3(%arg0: i32) -> (i32, i32) {
    %c0_i32 = arith.constant 0 : i32
    %c0_i32_0 = arith.constant 0 : i32
    %c0_i32_1 = arith.constant 0 : i32
    return %c0_i32, %c0_i32_0 : i32, i32
  }
  func.func @transform_4(%arg0: i32) -> (i32, i32) {
    %c0_i32 = arith.constant 0 : i32
    %c0_i32_0 = arith.constant 0 : i32
    %c0_i32_1 = arith.constant 0 : i32
    return %c0_i32, %c0_i32_0 : i32, i32
  }
  func.func @transform_5(%arg0: i32) -> (i32, i32) {
    %c0_i32 = arith.constant 0 : i32
    %c0_i32_0 = arith.constant 0 : i32
    %c0_i32_1 = arith.constant 0 : i32
    return %c0_i32, %c0_i32_0 : i32, i32
  }
  func.func @transform_6(%arg0: i32) -> (i32, i32, i32) {
    %c0_i32 = arith.constant 0 : i32
    %c0_i32_0 = arith.constant 0 : i32
    %c0_i32_1 = arith.constant 0 : i32
    %c0_i32_2 = arith.constant 0 : i32
    return %c0_i32, %c0_i32_0, %c0_i32_1 : i32, i32, i32
  }
  func.func @transform_7(%arg0: i32) -> (i32, i32) {
    %c0_i32 = arith.constant 0 : i32
    %c0_i32_0 = arith.constant 0 : i32
    %c0_i32_1 = arith.constant 0 : i32
    return %c0_i32, %c0_i32_0 : i32, i32
  }
  func.func @transform_8(%arg0: i32) -> (i32, i32) {
    %c0_i32 = arith.constant 0 : i32
    %c0_i32_0 = arith.constant 0 : i32
    %c0_i32_1 = arith.constant 0 : i32
    return %c0_i32, %c0_i32_0 : i32, i32
  }
  func.func @transform_9(%arg0: i32) -> (i32, i32) {
    %c0_i32 = arith.constant 0 : i32
    %c0_i32_0 = arith.constant 0 : i32
    %c0_i32_1 = arith.constant 0 : i32
    return %c0_i32, %c0_i32_0 : i32, i32
  }
  func.func @transform_10(%arg0: i32) -> (i32, i32, i32) {
    %c0_i32 = arith.constant 0 : i32
    %c0_i32_0 = arith.constant 0 : i32
    %c0_i32_1 = arith.constant 0 : i32
    %c0_i32_2 = arith.constant 0 : i32
    return %c0_i32, %c0_i32_0, %c0_i32_1 : i32, i32, i32
  }
  func.func @transform_11(%arg0: i32) -> (i32, i32) {
    %c0_i32 = arith.constant 0 : i32
    %c0_i32_0 = arith.constant 0 : i32
    %c0_i32_1 = arith.constant 0 : i32
    return %c0_i32, %c0_i32_0 : i32, i32
  }
  func.func @transform_12(%arg0: i32) -> (i32, i32) {
    %c0_i32 = arith.constant 0 : i32
    %c0_i32_0 = arith.constant 0 : i32
    %c0_i32_1 = arith.constant 0 : i32
    return %c0_i32, %c0_i32_0 : i32, i32
  }
  func.func @transform_13(%arg0: i32) -> (i32, i32) {
    %c0_i32 = arith.constant 0 : i32
    %c0_i32_0 = arith.constant 0 : i32
    %c0_i32_1 = arith.constant 0 : i32
    return %c0_i32, %c0_i32_0 : i32, i32
  }
  func.func @transform_14(%arg0: i32) -> (i32, i32, i32) {
    %c0_i32 = arith.constant 0 : i32
    %c0_i32_0 = arith.constant 0 : i32
    %c0_i32_1 = arith.constant 0 : i32
    return %arg0, %c0_i32, %c0_i32_0 : i32, i32, i32
  }
}

</mosaic_0001>

<llo_original>
// kernel: net_forward.1
$region0: #{net_forward.1}
  #allocation0 [shape = 'u32[]', space=smem, size = 0x4, offset = 0x4, fixed_abs, tag = 'smem constant byte address 0x4 - core index']
  #allocation1 [shape = 'u32[144,128]{1,0:T(1,128)}', space=vmem, size = 0x12000, scoped, tag = 'internal scratch']
  %s0 = inlined_call_operand.vmem [shape: f32[2,5,128,128], index: 0, kind: input, shape index: {}]
  %s1 = inlined_call_operand.vmem [shape: f32[2,128,32], index: 1, kind: input, shape index: {}]
  %s2 = inlined_call_operand.vmem [shape: f32[6,128], index: 2, kind: input, shape index: {}]
  %s3 = inlined_call_operand.vmem [shape: f32[32,512], index: 3, kind: input, shape index: {}]
  %s4 = inlined_call_operand.vmem [shape: f32[4,128], index: 4, kind: input, shape index: {}]
  %s5 = inlined_call_operand.vmem [shape: f32[640,128], index: 5, kind: input, shape index: {}]
  %s6 = inlined_call_operand.vmem [shape: f32[6,128,20], index: 6, kind: input, shape index: {}]
  %s7 = inlined_call_operand.vmem [shape: f32[1,20], index: 7, kind: input, shape index: {}]
  %s8 = inlined_call_operand.vmem [shape: f32[20,2], index: 8, kind: input, shape index: {}]
  %s9 = inlined_call_operand.vmem [shape: f32[1,2], index: 9, kind: input, shape index: {}]
  %s10 = inlined_call_operand.vmem [shape: f32[6,128,6], index: 10, kind: input, shape index: {}]
  %s11 = inlined_call_operand.vmem [shape: f32[1,6], index: 11, kind: input, shape index: {}]
  %s12 = inlined_call_operand.vmem [shape: f32[6,2], index: 12, kind: input, shape index: {}]
  %s13 = inlined_call_operand.vmem [shape: f32[1,2], index: 13, kind: input, shape index: {}]
  %s14 = inlined_call_operand.hbm [shape: f32[2,1,2], index: 14, kind: output, shape index: {}]
  %s15 = sld [smem:[#allocation0]]
  $region89: #{net_forward.1} parent=0
    _
  %s17 = ssub.s32 1, %s15
  %s18 = scalar_select 0, %s17, %s15
  $region1: #{net_forward.1} parent=0
    #allocation2 [shape = 'u8[1024]{0}', space=vmem, size = 0x400, scoped, tag = 'output window, operand 0']
    #allocation3 [shape = 's32[2]{0}', space=sflag, size = 0x8, scoped, tag = 'scoped memory for net_forward.1']
    %19 = vsyncpa [#allocation3], 0
    %s20 = scalar_lea.sflag [#allocation3], 1
    %21 = vsyncpa %s20, 0
    loop: start=0, step=1, limit=4
    $region2: #{net_forward.1} parent=1 // loop_pre_header
      _
    $region3: #{net_forward.1} parent=1 // loop_header
      %s23 = sphi 0, %s27
      %p24 = scmp.ge.s32.totalorder %s23, 4
      %s33 = sphi 0, %s35
      %s36 = sphi 0, %s33
      %s37 = sphi 0, %s36
      %s53 = sphi 0, %s37
      %s59 = sphi 0, %s61
      %s62 = sphi 0, %s59
      %s63 = sphi 0, %s62
      %s79 = sphi 0, %s63
      %s83 = sphi 0, %s83
      %s85 = sphi 0, %s83
      %s86 = sphi 0, %s85
      %s100 = sphi 0, %s86
      %s104 = sphi 0, %s104
      %s106 = sphi 0, %s104
      %s107 = sphi 0, %s106
      %s121 = sphi 0, %s107
      %s125 = sphi 0, %s125
      %s127 = sphi 0, %s125
      %s128 = sphi 0, %s127
      %s142 = sphi 0, %s128
      %s146 = sphi 0, %s146
      %s148 = sphi 0, %s146
      %s149 = sphi 0, %s148
      %s163 = sphi 0, %s149
      %s167 = sphi 0, %s167
      %s169 = sphi 0, %s167
      %s170 = sphi 0, %s169
      %s184 = sphi 0, %s170
      %s188 = sphi 0, %s188
      %s190 = sphi 0, %s188
      %s191 = sphi 0, %s190
      %s205 = sphi 0, %s191
      %s209 = sphi 0, %s209
      %s211 = sphi 0, %s209
      %s212 = sphi 0, %s211
      %s226 = sphi 0, %s212
      %s230 = sphi 0, %s230
      %s232 = sphi 0, %s230
      %s233 = sphi 0, %s232
      %s247 = sphi 0, %s233
      %s251 = sphi 0, %s251
      %s253 = sphi 0, %s251
      %s254 = sphi 0, %s253
      %s268 = sphi 0, %s254
      %s272 = sphi 0, %s272
      %s274 = sphi 0, %s272
      %s275 = sphi 0, %s274
      %s289 = sphi 0, %s275
      %s293 = sphi 0, %s293
      %s295 = sphi 0, %s293
      %s296 = sphi 0, %s295
      %s310 = sphi 0, %s296
      %s314 = sphi 0, %s314
      %s316 = sphi 0, %s314
      %s317 = sphi 0, %s316
      %s331 = sphi 0, %s317
      %s337 = sphi 0, %s339
      %s340 = sphi 0, %s337
      %s341 = sphi 0, %s340
      %s357 = sphi 0, %s341
    $region4: #{net_forward.1} parent=1 // loop_header_branch
      %26 = sbr.rel (%p24) target = $region8
    $region5: #{net_forward.1} parent=1 // loop_body
      %s28 = ssub.s32 %s23, 1
      %s29 = ssub.s32 %s23, 2
      %s30 = sadd.s32 %s23, 1
      %s31 = ssub.s32 %s23, %s30
      %p32 = scmp.eq.s32.totalorder %s31, 0
      %s34 = sadd.s32 %s33, 1
      %s35 = scalar_select %p32, %s33, %s34
      %p38 = pneg %p32
      %p39 = scmp.eq.s32.totalorder %s23, 1
      %p40 = por %p38, %p39
      %p41 = scmp.ne.s32.totalorder %s33, %s36
      %p42 = scmp.eq.s32.totalorder %s23, 0
      %p43 = por %p41, %p42
      %p44 = scmp.ne.s32.totalorder %s33, %s36
      %p45 = scmp.eq.s32.totalorder %s28, 1
      %p46 = por %p44, %p45
      %p47 = scmp.ne.s32.totalorder %s36, %s37
      %p48 = scmp.eq.s32.totalorder %s28, 0
      %p49 = por %p47, %p48
      %p50 = scmp.ne.s32.totalorder %s36, %s37
      %p51 = scmp.eq.s32.totalorder %s29, 1
      %p52 = por %p50, %p51
      %p54 = scmp.ne.s32.totalorder %s37, %s53
      %p55 = scmp.eq.s32.totalorder %s29, 0
      %p56 = por %p54, %p55
      %s57 = ssub.s32 %s23, %s30
      %p58 = scmp.eq.s32.totalorder %s57, 0
      %s60 = sadd.s32 %s59, 1
      %s61 = scalar_select %p58, %s59, %s60
      %p64 = pneg %p58
      %p65 = scmp.eq.s32.totalorder %s23, 1
      %p66 = por %p64, %p65
      %p67 = scmp.ne.s32.totalorder %s59, %s62
      %p68 = scmp.eq.s32.totalorder %s23, 0
      %p69 = por %p67, %p68
      %p70 = scmp.ne.s32.totalorder %s59, %s62
      %p71 = scmp.eq.s32.totalorder %s28, 1
      %p72 = por %p70, %p71
      %p73 = scmp.ne.s32.totalorder %s62, %s63
      %p74 = scmp.eq.s32.totalorder %s28, 0
      %p75 = por %p73, %p74
      %p76 = scmp.ne.s32.totalorder %s62, %s63
      %p77 = scmp.eq.s32.totalorder %s29, 1
      %p78 = por %p76, %p77
      %p80 = scmp.ne.s32.totalorder %s63, %s79
      %p81 = scmp.eq.s32.totalorder %s29, 0
      %p82 = por %p80, %p81
      %s84 = sadd.s32 %s83, 1
      %p87 = scmp.eq.s32.totalorder %s23, 1
      %p88 = scmp.ne.s32.totalorder %s83, %s85
      %p89 = scmp.eq.s32.totalorder %s23, 0
      %p90 = por %p88, %p89
      %p91 = scmp.ne.s32.totalorder %s83, %s85
      %p92 = scmp.eq.s32.totalorder %s28, 1
      %p93 = por %p91, %p92
      %p94 = scmp.ne.s32.totalorder %s85, %s86
      %p95 = scmp.eq.s32.totalorder %s28, 0
      %p96 = por %p94, %p95
      %p97 = scmp.ne.s32.totalorder %s85, %s86
      %p98 = scmp.eq.s32.totalorder %s29, 1
      %p99 = por %p97, %p98
      %p101 = scmp.ne.s32.totalorder %s86, %s100
      %p102 = scmp.eq.s32.totalorder %s29, 0
      %p103 = por %p101, %p102
      %s105 = sadd.s32 %s104, 1
      %p108 = scmp.eq.s32.totalorder %s23, 1
      %p109 = scmp.ne.s32.totalorder %s104, %s106
      %p110 = scmp.eq.s32.totalorder %s23, 0
      %p111 = por %p109, %p110
      %p112 = scmp.ne.s32.totalorder %s104, %s106
      %p113 = scmp.eq.s32.totalorder %s28, 1
      %p114 = por %p112, %p113
      %p115 = scmp.ne.s32.totalorder %s106, %s107
      %p116 = scmp.eq.s32.totalorder %s28, 0
      %p117 = por %p115, %p116
      %p118 = scmp.ne.s32.totalorder %s106, %s107
      %p119 = scmp.eq.s32.totalorder %s29, 1
      %p120 = por %p118, %p119
      %p122 = scmp.ne.s32.totalorder %s107, %s121
      %p123 = scmp.eq.s32.totalorder %s29, 0
      %p124 = por %p122, %p123
      %s126 = sadd.s32 %s125, 1
      %p129 = scmp.eq.s32.totalorder %s23, 1
      %p130 = scmp.ne.s32.totalorder %s125, %s127
      %p131 = scmp.eq.s32.totalorder %s23, 0
      %p132 = por %p130, %p131
      %p133 = scmp.ne.s32.totalorder %s125, %s127
      %p134 = scmp.eq.s32.totalorder %s28, 1
      %p135 = por %p133, %p134
      %p136 = scmp.ne.s32.totalorder %s127, %s128
      %p137 = scmp.eq.s32.totalorder %s28, 0
      %p138 = por %p136, %p137
      %p139 = scmp.ne.s32.totalorder %s127, %s128
      %p140 = scmp.eq.s32.totalorder %s29, 1
      %p141 = por %p139, %p140
      %p143 = scmp.ne.s32.totalorder %s128, %s142
      %p144 = scmp.eq.s32.totalorder %s29, 0
      %p145 = por %p143, %p144
      %s147 = sadd.s32 %s146, 1
      %p150 = scmp.eq.s32.totalorder %s23, 1
      %p151 = scmp.ne.s32.totalorder %s146, %s148
      %p152 = scmp.eq.s32.totalorder %s23, 0
      %p153 = por %p151, %p152
      %p154 = scmp.ne.s32.totalorder %s146, %s148
      %p155 = scmp.eq.s32.totalorder %s28, 1
      %p156 = por %p154, %p155
      %p157 = scmp.ne.s32.totalorder %s148, %s149
      %p158 = scmp.eq.s32.totalorder %s28, 0
      %p159 = por %p157, %p158
      %p160 = scmp.ne.s32.totalorder %s148, %s149
      %p161 = scmp.eq.s32.totalorder %s29, 1
      %p162 = por %p160, %p161
      %p164 = scmp.ne.s32.totalorder %s149, %s163
      %p165 = scmp.eq.s32.totalorder %s29, 0
      %p166 = por %p164, %p165
      %s168 = sadd.s32 %s167, 1
      %p171 = scmp.eq.s32.totalorder %s23, 1
      %p172 = scmp.ne.s32.totalorder %s167, %s169
      %p173 = scmp.eq.s32.totalorder %s23, 0
      %p174 = por %p172, %p173
      %p175 = scmp.ne.s32.totalorder %s167, %s169
      %p176 = scmp.eq.s32.totalorder %s28, 1
      %p177 = por %p175, %p176
      %p178 = scmp.ne.s32.totalorder %s169, %s170
      %p179 = scmp.eq.s32.totalorder %s28, 0
      %p180 = por %p178, %p179
      %p181 = scmp.ne.s32.totalorder %s169, %s170
      %p182 = scmp.eq.s32.totalorder %s29, 1
      %p183 = por %p181, %p182
      %p185 = scmp.ne.s32.totalorder %s170, %s184
      %p186 = scmp.eq.s32.totalorder %s29, 0
      %p187 = por %p185, %p186
      %s189 = sadd.s32 %s188, 1
      %p192 = scmp.eq.s32.totalorder %s23, 1
      %p193 = scmp.ne.s32.totalorder %s188, %s190
      %p194 = scmp.eq.s32.totalorder %s23, 0
      %p195 = por %p193, %p194
      %p196 = scmp.ne.s32.totalorder %s188, %s190
      %p197 = scmp.eq.s32.totalorder %s28, 1
      %p198 = por %p196, %p197
      %p199 = scmp.ne.s32.totalorder %s190, %s191
      %p200 = scmp.eq.s32.totalorder %s28, 0
      %p201 = por %p199, %p200
      %p202 = scmp.ne.s32.totalorder %s190, %s191
      %p203 = scmp.eq.s32.totalorder %s29, 1
      %p204 = por %p202, %p203
      %p206 = scmp.ne.s32.totalorder %s191, %s205
      %p207 = scmp.eq.s32.totalorder %s29, 0
      %p208 = por %p206, %p207
      %s210 = sadd.s32 %s209, 1
      %p213 = scmp.eq.s32.totalorder %s23, 1
      %p214 = scmp.ne.s32.totalorder %s209, %s211
      %p215 = scmp.eq.s32.totalorder %s23, 0
      %p216 = por %p214, %p215
      %p217 = scmp.ne.s32.totalorder %s209, %s211
      %p218 = scmp.eq.s32.totalorder %s28, 1
      %p219 = por %p217, %p218
      %p220 = scmp.ne.s32.totalorder %s211, %s212
      %p221 = scmp.eq.s32.totalorder %s28, 0
      %p222 = por %p220, %p221
      %p223 = scmp.ne.s32.totalorder %s211, %s212
      %p224 = scmp.eq.s32.totalorder %s29, 1
      %p225 = por %p223, %p224
      %p227 = scmp.ne.s32.totalorder %s212, %s226
      %p228 = scmp.eq.s32.totalorder %s29, 0
      %p229 = por %p227, %p228
      %s231 = sadd.s32 %s230, 1
      %p234 = scmp.eq.s32.totalorder %s23, 1
      %p235 = scmp.ne.s32.totalorder %s230, %s232
      %p236 = scmp.eq.s32.totalorder %s23, 0
      %p237 = por %p235, %p236
      %p238 = scmp.ne.s32.totalorder %s230, %s232
      %p239 = scmp.eq.s32.totalorder %s28, 1
      %p240 = por %p238, %p239
      %p241 = scmp.ne.s32.totalorder %s232, %s233
      %p242 = scmp.eq.s32.totalorder %s28, 0
      %p243 = por %p241, %p242
      %p244 = scmp.ne.s32.totalorder %s232, %s233
      %p245 = scmp.eq.s32.totalorder %s29, 1
      %p246 = por %p244, %p245
      %p248 = scmp.ne.s32.totalorder %s233, %s247
      %p249 = scmp.eq.s32.totalorder %s29, 0
      %p250 = por %p248, %p249
      %s252 = sadd.s32 %s251, 1
      %p255 = scmp.eq.s32.totalorder %s23, 1
      %p256 = scmp.ne.s32.totalorder %s251, %s253
      %p257 = scmp.eq.s32.totalorder %s23, 0
      %p258 = por %p256, %p257
      %p259 = scmp.ne.s32.totalorder %s251, %s253
      %p260 = scmp.eq.s32.totalorder %s28, 1
      %p261 = por %p259, %p260
      %p262 = scmp.ne.s32.totalorder %s253, %s254
      %p263 = scmp.eq.s32.totalorder %s28, 0
      %p264 = por %p262, %p263
      %p265 = scmp.ne.s32.totalorder %s253, %s254
      %p266 = scmp.eq.s32.totalorder %s29, 1
      %p267 = por %p265, %p266
      %p269 = scmp.ne.s32.totalorder %s254, %s268
      %p270 = scmp.eq.s32.totalorder %s29, 0
      %p271 = por %p269, %p270
      %s273 = sadd.s32 %s272, 1
      %p276 = scmp.eq.s32.totalorder %s23, 1
      %p277 = scmp.ne.s32.totalorder %s272, %s274
      %p278 = scmp.eq.s32.totalorder %s23, 0
      %p279 = por %p277, %p278
      %p280 = scmp.ne.s32.totalorder %s272, %s274
      %p281 = scmp.eq.s32.totalorder %s28, 1
      %p282 = por %p280, %p281
      %p283 = scmp.ne.s32.totalorder %s274, %s275
      %p284 = scmp.eq.s32.totalorder %s28, 0
      %p285 = por %p283, %p284
      %p286 = scmp.ne.s32.totalorder %s274, %s275
      %p287 = scmp.eq.s32.totalorder %s29, 1
      %p288 = por %p286, %p287
      %p290 = scmp.ne.s32.totalorder %s275, %s289
      %p291 = scmp.eq.s32.totalorder %s29, 0
      %p292 = por %p290, %p291
      %s294 = sadd.s32 %s293, 1
      %p297 = scmp.eq.s32.totalorder %s23, 1
      %p298 = scmp.ne.s32.totalorder %s293, %s295
      %p299 = scmp.eq.s32.totalorder %s23, 0
      %p300 = por %p298, %p299
      %p301 = scmp.ne.s32.totalorder %s293, %s295
      %p302 = scmp.eq.s32.totalorder %s28, 1
      %p303 = por %p301, %p302
      %p304 = scmp.ne.s32.totalorder %s295, %s296
      %p305 = scmp.eq.s32.totalorder %s28, 0
      %p306 = por %p304, %p305
      %p307 = scmp.ne.s32.totalorder %s295, %s296
      %p308 = scmp.eq.s32.totalorder %s29, 1
      %p309 = por %p307, %p308
      %p311 = scmp.ne.s32.totalorder %s296, %s310
      %p312 = scmp.eq.s32.totalorder %s29, 0
      %p313 = por %p311, %p312
      %s315 = sadd.s32 %s314, 1
      %p318 = scmp.eq.s32.totalorder %s23, 1
      %p319 = scmp.ne.s32.totalorder %s314, %s316
      %p320 = scmp.eq.s32.totalorder %s23, 0
      %p321 = por %p319, %p320
      %p322 = scmp.ne.s32.totalorder %s314, %s316
      %p323 = scmp.eq.s32.totalorder %s28, 1
      %p324 = por %p322, %p323
      %p325 = scmp.ne.s32.totalorder %s316, %s317
      %p326 = scmp.eq.s32.totalorder %s28, 0
      %p327 = por %p325, %p326
      %p328 = scmp.ne.s32.totalorder %s316, %s317
      %p329 = scmp.eq.s32.totalorder %s29, 1
      %p330 = por %p328, %p329
      %p332 = scmp.ne.s32.totalorder %s317, %s331
      %p333 = scmp.eq.s32.totalorder %s29, 0
      %p334 = por %p332, %p333
      %s335 = ssub.s32 %s23, %s30
      %p336 = scmp.eq.s32.totalorder %s335, 0
      %s338 = sadd.s32 %s337, 1
      %s339 = scalar_select %p336, %s337, %s338
      %p342 = pneg %p336
      %p343 = scmp.eq.s32.totalorder %s23, 1
      %p344 = por %p342, %p343
      %p345 = scmp.ne.s32.totalorder %s337, %s340
      %p346 = scmp.eq.s32.totalorder %s23, 0
      %p347 = por %p345, %p346
      %p348 = scmp.ne.s32.totalorder %s337, %s340
      %p349 = scmp.eq.s32.totalorder %s28, 1
      %p350 = por %p348, %p349
      %p351 = scmp.ne.s32.totalorder %s340, %s341
      %p352 = scmp.eq.s32.totalorder %s28, 0
      %p353 = por %p351, %p352
      %p354 = scmp.ne.s32.totalorder %s340, %s341
      %p355 = scmp.eq.s32.totalorder %s29, 1
      %p356 = por %p354, %p355
      %p358 = scmp.ne.s32.totalorder %s341, %s357
      %p359 = scmp.eq.s32.totalorder %s29, 0
      %p360 = por %p358, %p359
      %p361 = scmp.le.s32.totalorder 1, %s23
      %p362 = scmp.lt.s32.totalorder %s23, 3
      %p363 = pnand %p361, %p362
      %p364 = pneg %p363
      // Predicated region
      $region9: #{net_forward.1} parent=5 // pred_check
        _
      $region10: #{net_forward.1} parent=5 // pred_check_branch
        %366 = sbr.rel (%p363) target = $region12
      $region11: #{net_forward.1} parent=5 // pred_region
        %s367 = ssub.s32 %s23, 1
        // Predicated region
        $region13: #{net_forward.1} parent=11 // pred_check
          %p368 = pneg %p96
        $region14: #{net_forward.1} parent=11 // pred_check_branch
          %370 = sbr.rel (%p368) target = $region16
        $region15: #{net_forward.1} parent=11 // pred_region
          _
        $region16: #{net_forward.1} parent=11 // pred_fallthru
          _
        // Predicated region
        $region17: #{net_forward.1} parent=11 // pred_check
          %p371 = pneg %p117
        $region18: #{net_forward.1} parent=11 // pred_check_branch
          %373 = sbr.rel (%p371) target = $region20
        $region19: #{net_forward.1} parent=11 // pred_region
          _
        $region20: #{net_forward.1} parent=11 // pred_fallthru
          _
        // Predicated region
        $region21: #{net_forward.1} parent=11 // pred_check
          %p374 = pneg %p138
        $region22: #{net_forward.1} parent=11 // pred_check_branch
          %376 = sbr.rel (%p374) target = $region24
        $region23: #{net_forward.1} parent=11 // pred_region
          _
        $region24: #{net_forward.1} parent=11 // pred_fallthru
          _
        // Predicated region
        $region25: #{net_forward.1} parent=11 // pred_check
          %p377 = pneg %p159
        $region26: #{net_forward.1} parent=11 // pred_check_branch
          %379 = sbr.rel (%p377) target = $region28
        $region27: #{net_forward.1} parent=11 // pred_region
          _
        $region28: #{net_forward.1} parent=11 // pred_fallthru
          _
        // Predicated region
        $region29: #{net_forward.1} parent=11 // pred_check
          %p380 = pneg %p180
        $region30: #{net_forward.1} parent=11 // pred_check_branch
          %382 = sbr.rel (%p380) target = $region32
        $region31: #{net_forward.1} parent=11 // pred_region
          _
        $region32: #{net_forward.1} parent=11 // pred_fallthru
          _
        // Predicated region
        $region33: #{net_forward.1} parent=11 // pred_check
          %p383 = pneg %p201
        $region34: #{net_forward.1} parent=11 // pred_check_branch
          %385 = sbr.rel (%p383) target = $region36
        $region35: #{net_forward.1} parent=11 // pred_region
          _
        $region36: #{net_forward.1} parent=11 // pred_fallthru
          _
        // Predicated region
        $region37: #{net_forward.1} parent=11 // pred_check
          %p386 = pneg %p222
        $region38: #{net_forward.1} parent=11 // pred_check_branch
          %388 = sbr.rel (%p386) target = $region40
        $region39: #{net_forward.1} parent=11 // pred_region
          _
        $region40: #{net_forward.1} parent=11 // pred_fallthru
          _
        // Predicated region
        $region41: #{net_forward.1} parent=11 // pred_check
          %p389 = pneg %p243
        $region42: #{net_forward.1} parent=11 // pred_check_branch
          %391 = sbr.rel (%p389) target = $region44
        $region43: #{net_forward.1} parent=11 // pred_region
          _
        $region44: #{net_forward.1} parent=11 // pred_fallthru
          _
        // Predicated region
        $region45: #{net_forward.1} parent=11 // pred_check
          %p392 = pneg %p264
        $region46: #{net_forward.1} parent=11 // pred_check_branch
          %394 = sbr.rel (%p392) target = $region48
        $region47: #{net_forward.1} parent=11 // pred_region
          _
        $region48: #{net_forward.1} parent=11 // pred_fallthru
          _
        // Predicated region
        $region49: #{net_forward.1} parent=11 // pred_check
          %p395 = pneg %p285
        $region50: #{net_forward.1} parent=11 // pred_check_branch
          %397 = sbr.rel (%p395) target = $region52
        $region51: #{net_forward.1} parent=11 // pred_region
          _
        $region52: #{net_forward.1} parent=11 // pred_fallthru
          _
        // Predicated region
        $region53: #{net_forward.1} parent=11 // pred_check
          %p398 = pneg %p306
        $region54: #{net_forward.1} parent=11 // pred_check_branch
          %400 = sbr.rel (%p398) target = $region56
        $region55: #{net_forward.1} parent=11 // pred_region
          _
        $region56: #{net_forward.1} parent=11 // pred_fallthru
          _
        // Predicated region
        $region57: #{net_forward.1} parent=11 // pred_check
          %p401 = pneg %p327
        $region58: #{net_forward.1} parent=11 // pred_check_branch
          %403 = sbr.rel (%p401) target = $region60
        $region59: #{net_forward.1} parent=11 // pred_region
          _
        $region60: #{net_forward.1} parent=11 // pred_fallthru
          _
      $region12: #{net_forward.1} parent=5 // pred_fallthru
        _
      %p404 = scmp.lt.s32.totalorder %s23, 2
      // Predicated region
      $region61: #{net_forward.1} parent=5 // pred_check
        %p405 = pneg %p404
      $region62: #{net_forward.1} parent=5 // pred_check_branch
        %407 = sbr.rel (%p405) target = $region64
      $region63: #{net_forward.1} parent=5 // pred_region
        // Predicated region
        $region65: #{net_forward.1} parent=63 // pred_check
          %p408 = pneg %p43
        $region66: #{net_forward.1} parent=63 // pred_check_branch
          %410 = sbr.rel (%p408) target = $region68
        $region67: #{net_forward.1} parent=63 // pred_region
          %p411 = scmp.lt.s32.totalorder %s23, 1
          %s412 = scalar_select %p411, %s23, 1
          %s413 = smul.addr %s412, 80
          %s414 = smul.addr %s413, 8
          %s415 = scalar_lea.vmem %s0, %s414
        $region68: #{net_forward.1} parent=63 // pred_fallthru
          _
        // Predicated region
        $region69: #{net_forward.1} parent=63 // pred_check
          %p416 = pneg %p69
        $region70: #{net_forward.1} parent=63 // pred_check_branch
          %418 = sbr.rel (%p416) target = $region72
        $region71: #{net_forward.1} parent=63 // pred_region
          %p419 = scmp.lt.s32.totalorder %s23, 1
          %s420 = scalar_select %p419, %s23, 1
          %s421 = smul.addr %s420, 16
          %s422 = smul.addr %s421, 8
          %s423 = scalar_lea.vmem %s1, %s422
        $region72: #{net_forward.1} parent=63 // pred_fallthru
          _
      $region64: #{net_forward.1} parent=5 // pred_fallthru
        _
      %p424 = scmp.le.s32.totalorder 1, %s23
      %p425 = scmp.lt.s32.totalorder %s23, 3
      %p426 = pnand %p424, %p425
      %p427 = pneg %p426
      // Predicated region
      $region73: #{net_forward.1} parent=5 // pred_check
        _
      $region74: #{net_forward.1} parent=5 // pred_check_branch
        %429 = sbr.rel (%p426) target = $region76
      $region75: #{net_forward.1} parent=5 // pred_region
        %s430 = ssub.s32 %s23, 1
        %p431 = scmp.lt.s32.totalorder %s28, 1
        %s432 = scalar_select %p431, %s28, 1
        %s433 = smul.addr %s432, 80
        %s434 = smul.addr %s433, 8
        %s435 = scalar_lea.vmem %s0, %s434
        %p436 = pneg %p49
        %p437 = pneg %p46
        %p438 = scmp.lt.s32.totalorder %s28, 1
        %s439 = scalar_select %p438, %s28, 1
        %s440 = smul.addr %s439, 16
        %s441 = smul.addr %s440, 8
        %s442 = scalar_lea.vmem %s1, %s441
        %p443 = pneg %p75
        %p444 = pneg %p72
        %p445 = pneg %p96
        %p446 = pneg %p93
        %p447 = pneg %p117
        %p448 = pneg %p114
        %p449 = pneg %p138
        %p450 = pneg %p135
        %p451 = pneg %p159
        %p452 = pneg %p156
        %p453 = pneg %p180
        %p454 = pneg %p177
        %p455 = pneg %p201
        %p456 = pneg %p198
        %p457 = pneg %p222
        %p458 = pneg %p219
        %p459 = pneg %p243
        %p460 = pneg %p240
        %p461 = pneg %p264
        %p462 = pneg %p261
        %p463 = pneg %p285
        %p464 = pneg %p282
        %p465 = pneg %p306
        %p466 = pneg %p303
        %p467 = pneg %p327
        %p468 = pneg %p324
        %p469 = pneg %p353
        %p470 = pneg %p350
        %s471 = sand.u32 %s340, 1
        %s472 = scalar_lea.sflag [#allocation3], %s471
        %s473 = sand.u32 %s340, 1
        %s474 = scalar_lea.vmem [#allocation2], %s473
        %p475 = scmp.lt.s32.totalorder %s28, 1
        %s476 = scalar_select %p475, %s28, 1
        %s477 = smul.addr %s476, 80
        %s478 = smul.addr %s477, 8
        %s479 = scalar_lea.vmem %s0, %s478
        %p480 = scmp.lt.s32.totalorder %s28, 1
        %s481 = scalar_select %p480, %s28, 1
        %s482 = smul.addr %s481, 16
        %s483 = smul.addr %s482, 8
        %s484 = scalar_lea.vmem %s1, %s483
        %v485 = vld [vmem:[%s484] sm:$0xff]
        %v486 = vld [vmem:[%s484 + $0x8] sm:$0xff]
        %v487 = vld [vmem:[%s484 + $0x10] sm:$0xff]
        %v488 = vld [vmem:[%s484 + $0x18] sm:$0xff]
        %v489 = vld [vmem:[%s484 + $0x20] sm:$0xff]
        %v490 = vld [vmem:[%s484 + $0x28] sm:$0xff]
        %v491 = vld [vmem:[%s484 + $0x30] sm:$0xff]
        %v492 = vld [vmem:[%s484 + $0x38] sm:$0xff]
        %v493 = vld [vmem:[%s484 + $0x40] sm:$0xff]
        %v494 = vld [vmem:[%s484 + $0x48] sm:$0xff]
        %v495 = vld [vmem:[%s484 + $0x50] sm:$0xff]
        %v496 = vld [vmem:[%s484 + $0x58] sm:$0xff]
        %v497 = vld [vmem:[%s484 + $0x60] sm:$0xff]
        %v498 = vld [vmem:[%s484 + $0x68] sm:$0xff]
        %v499 = vld [vmem:[%s484 + $0x70] sm:$0xff]
        %v500 = vld [vmem:[%s484 + $0x78] sm:$0xff]
        %v501 = vld [vmem:[%s3] sm:$0xff]
        %v502 = vld [vmem:[%s3 + $0x8] sm:$0xff]
        %v503 = vld [vmem:[%s3 + $0x10] sm:$0xff]
        %v504 = vld [vmem:[%s3 + $0x18] sm:$0xff]
        %v505 = vld [vmem:[%s3 + $0x20] sm:$0xff]
        %v506 = vld [vmem:[%s3 + $0x28] sm:$0xff]
        %v507 = vld [vmem:[%s3 + $0x30] sm:$0xff]
        %v508 = vld [vmem:[%s3 + $0x38] sm:$0xff]
        %v509 = vld [vmem:[%s3 + $0x40] sm:$0xff]
        %v510 = vld [vmem:[%s3 + $0x48] sm:$0xff]
        %v511 = vld [vmem:[%s3 + $0x50] sm:$0xff]
        %v512 = vld [vmem:[%s3 + $0x58] sm:$0xff]
        %v513 = vld [vmem:[%s3 + $0x60] sm:$0xff]
        %v514 = vld [vmem:[%s3 + $0x68] sm:$0xff]
        %v515 = vld [vmem:[%s3 + $0x70] sm:$0xff]
        %v516 = vld [vmem:[%s3 + $0x78] sm:$0xff]
        %vm517 = vcmask 261120
        %v519 = vsel %vm517, %v485, 0
        %v522 = vsel %vm517, %v486, 0
        %v525 = vsel %vm517, %v487, 0
        %v528 = vsel %vm517, %v488, 0
        %v531 = vsel %vm517, %v489, 0
        %v534 = vsel %vm517, %v490, 0
        %v537 = vsel %vm517, %v491, 0
        %v540 = vsel %vm517, %v492, 0
        %v543 = vsel %vm517, %v493, 0
        %v546 = vsel %vm517, %v494, 0
        %v549 = vsel %vm517, %v495, 0
        %v552 = vsel %vm517, %v496, 0
        %v555 = vsel %vm517, %v497, 0
        %v558 = vsel %vm517, %v498, 0
        %v561 = vsel %vm517, %v499, 0
        %v564 = vsel %vm517, %v500, 0
        %566 = vmatprep.subr.mxu0 %v502
        %567 = vmatpush1.msra.mxu0 %v501
        %568 = vmatprep.subr.mxu0 %v506
        %569 = vmatpush1.msra.mxu0 %v505
        %570 = vmatprep.subr.mxu0 %v510
        %571 = vmatpush1.msra.mxu0 %v509
        %572 = vmatprep.subr.mxu0 %v514
        %573 = vmatpush1.msra.mxu0 %v513
        %574 = vmatprep.subr.mxu0 0.0
        %575 = vmatpush1.msra.mxu0 0.0
        %576 = vmatprep.subr.mxu0 0.0
        %577 = vmatpush1.msra.mxu0 0.0
        %578 = vmatprep.subr.mxu0 0.0
        %579 = vmatpush1.msra.mxu0 0.0
        %580 = vmatprep.subr.mxu0 0.0
        %581 = vmatpush1.msra.mxu0 0.0
        %582 = vmatprep.subr.mxu0 0.0
        %583 = vmatpush1.msra.mxu0 0.0
        %584 = vmatprep.subr.mxu0 0.0
        %585 = vmatpush1.msra.mxu0 0.0
        %586 = vmatprep.subr.mxu0 0.0
        %587 = vmatpush1.msra.mxu0 0.0
        %588 = vmatprep.subr.mxu0 0.0
        %589 = vmatpush1.msra.mxu0 0.0
        %590 = vmatprep.subr.mxu0 0.0
        %591 = vmatpush1.msra.mxu0 0.0
        %592 = vmatprep.subr.mxu0 0.0
        %593 = vmatpush1.msra.mxu0 0.0
        %594 = vmatprep.subr.mxu0 0.0
        %595 = vmatpush1.msra.mxu0 0.0
        %596 = vmatprep.subr.mxu0 0.0
        %597 = vmatpush1.msra.mxu0 0.0
        %598 = vmatprep.subr.mxu0 0.0
        %599 = vmatpush1.msra.mxu0 0.0
        %600 = vmatprep.subr.mxu0 0.0
        %601 = vmatpush1.msra.mxu0 0.0
        %602 = vmatprep.subr.mxu0 0.0
        %603 = vmatpush1.msra.mxu0 0.0
        %604 = vmatprep.subr.mxu0 0.0
        %605 = vmatpush1.msra.mxu0 0.0
        %606 = vmatprep.subr.mxu0 0.0
        %607 = vmatpush1.msra.mxu0 0.0
        %608 = vmatprep.subr.mxu0 0.0
        %609 = vmatpush1.msra.mxu0 0.0
        %610 = vmatprep.subr.mxu0 0.0
        %611 = vmatpush1.msra.mxu0 0.0
        %612 = vmatprep.subr.mxu0 0.0
        %613 = vmatpush1.msra.mxu0 0.0
        %614 = vmatprep.subr.mxu0 0.0
        %615 = vmatpush1.msra.mxu0 0.0
        %616 = vmatprep.subr.mxu0 0.0
        %617 = vmatpush1.msra.mxu0 0.0
        %618 = vmatprep.subr.mxu0 0.0
        %619 = vmatpush1.msra.mxu0 0.0
        %620 = vmatprep.subr.mxu0 0.0
        %621 = vmatpush1.msra.mxu0 0.0
        %622 = vmatprep.subr.mxu0 0.0
        %623 = vmatpush1.msra.mxu0 0.0
        %624 = vmatprep.subr.mxu0 0.0
        %625 = vmatpush1.msra.mxu0 0.0
        %626 = vmatprep.subr.mxu0 0.0
        %627 = vmatpush1.msra.mxu0 0.0
        %628 = vmatprep.subr.mxu0 0.0
        %629 = vmatpush1.msra.mxu0 0.0
        %630 = vmatprep.mubr.f32.mxu0 0.0
        %631 = vmatmul.mubr.f32.gmra.mrb[0].mxu0 %v519
        %v632 = vpop.f32.mrb[0].mxu0
        %v633 = vadd.f32 0.0, %v632
        %v634 = vpop.f32.mrb[0].mxu0
        %v635 = vadd.f32 0.0, %v634
        %636 = vmatprep.mubr.f32.mxu0 0.0
        %637 = vmatmul.mubr.f32.gmra.mrb[0].mxu0 %v522
        %v638 = vpop.f32.mrb[0].mxu0
        %v639 = vadd.f32 0.0, %v638
        %v640 = vpop.f32.mrb[0].mxu0
        %v641 = vadd.f32 0.0, %v640
        %642 = vmatprep.mubr.f32.mxu0 0.0
        %643 = vmatmul.mubr.f32.gmra.mrb[0].mxu0 %v525
        %v644 = vpop.f32.mrb[0].mxu0
        %v645 = vadd.f32 0.0, %v644
        %v646 = vpop.f32.mrb[0].mxu0
        %v647 = vadd.f32 0.0, %v646
        %648 = vmatprep.mubr.f32.mxu0 0.0
        %649 = vmatmul.mubr.f32.gmra.mrb[0].mxu0 %v528
        %v650 = vpop.f32.mrb[0].mxu0
        %v651 = vadd.f32 0.0, %v650
        %v652 = vpop.f32.mrb[0].mxu0
        %v653 = vadd.f32 0.0, %v652
        %654 = vmatprep.mubr.f32.mxu0 0.0
        %655 = vmatmul.mubr.f32.gmra.mrb[0].mxu0 %v531
        %v656 = vpop.f32.mrb[0].mxu0
        %v657 = vadd.f32 0.0, %v656
        %v658 = vpop.f32.mrb[0].mxu0
        %v659 = vadd.f32 0.0, %v658
        %660 = vmatprep.mubr.f32.mxu0 0.0
        %661 = vmatmul.mubr.f32.gmra.mrb[0].mxu0 %v534
        %v662 = vpop.f32.mrb[0].mxu0
        %v663 = vadd.f32 0.0, %v662
        %v664 = vpop.f32.mrb[0].mxu0
        %v665 = vadd.f32 0.0, %v664
        %666 = vmatprep.mubr.f32.mxu0 0.0
        %667 = vmatmul.mubr.f32.gmra.mrb[0].mxu0 %v537
        %v668 = vpop.f32.mrb[0].mxu0
        %v669 = vadd.f32 0.0, %v668
        %v670 = vpop.f32.mrb[0].mxu0
        %v671 = vadd.f32 0.0, %v670
        %672 = vmatprep.mubr.f32.mxu0 0.0
        %673 = vmatmul.mubr.f32.gmra.mrb[0].mxu0 %v540
        %v674 = vpop.f32.mrb[0].mxu0
        %v675 = vadd.f32 0.0, %v674
        %v676 = vpop.f32.mrb[0].mxu0
        %v677 = vadd.f32 0.0, %v676
        %678 = vmatprep.mubr.f32.mxu0 0.0
        %679 = vmatmul.mubr.f32.gmra.mrb[0].mxu0 %v543
        %v680 = vpop.f32.mrb[0].mxu0
        %v681 = vadd.f32 0.0, %v680
        %v682 = vpop.f32.mrb[0].mxu0
        %v683 = vadd.f32 0.0, %v682
        %684 = vmatprep.mubr.f32.mxu0 0.0
        %685 = vmatmul.mubr.f32.gmra.mrb[0].mxu0 %v546
        %v686 = vpop.f32.mrb[0].mxu0
        %v687 = vadd.f32 0.0, %v686
        %v688 = vpop.f32.mrb[0].mxu0
        %v689 = vadd.f32 0.0, %v688
        %690 = vmatprep.mubr.f32.mxu0 0.0
        %691 = vmatmul.mubr.f32.gmra.mrb[0].mxu0 %v549
        %v692 = vpop.f32.mrb[0].mxu0
        %v693 = vadd.f32 0.0, %v692
        %v694 = vpop.f32.mrb[0].mxu0
        %v695 = vadd.f32 0.0, %v694
        %696 = vmatprep.mubr.f32.mxu0 0.0
        %697 = vmatmul.mubr.f32.gmra.mrb[0].mxu0 %v552
        %v698 = vpop.f32.mrb[0].mxu0
        %v699 = vadd.f32 0.0, %v698
        %v700 = vpop.f32.mrb[0].mxu0
        %v701 = vadd.f32 0.0, %v700
        %702 = vmatprep.mubr.f32.mxu0 0.0
        %703 = vmatmul.mubr.f32.gmra.mrb[0].mxu0 %v555
        %v704 = vpop.f32.mrb[0].mxu0
        %v705 = vadd.f32 0.0, %v704
        %v706 = vpop.f32.mrb[0].mxu0
        %v707 = vadd.f32 0.0, %v706
        %708 = vmatprep.mubr.f32.mxu0 0.0
        %709 = vmatmul.mubr.f32.gmra.mrb[0].mxu0 %v558
        %v710 = vpop.f32.mrb[0].mxu0
        %v711 = vadd.f32 0.0, %v710
        %v712 = vpop.f32.mrb[0].mxu0
        %v713 = vadd.f32 0.0, %v712
        %714 = vmatprep.mubr.f32.mxu0 0.0
        %715 = vmatmul.mubr.f32.gmra.mrb[0].mxu0 %v561
        %v716 = vpop.f32.mrb[0].mxu0
        %v717 = vadd.f32 0.0, %v716
        %v718 = vpop.f32.mrb[0].mxu0
        %v719 = vadd.f32 0.0, %v718
        %720 = vmatprep.mubr.f32.mxu0 0.0
        %721 = vmatmul.mubr.f32.gmra.mrb[0].mxu0 %v564
        %v722 = vpop.f32.mrb[0].mxu0
        %v723 = vadd.f32 0.0, %v722
        %v724 = vpop.f32.mrb[0].mxu0
        %v725 = vadd.f32 0.0, %v724
        %726 = vdwg.mxu0
        %727 = vmatprep.subr.mxu0 %v504
        %728 = vmatpush1.msra.mxu0 %v503
        %729 = vmatprep.subr.mxu0 %v508
        %730 = vmatpush1.msra.mxu0 %v507
        %731 = vmatprep.subr.mxu0 %v512
        %732 = vmatpush1.msra.mxu0 %v511
        %733 = vmatprep.subr.mxu0 %v516
        %734 = vmatpush1.msra.mxu0 %v515
        %735 = vmatprep.subr.mxu0 0.0
        %736 = vmatpush1.msra.mxu0 0.0
        %737 = vmatprep.subr.mxu0 0.0
        %738 = vmatpush1.msra.mxu0 0.0
        %739 = vmatprep.subr.mxu0 0.0
        %740 = vmatpush1.msra.mxu0 0.0
        %741 = vmatprep.subr.mxu0 0.0
        %742 = vmatpush1.msra.mxu0 0.0
        %743 = vmatprep.subr.mxu0 0.0
        %744 = vmatpush1.msra.mxu0 0.0
        %745 = vmatprep.subr.mxu0 0.0
        %746 = vmatpush1.msra.mxu0 0.0
        %747 = vmatprep.subr.mxu0 0.0
        %748 = vmatpush1.msra.mxu0 0.0
        %749 = vmatprep.subr.mxu0 0.0
        %750 = vmatpush1.msra.mxu0 0.0
        %751 = vmatprep.subr.mxu0 0.0
        %752 = vmatpush1.msra.mxu0 0.0
        %753 = vmatprep.subr.mxu0 0.0
        %754 = vmatpush1.msra.mxu0 0.0
        %755 = vmatprep.subr.mxu0 0.0
        %756 = vmatpush1.msra.mxu0 0.0
        %757 = vmatprep.subr.mxu0 0.0
        %758 = vmatpush1.msra.mxu0 0.0
        %759 = vmatprep.subr.mxu0 0.0
        %760 = vmatpush1.msra.mxu0 0.0
        %761 = vmatprep.subr.mxu0 0.0
        %762 = vmatpush1.msra.mxu0 0.0
        %763 = vmatprep.subr.mxu0 0.0
        %764 = vmatpush1.msra.mxu0 0.0
        %765 = vmatprep.subr.mxu0 0.0
        %766 = vmatpush1.msra.mxu0 0.0
        %767 = vmatprep.subr.mxu0 0.0
        %768 = vmatpush1.msra.mxu0 0.0
        %769 = vmatprep.subr.mxu0 0.0
        %770 = vmatpush1.msra.mxu0 0.0
        %771 = vmatprep.subr.mxu0 0.0
        %772 = vmatpush1.msra.mxu0 0.0
        %773 = vmatprep.subr.mxu0 0.0
        %774 = vmatpush1.msra.mxu0 0.0
        %775 = vmatprep.subr.mxu0 0.0
        %776 = vmatpush1.msra.mxu0 0.0
        %777 = vmatprep.subr.mxu0 0.0
        %778 = vmatpush1.msra.mxu0 0.0
        %779 = vmatprep.subr.mxu0 0.0
        %780 = vmatpush1.msra.mxu0 0.0
        %781 = vmatprep.subr.mxu0 0.0
        %782 = vmatpush1.msra.mxu0 0.0
        %783 = vmatprep.subr.mxu0 0.0
        %784 = vmatpush1.msra.mxu0 0.0
        %785 = vmatprep.subr.mxu0 0.0
        %786 = vmatpush1.msra.mxu0 0.0
        %787 = vmatprep.subr.mxu0 0.0
        %788 = vmatpush1.msra.mxu0 0.0
        %789 = vmatprep.subr.mxu0 0.0
        %790 = vmatpush1.msra.mxu0 0.0
        %791 = vmatprep.mubr.f32.mxu0 0.0
        %792 = vmatmul.mubr.f32.gmra.mrb[0].mxu0 %v519
        %v793 = vpop.f32.mrb[0].mxu0
        %v794 = vadd.f32 0.0, %v793
        %v795 = vpop.f32.mrb[0].mxu0
        %v796 = vadd.f32 0.0, %v795
        %797 = vmatprep.mubr.f32.mxu0 0.0
        %798 = vmatmul.mubr.f32.gmra.mrb[0].mxu0 %v522
        %v799 = vpop.f32.mrb[0].mxu0
        %v800 = vadd.f32 0.0, %v799
        %v801 = vpop.f32.mrb[0].mxu0
        %v802 = vadd.f32 0.0, %v801
        %803 = vmatprep.mubr.f32.mxu0 0.0
        %804 = vmatmul.mubr.f32.gmra.mrb[0].mxu0 %v525
        %v805 = vpop.f32.mrb[0].mxu0
        %v806 = vadd.f32 0.0, %v805
        %v807 = vpop.f32.mrb[0].mxu0
        %v808 = vadd.f32 0.0, %v807
        %809 = vmatprep.mubr.f32.mxu0 0.0
        %810 = vmatmul.mubr.f32.gmra.mrb[0].mxu0 %v528
        %v811 = vpop.f32.mrb[0].mxu0
        %v812 = vadd.f32 0.0, %v811
        %v813 = vpop.f32.mrb[0].mxu0
        %v814 = vadd.f32 0.0, %v813
        %815 = vmatprep.mubr.f32.mxu0 0.0
        %816 = vmatmul.mubr.f32.gmra.mrb[0].mxu0 %v531
        %v817 = vpop.f32.mrb[0].mxu0
        %v818 = vadd.f32 0.0, %v817
        %v819 = vpop.f32.mrb[0].mxu0
        %v820 = vadd.f32 0.0, %v819
        %821 = vmatprep.mubr.f32.mxu0 0.0
        %822 = vmatmul.mubr.f32.gmra.mrb[0].mxu0 %v534
        %v823 = vpop.f32.mrb[0].mxu0
        %v824 = vadd.f32 0.0, %v823
        %v825 = vpop.f32.mrb[0].mxu0
        %v826 = vadd.f32 0.0, %v825
        %827 = vmatprep.mubr.f32.mxu0 0.0
        %828 = vmatmul.mubr.f32.gmra.mrb[0].mxu0 %v537
        %v829 = vpop.f32.mrb[0].mxu0
        %v830 = vadd.f32 0.0, %v829
        %v831 = vpop.f32.mrb[0].mxu0
        %v832 = vadd.f32 0.0, %v831
        %833 = vmatprep.mubr.f32.mxu0 0.0
        %834 = vmatmul.mubr.f32.gmra.mrb[0].mxu0 %v540
        %v835 = vpop.f32.mrb[0].mxu0
        %v836 = vadd.f32 0.0, %v835
        %v837 = vpop.f32.mrb[0].mxu0
        %v838 = vadd.f32 0.0, %v837
        %839 = vmatprep.mubr.f32.mxu0 0.0
        %840 = vmatmul.mubr.f32.gmra.mrb[0].mxu0 %v543
        %v841 = vpop.f32.mrb[0].mxu0
        %v842 = vadd.f32 0.0, %v841
        %v843 = vpop.f32.mrb[0].mxu0
        %v844 = vadd.f32 0.0, %v843
        %845 = vmatprep.mubr.f32.mxu0 0.0
        %846 = vmatmul.mubr.f32.gmra.mrb[0].mxu0 %v546
        %v847 = vpop.f32.mrb[0].mxu0
        %v848 = vadd.f32 0.0, %v847
        %v849 = vpop.f32.mrb[0].mxu0
        %v850 = vadd.f32 0.0, %v849
        %851 = vmatprep.mubr.f32.mxu0 0.0
        %852 = vmatmul.mubr.f32.gmra.mrb[0].mxu0 %v549
        %v853 = vpop.f32.mrb[0].mxu0
        %v854 = vadd.f32 0.0, %v853
        %v855 = vpop.f32.mrb[0].mxu0
        %v856 = vadd.f32 0.0, %v855
        %857 = vmatprep.mubr.f32.mxu0 0.0
        %858 = vmatmul.mubr.f32.gmra.mrb[0].mxu0 %v552
        %v859 = vpop.f32.mrb[0].mxu0
        %v860 = vadd.f32 0.0, %v859
        %v861 = vpop.f32.mrb[0].mxu0
        %v862 = vadd.f32 0.0, %v861
        %863 = vmatprep.mubr.f32.mxu0 0.0
        %864 = vmatmul.mubr.f32.gmra.mrb[0].mxu0 %v555
        %v865 = vpop.f32.mrb[0].mxu0
        %v866 = vadd.f32 0.0, %v865
        %v867 = vpop.f32.mrb[0].mxu0
        %v868 = vadd.f32 0.0, %v867
        %869 = vmatprep.mubr.f32.mxu0 0.0
        %870 = vmatmul.mubr.f32.gmra.mrb[0].mxu0 %v558
        %v871 = vpop.f32.mrb[0].mxu0
        %v872 = vadd.f32 0.0, %v871
        %v873 = vpop.f32.mrb[0].mxu0
        %v874 = vadd.f32 0.0, %v873
        %875 = vmatprep.mubr.f32.mxu0 0.0
        %876 = vmatmul.mubr.f32.gmra.mrb[0].mxu0 %v561
        %v877 = vpop.f32.mrb[0].mxu0
        %v878 = vadd.f32 0.0, %v877
        %v879 = vpop.f32.mrb[0].mxu0
        %v880 = vadd.f32 0.0, %v879
        %881 = vmatprep.mubr.f32.mxu0 0.0
        %882 = vmatmul.mubr.f32.gmra.mrb[0].mxu0 %v564
        %v883 = vpop.f32.mrb[0].mxu0
        %v884 = vadd.f32 0.0, %v883
        %v885 = vpop.f32.mrb[0].mxu0
        %v886 = vadd.f32 0.0, %v885
        %887 = vdwg.mxu0
        %v888 = vld [vmem:[%s479] sm:$0xff]
        %v889 = vld [vmem:[%s479 + $0x8] sm:$0xff]
        %v890 = vld [vmem:[%s479 + $0x10] sm:$0xff]
        %v891 = vld [vmem:[%s479 + $0x18] sm:$0xff]
        %v892 = vld [vmem:[%s479 + $0x20] sm:$0xff]
        %v893 = vld [vmem:[%s479 + $0x28] sm:$0xff]
        %v894 = vld [vmem:[%s479 + $0x30] sm:$0xff]
        %v895 = vld [vmem:[%s479 + $0x38] sm:$0xff]
        %v896 = vld [vmem:[%s479 + $0x40] sm:$0xff]
        %v897 = vld [vmem:[%s479 + $0x48] sm:$0xff]
        %v898 = vld [vmem:[%s479 + $0x50] sm:$0xff]
        %v899 = vld [vmem:[%s479 + $0x58] sm:$0xff]
        %v900 = vld [vmem:[%s479 + $0x60] sm:$0xff]
        %v901 = vld [vmem:[%s479 + $0x68] sm:$0xff]
        %v902 = vld [vmem:[%s479 + $0x70] sm:$0xff]
        %v903 = vld [vmem:[%s479 + $0x78] sm:$0xff]
        %v904 = vld [vmem:[%s4] sm:$0x1]
        %v905 = vlaneseq
        %v906 = vshrl.u32 %v905, 7
        %v907 = vsub.s32 0, %v906
        %v908 = vrot.slane %v904, %v907
        %909 = vmatprep.subr.mxu0 0.0
        %910 = vmatpush1.msra.mxu0 %v633
        %911 = vmatprep.subr.mxu0 0.0
        %912 = vmatpush1.msra.mxu0 %v639
        %913 = vmatprep.subr.mxu0 0.0
        %914 = vmatpush1.msra.mxu0 %v645
        %915 = vmatprep.subr.mxu0 0.0
        %916 = vmatpush1.msra.mxu0 %v651
        %917 = vmatprep.subr.mxu0 0.0
        %918 = vmatpush1.msra.mxu0 %v657
        %919 = vmatprep.subr.mxu0 0.0
        %920 = vmatpush1.msra.mxu0 %v663
        %921 = vmatprep.subr.mxu0 0.0
        %922 = vmatpush1.msra.mxu0 %v669
        %923 = vmatprep.subr.mxu0 0.0
        %924 = vmatpush1.msra.mxu0 %v675
        %925 = vmatprep.subr.mxu0 0.0
        %926 = vmatpush1.msra.mxu0 %v681
        %927 = vmatprep.subr.mxu0 0.0
        %928 = vmatpush1.msra.mxu0 %v687
        %929 = vmatprep.subr.mxu0 0.0
        %930 = vmatpush1.msra.mxu0 %v693
        %931 = vmatprep.subr.mxu0 0.0
        %932 = vmatpush1.msra.mxu0 %v699
        %933 = vmatprep.subr.mxu0 0.0
        %934 = vmatpush1.msra.mxu0 %v705
        %935 = vmatprep.subr.mxu0 0.0
        %936 = vmatpush1.msra.mxu0 %v711
        %937 = vmatprep.subr.mxu0 0.0
        %938 = vmatpush1.msra.mxu0 %v717
        %939 = vmatprep.subr.mxu0 0.0
        %940 = vmatpush1.msra.mxu0 %v723
        %941 = vmatprep.subr.mxu0 0.0
        %942 = vmatpush1.msra.mxu0 0.0
        %943 = vmatprep.subr.mxu0 0.0
        %944 = vmatpush1.msra.mxu0 0.0
        %945 = vmatprep.subr.mxu0 0.0
        %946 = vmatpush1.msra.mxu0 0.0
        %947 = vmatprep.subr.mxu0 0.0
        %948 = vmatpush1.msra.mxu0 0.0
        %949 = vmatprep.subr.mxu0 0.0
        %950 = vmatpush1.msra.mxu0 0.0
        %951 = vmatprep.subr.mxu0 0.0
        %952 = vmatpush1.msra.mxu0 0.0
        %953 = vmatprep.subr.mxu0 0.0
        %954 = vmatpush1.msra.mxu0 0.0
        %955 = vmatprep.subr.mxu0 0.0
        %956 = vmatpush1.msra.mxu0 0.0
        %957 = vmatprep.subr.mxu0 0.0
        %958 = vmatpush1.msra.mxu0 0.0
        %959 = vmatprep.subr.mxu0 0.0
        %960 = vmatpush1.msra.mxu0 0.0
        %961 = vmatprep.subr.mxu0 0.0
        %962 = vmatpush1.msra.mxu0 0.0
        %963 = vmatprep.subr.mxu0 0.0
        %964 = vmatpush1.msra.mxu0 0.0
        %965 = vmatprep.subr.mxu0 0.0
        %966 = vmatpush1.msra.mxu0 0.0
        %967 = vmatprep.subr.mxu0 0.0
        %968 = vmatpush1.msra.mxu0 0.0
        %969 = vmatprep.subr.mxu0 0.0
        %970 = vmatpush1.msra.mxu0 0.0
        %971 = vmatprep.subr.mxu0 0.0
        %972 = vmatpush1.msra.mxu0 0.0
        %973 = vmatprep.mubr.f32.mxu0 0.0
        %974 = vmatmul.mubr.f32.gmra.mrb[0].mxu0 %v888
        %v975 = vpop.f32.mrb[0].mxu0
        %v976 = vadd.f32 %v908, %v975
        %v977 = vpop.f32.mrb[0].mxu0
        %978 = vmatprep.mubr.f32.mxu0 0.0
        %979 = vmatmul.mubr.f32.gmra.mrb[0].mxu0 %v889
        %v980 = vpop.f32.mrb[0].mxu0
        %v981 = vadd.f32 %v908, %v980
        %v982 = vpop.f32.mrb[0].mxu0
        %983 = vmatprep.mubr.f32.mxu0 0.0
        %984 = vmatmul.mubr.f32.gmra.mrb[0].mxu0 %v890
        %v985 = vpop.f32.mrb[0].mxu0
        %v986 = vadd.f32 %v908, %v985
        %v987 = vpop.f32.mrb[0].mxu0
        %988 = vmatprep.mubr.f32.mxu0 0.0
        %989 = vmatmul.mubr.f32.gmra.mrb[0].mxu0 %v891
        %v990 = vpop.f32.mrb[0].mxu0
        %v991 = vadd.f32 %v908, %v990
        %v992 = vpop.f32.mrb[0].mxu0
        %993 = vmatprep.mubr.f32.mxu0 0.0
        %994 = vmatmul.mubr.f32.gmra.mrb[0].mxu0 %v892
        %v995 = vpop.f32.mrb[0].mxu0
        %v996 = vadd.f32 %v908, %v995
        %v997 = vpop.f32.mrb[0].mxu0
        %998 = vmatprep.mubr.f32.mxu0 0.0
        %999 = vmatmul.mubr.f32.gmra.mrb[0].mxu0 %v893
        %v1000 = vpop.f32.mrb[0].mxu0
        %v1001 = vadd.f32 %v908, %v1000
        %v1002 = vpop.f32.mrb[0].mxu0
        %1003 = vmatprep.mubr.f32.mxu0 0.0
        %1004 = vmatmul.mubr.f32.gmra.mrb[0].mxu0 %v894
        %v1005 = vpop.f32.mrb[0].mxu0
        %v1006 = vadd.f32 %v908, %v1005
        %v1007 = vpop.f32.mrb[0].mxu0
        %1008 = vmatprep.mubr.f32.mxu0 0.0
        %1009 = vmatmul.mubr.f32.gmra.mrb[0].mxu0 %v895
        %v1010 = vpop.f32.mrb[0].mxu0
        %v1011 = vadd.f32 %v908, %v1010
        %v1012 = vpop.f32.mrb[0].mxu0
        %1013 = vmatprep.mubr.f32.mxu0 0.0
        %1014 = vmatmul.mubr.f32.gmra.mrb[0].mxu0 %v896
        %v1015 = vpop.f32.mrb[0].mxu0
        %v1016 = vadd.f32 %v908, %v1015
        %v1017 = vpop.f32.mrb[0].mxu0
        %1018 = vmatprep.mubr.f32.mxu0 0.0
        %1019 = vmatmul.mubr.f32.gmra.mrb[0].mxu0 %v897
        %v1020 = vpop.f32.mrb[0].mxu0
        %v1021 = vadd.f32 %v908, %v1020
        %v1022 = vpop.f32.mrb[0].mxu0
        %1023 = vmatprep.mubr.f32.mxu0 0.0
        %1024 = vmatmul.mubr.f32.gmra.mrb[0].mxu0 %v898
        %v1025 = vpop.f32.mrb[0].mxu0
        %v1026 = vadd.f32 %v908, %v1025
        %v1027 = vpop.f32.mrb[0].mxu0
        %1028 = vmatprep.mubr.f32.mxu0 0.0
        %1029 = vmatmul.mubr.f32.gmra.mrb[0].mxu0 %v899
        %v1030 = vpop.f32.mrb[0].mxu0
        %v1031 = vadd.f32 %v908, %v1030
        %v1032 = vpop.f32.mrb[0].mxu0
        %1033 = vmatprep.mubr.f32.mxu0 0.0
        %1034 = vmatmul.mubr.f32.gmra.mrb[0].mxu0 %v900
        %v1035 = vpop.f32.mrb[0].mxu0
        %v1036 = vadd.f32 %v908, %v1035
        %v1037 = vpop.f32.mrb[0].mxu0
        %1038 = vmatprep.mubr.f32.mxu0 0.0
        %1039 = vmatmul.mubr.f32.gmra.mrb[0].mxu0 %v901
        %v1040 = vpop.f32.mrb[0].mxu0
        %v1041 = vadd.f32 %v908, %v1040
        %v1042 = vpop.f32.mrb[0].mxu0
        %1043 = vmatprep.mubr.f32.mxu0 0.0
        %1044 = vmatmul.mubr.f32.gmra.mrb[0].mxu0 %v902
        %v1045 = vpop.f32.mrb[0].mxu0
        %v1046 = vadd.f32 %v908, %v1045
        %v1047 = vpop.f32.mrb[0].mxu0
        %1048 = vmatprep.mubr.f32.mxu0 0.0
        %1049 = vmatmul.mubr.f32.gmra.mrb[0].mxu0 %v903
        %v1050 = vpop.f32.mrb[0].mxu0
        %v1051 = vadd.f32 %v908, %v1050
        %v1052 = vpop.f32.mrb[0].mxu0
        %1053 = vdwg.mxu0
        %v1054 = vmax.f32 %v976, 0.0
        %v1055 = vmax.f32 %v981, 0.0
        %v1056 = vmax.f32 %v986, 0.0
        %v1057 = vmax.f32 %v991, 0.0
        %v1058 = vmax.f32 %v996, 0.0
        %v1059 = vmax.f32 %v1001, 0.0
        %v1060 = vmax.f32 %v1006, 0.0
        %v1061 = vmax.f32 %v1011, 0.0
        %v1062 = vmax.f32 %v1016, 0.0
        %v1063 = vmax.f32 %v1021, 0.0
        %v1064 = vmax.f32 %v1026, 0.0
        %v1065 = vmax.f32 %v1031, 0.0
        %v1066 = vmax.f32 %v1036, 0.0
        %v1067 = vmax.f32 %v1041, 0.0
        %v1068 = vmax.f32 %v1046, 0.0
        %v1069 = vmax.f32 %v1051, 0.0
        %s1070 = scalar_lea.vmem %s479, 128
        %v1071 = vld [vmem:[%s1070] sm:$0xff]
        %v1072 = vld [vmem:[%s1070 + $0x8] sm:$0xff]
        %v1073 = vld [vmem:[%s1070 + $0x10] sm:$0xff]
        %v1074 = vld [vmem:[%s1070 + $0x18] sm:$0xff]
        %v1075 = vld [vmem:[%s1070 + $0x20] sm:$0xff]
        %v1076 = vld [vmem:[%s1070 + $0x28] sm:$0xff]
        %v1077 = vld [vmem:[%s1070 + $0x30] sm:$0xff]
        %v1078 = vld [vmem:[%s1070 + $0x38] sm:$0xff]
        %v1079 = vld [vmem:[%s1070 + $0x40] sm:$0xff]
        %v1080 = vld [vmem:[%s1070 + $0x48] sm:$0xff]
        %v1081 = vld [vmem:[%s1070 + $0x50] sm:$0xff]
        %v1082 = vld [vmem:[%s1070 + $0x58] sm:$0xff]
        %v1083 = vld [vmem:[%s1070 + $0x60] sm:$0xff]
        %v1084 = vld [vmem:[%s1070 + $0x68] sm:$0xff]
        %v1085 = vld [vmem:[%s1070 + $0x70] sm:$0xff]
        %v1086 = vld [vmem:[%s1070 + $0x78] sm:$0xff]
        %v1087 = vld [vmem:[%s4 + $0x1] sm:$0x1]
        %v1088 = vlaneseq
        %v1089 = vshrl.u32 %v1088, 7
        %v1090 = vsub.s32 0, %v1089
        %v1091 = vrot.slane %v1087, %v1090
        %1092 = vmatprep.subr.mxu0 0.0
        %1093 = vmatpush1.msra.mxu0 %v635
        %1094 = vmatprep.subr.mxu0 0.0
        %1095 = vmatpush1.msra.mxu0 %v641
        %1096 = vmatprep.subr.mxu0 0.0
        %1097 = vmatpush1.msra.mxu0 %v647
        %1098 = vmatprep.subr.mxu0 0.0
        %1099 = vmatpush1.msra.mxu0 %v653
        %1100 = vmatprep.subr.mxu0 0.0
        %1101 = vmatpush1.msra.mxu0 %v659
        %1102 = vmatprep.subr.mxu0 0.0
        %1103 = vmatpush1.msra.mxu0 %v665
        %1104 = vmatprep.subr.mxu0 0.0
        %1105 = vmatpush1.msra.mxu0 %v671
        %1106 = vmatprep.subr.mxu0 0.0
        %1107 = vmatpush1.msra.mxu0 %v677
        %1108 = vmatprep.subr.mxu0 0.0
        %1109 = vmatpush1.msra.mxu0 %v683
        %1110 = vmatprep.subr.mxu0 0.0
        %1111 = vmatpush1.msra.mxu0 %v689
        %1112 = vmatprep.subr.mxu0 0.0
        %1113 = vmatpush1.msra.mxu0 %v695
        %1114 = vmatprep.subr.mxu0 0.0
        %1115 = vmatpush1.msra.mxu0 %v701
        %1116 = vmatprep.subr.mxu0 0.0
        %1117 = vmatpush1.msra.mxu0 %v707
        %1118 = vmatprep.subr.mxu0 0.0
        %1119 = vmatpush1.msra.mxu0 %v713
        %1120 = vmatprep.subr.mxu0 0.0
        %1121 = vmatpush1.msra.mxu0 %v719
        %1122 = vmatprep.subr.mxu0 0.0
        %1123 = vmatpush1.msra.mxu0 %v725
        %1124 = vmatprep.subr.mxu0 0.0
        %1125 = vmatpush1.msra.mxu0 0.0
        %1126 = vmatprep.subr.mxu0 0.0
        %1127 = vmatpush1.msra.mxu0 0.0
        %1128 = vmatprep.subr.mxu0 0.0
        %1129 = vmatpush1.msra.mxu0 0.0
        %1130 = vmatprep.subr.mxu0 0.0
        %1131 = vmatpush1.msra.mxu0 0.0
        %1132 = vmatprep.subr.mxu0 0.0
        %1133 = vmatpush1.msra.mxu0 0.0
        %1134 = vmatprep.subr.mxu0 0.0
        %1135 = vmatpush1.msra.mxu0 0.0
        %1136 = vmatprep.subr.mxu0 0.0
        %1137 = vmatpush1.msra.mxu0 0.0
        %1138 = vmatprep.subr.mxu0 0.0
        %1139 = vmatpush1.msra.mxu0 0.0
        %1140 = vmatprep.subr.mxu0 0.0
        %1141 = vmatpush1.msra.mxu0 0.0
        %1142 = vmatprep.subr.mxu0 0.0
        %1143 = vmatpush1.msra.mxu0 0.0
        %1144 = vmatprep.subr.mxu0 0.0
        %1145 = vmatpush1.msra.mxu0 0.0
        %1146 = vmatprep.subr.mxu0 0.0
        %1147 = vmatpush1.msra.mxu0 0.0
        %1148 = vmatprep.subr.mxu0 0.0
        %1149 = vmatpush1.msra.mxu0 0.0
        %1150 = vmatprep.subr.mxu0 0.0
        %1151 = vmatpush1.msra.mxu0 0.0
        %1152 = vmatprep.subr.mxu0 0.0
        %1153 = vmatpush1.msra.mxu0 0.0
        %1154 = vmatprep.subr.mxu0 0.0
        %1155 = vmatpush1.msra.mxu0 0.0
        %1156 = vmatprep.mubr.f32.mxu0 0.0
        %1157 = vmatmul.mubr.f32.gmra.mrb[0].mxu0 %v1071
        %v1158 = vpop.f32.mrb[0].mxu0
        %v1159 = vadd.f32 %v1091, %v1158
        %v1160 = vpop.f32.mrb[0].mxu0
        %1161 = vmatprep.mubr.f32.mxu0 0.0
        %1162 = vmatmul.mubr.f32.gmra.mrb[0].mxu0 %v1072
        %v1163 = vpop.f32.mrb[0].mxu0
        %v1164 = vadd.f32 %v1091, %v1163
        %v1165 = vpop.f32.mrb[0].mxu0
        %1166 = vmatprep.mubr.f32.mxu0 0.0
        %1167 = vmatmul.mubr.f32.gmra.mrb[0].mxu0 %v1073
        %v1168 = vpop.f32.mrb[0].mxu0
        %v1169 = vadd.f32 %v1091, %v1168
        %v1170 = vpop.f32.mrb[0].mxu0
        %1171 = vmatprep.mubr.f32.mxu0 0.0
        %1172 = vmatmul.mubr.f32.gmra.mrb[0].mxu0 %v1074
        %v1173 = vpop.f32.mrb[0].mxu0
        %v1174 = vadd.f32 %v1091, %v1173
        %v1175 = vpop.f32.mrb[0].mxu0
        %1176 = vmatprep.mubr.f32.mxu0 0.0
        %1177 = vmatmul.mubr.f32.gmra.mrb[0].mxu0 %v1075
        %v1178 = vpop.f32.mrb[0].mxu0
        %v1179 = vadd.f32 %v1091, %v1178
        %v1180 = vpop.f32.mrb[0].mxu0
        %1181 = vmatprep.mubr.f32.mxu0 0.0
        %1182 = vmatmul.mubr.f32.gmra.mrb[0].mxu0 %v1076
        %v1183 = vpop.f32.mrb[0].mxu0
        %v1184 = vadd.f32 %v1091, %v1183
        %v1185 = vpop.f32.mrb[0].mxu0
        %1186 = vmatprep.mubr.f32.mxu0 0.0
        %1187 = vmatmul.mubr.f32.gmra.mrb[0].mxu0 %v1077
        %v1188 = vpop.f32.mrb[0].mxu0
        %v1189 = vadd.f32 %v1091, %v1188
        %v1190 = vpop.f32.mrb[0].mxu0
        %1191 = vmatprep.mubr.f32.mxu0 0.0
        %1192 = vmatmul.mubr.f32.gmra.mrb[0].mxu0 %v1078
        %v1193 = vpop.f32.mrb[0].mxu0
        %v1194 = vadd.f32 %v1091, %v1193
        %v1195 = vpop.f32.mrb[0].mxu0
        %1196 = vmatprep.mubr.f32.mxu0 0.0
        %1197 = vmatmul.mubr.f32.gmra.mrb[0].mxu0 %v1079
        %v1198 = vpop.f32.mrb[0].mxu0
        %v1199 = vadd.f32 %v1091, %v1198
        %v1200 = vpop.f32.mrb[0].mxu0
        %1201 = vmatprep.mubr.f32.mxu0 0.0
        %1202 = vmatmul.mubr.f32.gmra.mrb[0].mxu0 %v1080
        %v1203 = vpop.f32.mrb[0].mxu0
        %v1204 = vadd.f32 %v1091, %v1203
        %v1205 = vpop.f32.mrb[0].mxu0
        %1206 = vmatprep.mubr.f32.mxu0 0.0
        %1207 = vmatmul.mubr.f32.gmra.mrb[0].mxu0 %v1081
        %v1208 = vpop.f32.mrb[0].mxu0
        %v1209 = vadd.f32 %v1091, %v1208
        %v1210 = vpop.f32.mrb[0].mxu0
        %1211 = vmatprep.mubr.f32.mxu0 0.0
        %1212 = vmatmul.mubr.f32.gmra.mrb[0].mxu0 %v1082
        %v1213 = vpop.f32.mrb[0].mxu0
        %v1214 = vadd.f32 %v1091, %v1213
        %v1215 = vpop.f32.mrb[0].mxu0
        %1216 = vmatprep.mubr.f32.mxu0 0.0
        %1217 = vmatmul.mubr.f32.gmra.mrb[0].mxu0 %v1083
        %v1218 = vpop.f32.mrb[0].mxu0
        %v1219 = vadd.f32 %v1091, %v1218
        %v1220 = vpop.f32.mrb[0].mxu0
        %1221 = vmatprep.mubr.f32.mxu0 0.0
        %1222 = vmatmul.mubr.f32.gmra.mrb[0].mxu0 %v1084
        %v1223 = vpop.f32.mrb[0].mxu0
        %v1224 = vadd.f32 %v1091, %v1223
        %v1225 = vpop.f32.mrb[0].mxu0
        %1226 = vmatprep.mubr.f32.mxu0 0.0
        %1227 = vmatmul.mubr.f32.gmra.mrb[0].mxu0 %v1085
        %v1228 = vpop.f32.mrb[0].mxu0
        %v1229 = vadd.f32 %v1091, %v1228
        %v1230 = vpop.f32.mrb[0].mxu0
        %1231 = vmatprep.mubr.f32.mxu0 0.0
        %1232 = vmatmul.mubr.f32.gmra.mrb[0].mxu0 %v1086
        %v1233 = vpop.f32.mrb[0].mxu0
        %v1234 = vadd.f32 %v1091, %v1233
        %v1235 = vpop.f32.mrb[0].mxu0
        %1236 = vdwg.mxu0
        %v1237 = vmax.f32 %v1159, 0.0
        %v1238 = vmax.f32 %v1164, 0.0
        %v1239 = vmax.f32 %v1169, 0.0
        %v1240 = vmax.f32 %v1174, 0.0
        %v1241 = vmax.f32 %v1179, 0.0
        %v1242 = vmax.f32 %v1184, 0.0
        %v1243 = vmax.f32 %v1189, 0.0
        %v1244 = vmax.f32 %v1194, 0.0
        %v1245 = vmax.f32 %v1199, 0.0
        %v1246 = vmax.f32 %v1204, 0.0
        %v1247 = vmax.f32 %v1209, 0.0
        %v1248 = vmax.f32 %v1214, 0.0
        %v1249 = vmax.f32 %v1219, 0.0
        %v1250 = vmax.f32 %v1224, 0.0
        %v1251 = vmax.f32 %v1229, 0.0
        %v1252 = vmax.f32 %v1234, 0.0
        %s1253 = scalar_lea.vmem %s479, 256
        %v1254 = vld [vmem:[%s1253] sm:$0xff]
        %v1255 = vld [vmem:[%s1253 + $0x8] sm:$0xff]
        %v1256 = vld [vmem:[%s1253 + $0x10] sm:$0xff]
        %v1257 = vld [vmem:[%s1253 + $0x18] sm:$0xff]
        %v1258 = vld [vmem:[%s1253 + $0x20] sm:$0xff]
        %v1259 = vld [vmem:[%s1253 + $0x28] sm:$0xff]
        %v1260 = vld [vmem:[%s1253 + $0x30] sm:$0xff]
        %v1261 = vld [vmem:[%s1253 + $0x38] sm:$0xff]
        %v1262 = vld [vmem:[%s1253 + $0x40] sm:$0xff]
        %v1263 = vld [vmem:[%s1253 + $0x48] sm:$0xff]
        %v1264 = vld [vmem:[%s1253 + $0x50] sm:$0xff]
        %v1265 = vld [vmem:[%s1253 + $0x58] sm:$0xff]
        %v1266 = vld [vmem:[%s1253 + $0x60] sm:$0xff]
        %v1267 = vld [vmem:[%s1253 + $0x68] sm:$0xff]
        %v1268 = vld [vmem:[%s1253 + $0x70] sm:$0xff]
        %v1269 = vld [vmem:[%s1253 + $0x78] sm:$0xff]
        %v1270 = vld [vmem:[%s4 + $0x2] sm:$0x1]
        %v1271 = vlaneseq
        %v1272 = vshrl.u32 %v1271, 7
        %v1273 = vsub.s32 0, %v1272
        %v1274 = vrot.slane %v1270, %v1273
        %1275 = vmatprep.subr.mxu0 0.0
        %1276 = vmatpush1.msra.mxu0 %v794
        %1277 = vmatprep.subr.mxu0 0.0
        %1278 = vmatpush1.msra.mxu0 %v800
        %1279 = vmatprep.subr.mxu0 0.0
        %1280 = vmatpush1.msra.mxu0 %v806
        %1281 = vmatprep.subr.mxu0 0.0
        %1282 = vmatpush1.msra.mxu0 %v812
        %1283 = vmatprep.subr.mxu0 0.0
        %1284 = vmatpush1.msra.mxu0 %v818
        %1285 = vmatprep.subr.mxu0 0.0
        %1286 = vmatpush1.msra.mxu0 %v824
        %1287 = vmatprep.subr.mxu0 0.0
        %1288 = vmatpush1.msra.mxu0 %v830
        %1289 = vmatprep.subr.mxu0 0.0
        %1290 = vmatpush1.msra.mxu0 %v836
        %1291 = vmatprep.subr.mxu0 0.0
        %1292 = vmatpush1.msra.mxu0 %v842
        %1293 = vmatprep.subr.mxu0 0.0
        %1294 = vmatpush1.msra.mxu0 %v848
        %1295 = vmatprep.subr.mxu0 0.0
        %1296 = vmatpush1.msra.mxu0 %v854
        %1297 = vmatprep.subr.mxu0 0.0
        %1298 = vmatpush1.msra.mxu0 %v860
        %1299 = vmatprep.subr.mxu0 0.0
        %1300 = vmatpush1.msra.mxu0 %v866
        %1301 = vmatprep.subr.mxu0 0.0
        %1302 = vmatpush1.msra.mxu0 %v872
        %1303 = vmatprep.subr.mxu0 0.0
        %1304 = vmatpush1.msra.mxu0 %v878
        %1305 = vmatprep.subr.mxu0 0.0
        %1306 = vmatpush1.msra.mxu0 %v884
        %1307 = vmatprep.subr.mxu0 0.0
        %1308 = vmatpush1.msra.mxu0 0.0
        %1309 = vmatprep.subr.mxu0 0.0
        %1310 = vmatpush1.msra.mxu0 0.0
        %1311 = vmatprep.subr.mxu0 0.0
        %1312 = vmatpush1.msra.mxu0 0.0
        %1313 = vmatprep.subr.mxu0 0.0
        %1314 = vmatpush1.msra.mxu0 0.0
        %1315 = vmatprep.subr.mxu0 0.0
        %1316 = vmatpush1.msra.mxu0 0.0
        %1317 = vmatprep.subr.mxu0 0.0
        %1318 = vmatpush1.msra.mxu0 0.0
        %1319 = vmatprep.subr.mxu0 0.0
        %1320 = vmatpush1.msra.mxu0 0.0
        %1321 = vmatprep.subr.mxu0 0.0
        %1322 = vmatpush1.msra.mxu0 0.0
        %1323 = vmatprep.subr.mxu0 0.0
        %1324 = vmatpush1.msra.mxu0 0.0
        %1325 = vmatprep.subr.mxu0 0.0
        %1326 = vmatpush1.msra.mxu0 0.0
        %1327 = vmatprep.subr.mxu0 0.0
        %1328 = vmatpush1.msra.mxu0 0.0
        %1329 = vmatprep.subr.mxu0 0.0
        %1330 = vmatpush1.msra.mxu0 0.0
        %1331 = vmatprep.subr.mxu0 0.0
        %1332 = vmatpush1.msra.mxu0 0.0
        %1333 = vmatprep.subr.mxu0 0.0
        %1334 = vmatpush1.msra.mxu0 0.0
        %1335 = vmatprep.subr.mxu0 0.0
        %1336 = vmatpush1.msra.mxu0 0.0
        %1337 = vmatprep.subr.mxu0 0.0
        %1338 = vmatpush1.msra.mxu0 0.0
        %1339 = vmatprep.mubr.f32.mxu0 0.0
        %1340 = vmatmul.mubr.f32.gmra.mrb[0].mxu0 %v1254
        %v1341 = vpop.f32.mrb[0].mxu0
        %v1342 = vadd.f32 %v1274, %v1341
        %v1343 = vpop.f32.mrb[0].mxu0
        %1344 = vmatprep.mubr.f32.mxu0 0.0
        %1345 = vmatmul.mubr.f32.gmra.mrb[0].mxu0 %v1255
        %v1346 = vpop.f32.mrb[0].mxu0
        %v1347 = vadd.f32 %v1274, %v1346
        %v1348 = vpop.f32.mrb[0].mxu0
        %1349 = vmatprep.mubr.f32.mxu0 0.0
        %1350 = vmatmul.mubr.f32.gmra.mrb[0].mxu0 %v1256
        %v1351 = vpop.f32.mrb[0].mxu0
        %v1352 = vadd.f32 %v1274, %v1351
        %v1353 = vpop.f32.mrb[0].mxu0
        %1354 = vmatprep.mubr.f32.mxu0 0.0
        %1355 = vmatmul.mubr.f32.gmra.mrb[0].mxu0 %v1257
        %v1356 = vpop.f32.mrb[0].mxu0
        %v1357 = vadd.f32 %v1274, %v1356
        %v1358 = vpop.f32.mrb[0].mxu0
        %1359 = vmatprep.mubr.f32.mxu0 0.0
        %1360 = vmatmul.mubr.f32.gmra.mrb[0].mxu0 %v1258
        %v1361 = vpop.f32.mrb[0].mxu0
        %v1362 = vadd.f32 %v1274, %v1361
        %v1363 = vpop.f32.mrb[0].mxu0
        %1364 = vmatprep.mubr.f32.mxu0 0.0
        %1365 = vmatmul.mubr.f32.gmra.mrb[0].mxu0 %v1259
        %v1366 = vpop.f32.mrb[0].mxu0
        %v1367 = vadd.f32 %v1274, %v1366
        %v1368 = vpop.f32.mrb[0].mxu0
        %1369 = vmatprep.mubr.f32.mxu0 0.0
        %1370 = vmatmul.mubr.f32.gmra.mrb[0].mxu0 %v1260
        %v1371 = vpop.f32.mrb[0].mxu0
        %v1372 = vadd.f32 %v1274, %v1371
        %v1373 = vpop.f32.mrb[0].mxu0
        %1374 = vmatprep.mubr.f32.mxu0 0.0
        %1375 = vmatmul.mubr.f32.gmra.mrb[0].mxu0 %v1261
        %v1376 = vpop.f32.mrb[0].mxu0
        %v1377 = vadd.f32 %v1274, %v1376
        %v1378 = vpop.f32.mrb[0].mxu0
        %1379 = vmatprep.mubr.f32.mxu0 0.0
        %1380 = vmatmul.mubr.f32.gmra.mrb[0].mxu0 %v1262
        %v1381 = vpop.f32.mrb[0].mxu0
        %v1382 = vadd.f32 %v1274, %v1381
        %v1383 = vpop.f32.mrb[0].mxu0
        %1384 = vmatprep.mubr.f32.mxu0 0.0
        %1385 = vmatmul.mubr.f32.gmra.mrb[0].mxu0 %v1263
        %v1386 = vpop.f32.mrb[0].mxu0
        %v1387 = vadd.f32 %v1274, %v1386
        %v1388 = vpop.f32.mrb[0].mxu0
        %1389 = vmatprep.mubr.f32.mxu0 0.0
        %1390 = vmatmul.mubr.f32.gmra.mrb[0].mxu0 %v1264
        %v1391 = vpop.f32.mrb[0].mxu0
        %v1392 = vadd.f32 %v1274, %v1391
        %v1393 = vpop.f32.mrb[0].mxu0
        %1394 = vmatprep.mubr.f32.mxu0 0.0
        %1395 = vmatmul.mubr.f32.gmra.mrb[0].mxu0 %v1265
        %v1396 = vpop.f32.mrb[0].mxu0
        %v1397 = vadd.f32 %v1274, %v1396
        %v1398 = vpop.f32.mrb[0].mxu0
        %1399 = vmatprep.mubr.f32.mxu0 0.0
        %1400 = vmatmul.mubr.f32.gmra.mrb[0].mxu0 %v1266
        %v1401 = vpop.f32.mrb[0].mxu0
        %v1402 = vadd.f32 %v1274, %v1401
        %v1403 = vpop.f32.mrb[0].mxu0
        %1404 = vmatprep.mubr.f32.mxu0 0.0
        %1405 = vmatmul.mubr.f32.gmra.mrb[0].mxu0 %v1267
        %v1406 = vpop.f32.mrb[0].mxu0
        %v1407 = vadd.f32 %v1274, %v1406
        %v1408 = vpop.f32.mrb[0].mxu0
        %1409 = vmatprep.mubr.f32.mxu0 0.0
        %1410 = vmatmul.mubr.f32.gmra.mrb[0].mxu0 %v1268
        %v1411 = vpop.f32.mrb[0].mxu0
        %v1412 = vadd.f32 %v1274, %v1411
        %v1413 = vpop.f32.mrb[0].mxu0
        %1414 = vmatprep.mubr.f32.mxu0 0.0
        %1415 = vmatmul.mubr.f32.gmra.mrb[0].mxu0 %v1269
        %v1416 = vpop.f32.mrb[0].mxu0
        %v1417 = vadd.f32 %v1274, %v1416
        %v1418 = vpop.f32.mrb[0].mxu0
        %1419 = vdwg.mxu0
        %v1420 = vmax.f32 %v1342, 0.0
        %v1421 = vmax.f32 %v1347, 0.0
        %v1422 = vmax.f32 %v1352, 0.0
        %v1423 = vmax.f32 %v1357, 0.0
        %v1424 = vmax.f32 %v1362, 0.0
        %v1425 = vmax.f32 %v1367, 0.0
        %v1426 = vmax.f32 %v1372, 0.0
        %v1427 = vmax.f32 %v1377, 0.0
        %v1428 = vmax.f32 %v1382, 0.0
        %v1429 = vmax.f32 %v1387, 0.0
        %v1430 = vmax.f32 %v1392, 0.0
        %v1431 = vmax.f32 %v1397, 0.0
        %v1432 = vmax.f32 %v1402, 0.0
        %v1433 = vmax.f32 %v1407, 0.0
        %v1434 = vmax.f32 %v1412, 0.0
        %v1435 = vmax.f32 %v1417, 0.0
        %s1436 = scalar_lea.vmem %s479, 384
        %v1437 = vld [vmem:[%s1436] sm:$0xff]
        %v1438 = vld [vmem:[%s1436 + $0x8] sm:$0xff]
        %v1439 = vld [vmem:[%s1436 + $0x10] sm:$0xff]
        %v1440 = vld [vmem:[%s1436 + $0x18] sm:$0xff]
        %v1441 = vld [vmem:[%s1436 + $0x20] sm:$0xff]
        %v1442 = vld [vmem:[%s1436 + $0x28] sm:$0xff]
        %v1443 = vld [vmem:[%s1436 + $0x30] sm:$0xff]
        %v1444 = vld [vmem:[%s1436 + $0x38] sm:$0xff]
        %v1445 = vld [vmem:[%s1436 + $0x40] sm:$0xff]
        %v1446 = vld [vmem:[%s1436 + $0x48] sm:$0xff]
        %v1447 = vld [vmem:[%s1436 + $0x50] sm:$0xff]
        %v1448 = vld [vmem:[%s1436 + $0x58] sm:$0xff]
        %v1449 = vld [vmem:[%s1436 + $0x60] sm:$0xff]
        %v1450 = vld [vmem:[%s1436 + $0x68] sm:$0xff]
        %v1451 = vld [vmem:[%s1436 + $0x70] sm:$0xff]
        %v1452 = vld [vmem:[%s1436 + $0x78] sm:$0xff]
        %v1453 = vld [vmem:[%s4 + $0x3] sm:$0x1]
        %v1454 = vlaneseq
        %v1455 = vshrl.u32 %v1454, 7
        %v1456 = vsub.s32 0, %v1455
        %v1457 = vrot.slane %v1453, %v1456
        %1458 = vmatprep.subr.mxu0 0.0
        %1459 = vmatpush1.msra.mxu0 %v796
        %1460 = vmatprep.subr.mxu0 0.0
        %1461 = vmatpush1.msra.mxu0 %v802
        %1462 = vmatprep.subr.mxu0 0.0
        %1463 = vmatpush1.msra.mxu0 %v808
        %1464 = vmatprep.subr.mxu0 0.0
        %1465 = vmatpush1.msra.mxu0 %v814
        %1466 = vmatprep.subr.mxu0 0.0
        %1467 = vmatpush1.msra.mxu0 %v820
        %1468 = vmatprep.subr.mxu0 0.0
        %1469 = vmatpush1.msra.mxu0 %v826
        %1470 = vmatprep.subr.mxu0 0.0
        %1471 = vmatpush1.msra.mxu0 %v832
        %1472 = vmatprep.subr.mxu0 0.0
        %1473 = vmatpush1.msra.mxu0 %v838
        %1474 = vmatprep.subr.mxu0 0.0
        %1475 = vmatpush1.msra.mxu0 %v844
        %1476 = vmatprep.subr.mxu0 0.0
        %1477 = vmatpush1.msra.mxu0 %v850
        %1478 = vmatprep.subr.mxu0 0.0
        %1479 = vmatpush1.msra.mxu0 %v856
        %1480 = vmatprep.subr.mxu0 0.0
        %1481 = vmatpush1.msra.mxu0 %v862
        %1482 = vmatprep.subr.mxu0 0.0
        %1483 = vmatpush1.msra.mxu0 %v868
        %1484 = vmatprep.subr.mxu0 0.0
        %1485 = vmatpush1.msra.mxu0 %v874
        %1486 = vmatprep.subr.mxu0 0.0
        %1487 = vmatpush1.msra.mxu0 %v880
        %1488 = vmatprep.subr.mxu0 0.0
        %1489 = vmatpush1.msra.mxu0 %v886
        %1490 = vmatprep.subr.mxu0 0.0
        %1491 = vmatpush1.msra.mxu0 0.0
        %1492 = vmatprep.subr.mxu0 0.0
        %1493 = vmatpush1.msra.mxu0 0.0
        %1494 = vmatprep.subr.mxu0 0.0
        %1495 = vmatpush1.msra.mxu0 0.0
        %1496 = vmatprep.subr.mxu0 0.0
        %1497 = vmatpush1.msra.mxu0 0.0
        %1498 = vmatprep.subr.mxu0 0.0
        %1499 = vmatpush1.msra.mxu0 0.0
        %1500 = vmatprep.subr.mxu0 0.0
        %1501 = vmatpush1.msra.mxu0 0.0
        %1502 = vmatprep.subr.mxu0 0.0
        %1503 = vmatpush1.msra.mxu0 0.0
        %1504 = vmatprep.subr.mxu0 0.0
        %1505 = vmatpush1.msra.mxu0 0.0
        %1506 = vmatprep.subr.mxu0 0.0
        %1507 = vmatpush1.msra.mxu0 0.0
        %1508 = vmatprep.subr.mxu0 0.0
        %1509 = vmatpush1.msra.mxu0 0.0
        %1510 = vmatprep.subr.mxu0 0.0
        %1511 = vmatpush1.msra.mxu0 0.0
        %1512 = vmatprep.subr.mxu0 0.0
        %1513 = vmatpush1.msra.mxu0 0.0
        %1514 = vmatprep.subr.mxu0 0.0
        %1515 = vmatpush1.msra.mxu0 0.0
        %1516 = vmatprep.subr.mxu0 0.0
        %1517 = vmatpush1.msra.mxu0 0.0
        %1518 = vmatprep.subr.mxu0 0.0
        %1519 = vmatpush1.msra.mxu0 0.0
        %1520 = vmatprep.subr.mxu0 0.0
        %1521 = vmatpush1.msra.mxu0 0.0
        %1522 = vmatprep.mubr.f32.mxu0 0.0
        %1523 = vmatmul.mubr.f32.gmra.mrb[0].mxu0 %v1437
        %v1524 = vpop.f32.mrb[0].mxu0
        %v1525 = vadd.f32 %v1457, %v1524
        %v1526 = vpop.f32.mrb[0].mxu0
        %1527 = vmatprep.mubr.f32.mxu0 0.0
        %1528 = vmatmul.mubr.f32.gmra.mrb[0].mxu0 %v1438
        %v1529 = vpop.f32.mrb[0].mxu0
        %v1530 = vadd.f32 %v1457, %v1529
        %v1531 = vpop.f32.mrb[0].mxu0
        %1532 = vmatprep.mubr.f32.mxu0 0.0
        %1533 = vmatmul.mubr.f32.gmra.mrb[0].mxu0 %v1439
        %v1534 = vpop.f32.mrb[0].mxu0
        %v1535 = vadd.f32 %v1457, %v1534
        %v1536 = vpop.f32.mrb[0].mxu0
        %1537 = vmatprep.mubr.f32.mxu0 0.0
        %1538 = vmatmul.mubr.f32.gmra.mrb[0].mxu0 %v1440
        %v1539 = vpop.f32.mrb[0].mxu0
        %v1540 = vadd.f32 %v1457, %v1539
        %v1541 = vpop.f32.mrb[0].mxu0
        %1542 = vmatprep.mubr.f32.mxu0 0.0
        %1543 = vmatmul.mubr.f32.gmra.mrb[0].mxu0 %v1441
        %v1544 = vpop.f32.mrb[0].mxu0
        %v1545 = vadd.f32 %v1457, %v1544
        %v1546 = vpop.f32.mrb[0].mxu0
        %1547 = vmatprep.mubr.f32.mxu0 0.0
        %1548 = vmatmul.mubr.f32.gmra.mrb[0].mxu0 %v1442
        %v1549 = vpop.f32.mrb[0].mxu0
        %v1550 = vadd.f32 %v1457, %v1549
        %v1551 = vpop.f32.mrb[0].mxu0
        %1552 = vmatprep.mubr.f32.mxu0 0.0
        %1553 = vmatmul.mubr.f32.gmra.mrb[0].mxu0 %v1443
        %v1554 = vpop.f32.mrb[0].mxu0
        %v1555 = vadd.f32 %v1457, %v1554
        %v1556 = vpop.f32.mrb[0].mxu0
        %1557 = vmatprep.mubr.f32.mxu0 0.0
        %1558 = vmatmul.mubr.f32.gmra.mrb[0].mxu0 %v1444
        %v1559 = vpop.f32.mrb[0].mxu0
        %v1560 = vadd.f32 %v1457, %v1559
        %v1561 = vpop.f32.mrb[0].mxu0
        %1562 = vmatprep.mubr.f32.mxu0 0.0
        %1563 = vmatmul.mubr.f32.gmra.mrb[0].mxu0 %v1445
        %v1564 = vpop.f32.mrb[0].mxu0
        %v1565 = vadd.f32 %v1457, %v1564
        %v1566 = vpop.f32.mrb[0].mxu0
        %1567 = vmatprep.mubr.f32.mxu0 0.0
        %1568 = vmatmul.mubr.f32.gmra.mrb[0].mxu0 %v1446
        %v1569 = vpop.f32.mrb[0].mxu0
        %v1570 = vadd.f32 %v1457, %v1569
        %v1571 = vpop.f32.mrb[0].mxu0
        %1572 = vmatprep.mubr.f32.mxu0 0.0
        %1573 = vmatmul.mubr.f32.gmra.mrb[0].mxu0 %v1447
        %v1574 = vpop.f32.mrb[0].mxu0
        %v1575 = vadd.f32 %v1457, %v1574
        %v1576 = vpop.f32.mrb[0].mxu0
        %1577 = vmatprep.mubr.f32.mxu0 0.0
        %1578 = vmatmul.mubr.f32.gmra.mrb[0].mxu0 %v1448
        %v1579 = vpop.f32.mrb[0].mxu0
        %v1580 = vadd.f32 %v1457, %v1579
        %v1581 = vpop.f32.mrb[0].mxu0
        %1582 = vmatprep.mubr.f32.mxu0 0.0
        %1583 = vmatmul.mubr.f32.gmra.mrb[0].mxu0 %v1449
        %v1584 = vpop.f32.mrb[0].mxu0
        %v1585 = vadd.f32 %v1457, %v1584
        %v1586 = vpop.f32.mrb[0].mxu0
        %1587 = vmatprep.mubr.f32.mxu0 0.0
        %1588 = vmatmul.mubr.f32.gmra.mrb[0].mxu0 %v1450
        %v1589 = vpop.f32.mrb[0].mxu0
        %v1590 = vadd.f32 %v1457, %v1589
        %v1591 = vpop.f32.mrb[0].mxu0
        %1592 = vmatprep.mubr.f32.mxu0 0.0
        %1593 = vmatmul.mubr.f32.gmra.mrb[0].mxu0 %v1451
        %v1594 = vpop.f32.mrb[0].mxu0
        %v1595 = vadd.f32 %v1457, %v1594
        %v1596 = vpop.f32.mrb[0].mxu0
        %1597 = vmatprep.mubr.f32.mxu0 0.0
        %1598 = vmatmul.mubr.f32.gmra.mrb[0].mxu0 %v1452
        %v1599 = vpop.f32.mrb[0].mxu0
        %v1600 = vadd.f32 %v1457, %v1599
        %v1601 = vpop.f32.mrb[0].mxu0
        %1602 = vdwg.mxu0
        %v1603 = vmax.f32 %v1525, 0.0
        %v1604 = vmax.f32 %v1530, 0.0
        %v1605 = vmax.f32 %v1535, 0.0
        %v1606 = vmax.f32 %v1540, 0.0
        %v1607 = vmax.f32 %v1545, 0.0
        %v1608 = vmax.f32 %v1550, 0.0
        %v1609 = vmax.f32 %v1555, 0.0
        %v1610 = vmax.f32 %v1560, 0.0
        %v1611 = vmax.f32 %v1565, 0.0
        %v1612 = vmax.f32 %v1570, 0.0
        %v1613 = vmax.f32 %v1575, 0.0
        %v1614 = vmax.f32 %v1580, 0.0
        %v1615 = vmax.f32 %v1585, 0.0
        %v1616 = vmax.f32 %v1590, 0.0
        %v1617 = vmax.f32 %v1595, 0.0
        %v1618 = vmax.f32 %v1600, 0.0
        %s1619 = scalar_lea.vmem %s479, 512
        %v1620 = vld [vmem:[%s1619] sm:$0xff]
        %v1621 = vld [vmem:[%s1619 + $0x8] sm:$0xff]
        %v1622 = vld [vmem:[%s1619 + $0x10] sm:$0xff]
        %v1623 = vld [vmem:[%s1619 + $0x18] sm:$0xff]
        %v1624 = vld [vmem:[%s1619 + $0x20] sm:$0xff]
        %v1625 = vld [vmem:[%s1619 + $0x28] sm:$0xff]
        %v1626 = vld [vmem:[%s1619 + $0x30] sm:$0xff]
        %v1627 = vld [vmem:[%s1619 + $0x38] sm:$0xff]
        %v1628 = vld [vmem:[%s1619 + $0x40] sm:$0xff]
        %v1629 = vld [vmem:[%s1619 + $0x48] sm:$0xff]
        %v1630 = vld [vmem:[%s1619 + $0x50] sm:$0xff]
        %v1631 = vld [vmem:[%s1619 + $0x58] sm:$0xff]
        %v1632 = vld [vmem:[%s1619 + $0x60] sm:$0xff]
        %v1633 = vld [vmem:[%s1619 + $0x68] sm:$0xff]
        %v1634 = vld [vmem:[%s1619 + $0x70] sm:$0xff]
        %v1635 = vld [vmem:[%s1619 + $0x78] sm:$0xff]
        %1636 = vmatprep.subr.mxu0 0.0
        %1637 = vmatpush1.msra.mxu0 %v796
        %1638 = vmatprep.subr.mxu0 0.0
        %1639 = vmatpush1.msra.mxu0 %v802
        %1640 = vmatprep.subr.mxu0 0.0
        %1641 = vmatpush1.msra.mxu0 %v808
        %1642 = vmatprep.subr.mxu0 0.0
        %1643 = vmatpush1.msra.mxu0 %v814
        %1644 = vmatprep.subr.mxu0 0.0
        %1645 = vmatpush1.msra.mxu0 %v820
        %1646 = vmatprep.subr.mxu0 0.0
        %1647 = vmatpush1.msra.mxu0 %v826
        %1648 = vmatprep.subr.mxu0 0.0
        %1649 = vmatpush1.msra.mxu0 %v832
        %1650 = vmatprep.subr.mxu0 0.0
        %1651 = vmatpush1.msra.mxu0 %v838
        %1652 = vmatprep.subr.mxu0 0.0
        %1653 = vmatpush1.msra.mxu0 %v844
        %1654 = vmatprep.subr.mxu0 0.0
        %1655 = vmatpush1.msra.mxu0 %v850
        %1656 = vmatprep.subr.mxu0 0.0
        %1657 = vmatpush1.msra.mxu0 %v856
        %1658 = vmatprep.subr.mxu0 0.0
        %1659 = vmatpush1.msra.mxu0 %v862
        %1660 = vmatprep.subr.mxu0 0.0
        %1661 = vmatpush1.msra.mxu0 %v868
        %1662 = vmatprep.subr.mxu0 0.0
        %1663 = vmatpush1.msra.mxu0 %v874
        %1664 = vmatprep.subr.mxu0 0.0
        %1665 = vmatpush1.msra.mxu0 %v880
        %1666 = vmatprep.subr.mxu0 0.0
        %1667 = vmatpush1.msra.mxu0 %v886
        %1668 = vmatprep.subr.mxu0 0.0
        %1669 = vmatpush1.msra.mxu0 0.0
        %1670 = vmatprep.subr.mxu0 0.0
        %1671 = vmatpush1.msra.mxu0 0.0
        %1672 = vmatprep.subr.mxu0 0.0
        %1673 = vmatpush1.msra.mxu0 0.0
        %1674 = vmatprep.subr.mxu0 0.0
        %1675 = vmatpush1.msra.mxu0 0.0
        %1676 = vmatprep.subr.mxu0 0.0
        %1677 = vmatpush1.msra.mxu0 0.0
        %1678 = vmatprep.subr.mxu0 0.0
        %1679 = vmatpush1.msra.mxu0 0.0
        %1680 = vmatprep.subr.mxu0 0.0
        %1681 = vmatpush1.msra.mxu0 0.0
        %1682 = vmatprep.subr.mxu0 0.0
        %1683 = vmatpush1.msra.mxu0 0.0
        %1684 = vmatprep.subr.mxu0 0.0
        %1685 = vmatpush1.msra.mxu0 0.0
        %1686 = vmatprep.subr.mxu0 0.0
        %1687 = vmatpush1.msra.mxu0 0.0
        %1688 = vmatprep.subr.mxu0 0.0
        %1689 = vmatpush1.msra.mxu0 0.0
        %1690 = vmatprep.subr.mxu0 0.0
        %1691 = vmatpush1.msra.mxu0 0.0
        %1692 = vmatprep.subr.mxu0 0.0
        %1693 = vmatpush1.msra.mxu0 0.0
        %1694 = vmatprep.subr.mxu0 0.0
        %1695 = vmatpush1.msra.mxu0 0.0
        %1696 = vmatprep.subr.mxu0 0.0
        %1697 = vmatpush1.msra.mxu0 0.0
        %1698 = vmatprep.subr.mxu0 0.0
        %1699 = vmatpush1.msra.mxu0 0.0
        %1700 = vmatprep.mubr.f32.mxu0 0.0
        %1701 = vmatmul.mubr.f32.gmra.mrb[0].mxu0 %v1620
        %v1702 = vpop.f32.mrb[0].mxu0
        %v1703 = vadd.f32 %v1457, %v1702
        %v1704 = vpop.f32.mrb[0].mxu0
        %1705 = vmatprep.mubr.f32.mxu0 0.0
        %1706 = vmatmul.mubr.f32.gmra.mrb[0].mxu0 %v1621
        %v1707 = vpop.f32.mrb[0].mxu0
        %v1708 = vadd.f32 %v1457, %v1707
        %v1709 = vpop.f32.mrb[0].mxu0
        %1710 = vmatprep.mubr.f32.mxu0 0.0
        %1711 = vmatmul.mubr.f32.gmra.mrb[0].mxu0 %v1622
        %v1712 = vpop.f32.mrb[0].mxu0
        %v1713 = vadd.f32 %v1457, %v1712
        %v1714 = vpop.f32.mrb[0].mxu0
        %1715 = vmatprep.mubr.f32.mxu0 0.0
        %1716 = vmatmul.mubr.f32.gmra.mrb[0].mxu0 %v1623
        %v1717 = vpop.f32.mrb[0].mxu0
        %v1718 = vadd.f32 %v1457, %v1717
        %v1719 = vpop.f32.mrb[0].mxu0
        %1720 = vmatprep.mubr.f32.mxu0 0.0
        %1721 = vmatmul.mubr.f32.gmra.mrb[0].mxu0 %v1624
        %v1722 = vpop.f32.mrb[0].mxu0
        %v1723 = vadd.f32 %v1457, %v1722
        %v1724 = vpop.f32.mrb[0].mxu0
        %1725 = vmatprep.mubr.f32.mxu0 0.0
        %1726 = vmatmul.mubr.f32.gmra.mrb[0].mxu0 %v1625
        %v1727 = vpop.f32.mrb[0].mxu0
        %v1728 = vadd.f32 %v1457, %v1727
        %v1729 = vpop.f32.mrb[0].mxu0
        %1730 = vmatprep.mubr.f32.mxu0 0.0
        %1731 = vmatmul.mubr.f32.gmra.mrb[0].mxu0 %v1626
        %v1732 = vpop.f32.mrb[0].mxu0
        %v1733 = vadd.f32 %v1457, %v1732
        %v1734 = vpop.f32.mrb[0].mxu0
        %1735 = vmatprep.mubr.f32.mxu0 0.0
        %1736 = vmatmul.mubr.f32.gmra.mrb[0].mxu0 %v1627
        %v1737 = vpop.f32.mrb[0].mxu0
        %v1738 = vadd.f32 %v1457, %v1737
        %v1739 = vpop.f32.mrb[0].mxu0
        %1740 = vmatprep.mubr.f32.mxu0 0.0
        %1741 = vmatmul.mubr.f32.gmra.mrb[0].mxu0 %v1628
        %v1742 = vpop.f32.mrb[0].mxu0
        %v1743 = vadd.f32 %v1457, %v1742
        %v1744 = vpop.f32.mrb[0].mxu0
        %1745 = vmatprep.mubr.f32.mxu0 0.0
        %1746 = vmatmul.mubr.f32.gmra.mrb[0].mxu0 %v1629
        %v1747 = vpop.f32.mrb[0].mxu0
        %v1748 = vadd.f32 %v1457, %v1747
        %v1749 = vpop.f32.mrb[0].mxu0
        %1750 = vmatprep.mubr.f32.mxu0 0.0
        %1751 = vmatmul.mubr.f32.gmra.mrb[0].mxu0 %v1630
        %v1752 = vpop.f32.mrb[0].mxu0
        %v1753 = vadd.f32 %v1457, %v1752
        %v1754 = vpop.f32.mrb[0].mxu0
        %1755 = vmatprep.mubr.f32.mxu0 0.0
        %1756 = vmatmul.mubr.f32.gmra.mrb[0].mxu0 %v1631
        %v1757 = vpop.f32.mrb[0].mxu0
        %v1758 = vadd.f32 %v1457, %v1757
        %v1759 = vpop.f32.mrb[0].mxu0
        %1760 = vmatprep.mubr.f32.mxu0 0.0
        %1761 = vmatmul.mubr.f32.gmra.mrb[0].mxu0 %v1632
        %v1762 = vpop.f32.mrb[0].mxu0
        %v1763 = vadd.f32 %v1457, %v1762
        %v1764 = vpop.f32.mrb[0].mxu0
        %1765 = vmatprep.mubr.f32.mxu0 0.0
        %1766 = vmatmul.mubr.f32.gmra.mrb[0].mxu0 %v1633
        %v1767 = vpop.f32.mrb[0].mxu0
        %v1768 = vadd.f32 %v1457, %v1767
        %v1769 = vpop.f32.mrb[0].mxu0
        %1770 = vmatprep.mubr.f32.mxu0 0.0
        %1771 = vmatmul.mubr.f32.gmra.mrb[0].mxu0 %v1634
        %v1772 = vpop.f32.mrb[0].mxu0
        %v1773 = vadd.f32 %v1457, %v1772
        %v1774 = vpop.f32.mrb[0].mxu0
        %1775 = vmatprep.mubr.f32.mxu0 0.0
        %1776 = vmatmul.mubr.f32.gmra.mrb[0].mxu0 %v1635
        %v1777 = vpop.f32.mrb[0].mxu0
        %v1778 = vadd.f32 %v1457, %v1777
        %v1779 = vpop.f32.mrb[0].mxu0
        %1780 = vdwg.mxu0
        %v1781 = vld [vmem:[%s5] sm:$0xff]
        %v1782 = vld [vmem:[%s5 + $0x8] sm:$0xff]
        %v1783 = vld [vmem:[%s5 + $0x10] sm:$0xff]
        %v1784 = vld [vmem:[%s5 + $0x18] sm:$0xff]
        %v1785 = vld [vmem:[%s5 + $0x20] sm:$0xff]
        %v1786 = vld [vmem:[%s5 + $0x28] sm:$0xff]
        %v1787 = vld [vmem:[%s5 + $0x30] sm:$0xff]
        %v1788 = vld [vmem:[%s5 + $0x38] sm:$0xff]
        %v1789 = vld [vmem:[%s5 + $0x40] sm:$0xff]
        %v1790 = vld [vmem:[%s5 + $0x48] sm:$0xff]
        %v1791 = vld [vmem:[%s5 + $0x50] sm:$0xff]
        %v1792 = vld [vmem:[%s5 + $0x58] sm:$0xff]
        %v1793 = vld [vmem:[%s5 + $0x60] sm:$0xff]
        %v1794 = vld [vmem:[%s5 + $0x68] sm:$0xff]
        %v1795 = vld [vmem:[%s5 + $0x70] sm:$0xff]
        %v1796 = vld [vmem:[%s5 + $0x78] sm:$0xff]
        %v1797 = vld [vmem:[%s5 + $0x80] sm:$0xff]
        %v1798 = vld [vmem:[%s5 + $0x88] sm:$0xff]
        %v1799 = vld [vmem:[%s5 + $0x90] sm:$0xff]
        %v1800 = vld [vmem:[%s5 + $0x98] sm:$0xff]
        %v1801 = vld [vmem:[%s5 + $0xa0] sm:$0xff]
        %v1802 = vld [vmem:[%s5 + $0xa8] sm:$0xff]
        %v1803 = vld [vmem:[%s5 + $0xb0] sm:$0xff]
        %v1804 = vld [vmem:[%s5 + $0xb8] sm:$0xff]
        %v1805 = vld [vmem:[%s5 + $0xc0] sm:$0xff]
        %v1806 = vld [vmem:[%s5 + $0xc8] sm:$0xff]
        %v1807 = vld [vmem:[%s5 + $0xd0] sm:$0xff]
        %v1808 = vld [vmem:[%s5 + $0xd8] sm:$0xff]
        %v1809 = vld [vmem:[%s5 + $0xe0] sm:$0xff]
        %v1810 = vld [vmem:[%s5 + $0xe8] sm:$0xff]
        %v1811 = vld [vmem:[%s5 + $0xf0] sm:$0xff]
        %v1812 = vld [vmem:[%s5 + $0xf8] sm:$0xff]
        %v1813 = vld [vmem:[%s5 + $0x100] sm:$0xff]
        %v1814 = vld [vmem:[%s5 + $0x108] sm:$0xff]
        %v1815 = vld [vmem:[%s5 + $0x110] sm:$0xff]
        %v1816 = vld [vmem:[%s5 + $0x118] sm:$0xff]
        %v1817 = vld [vmem:[%s5 + $0x120] sm:$0xff]
        %v1818 = vld [vmem:[%s5 + $0x128] sm:$0xff]
        %v1819 = vld [vmem:[%s5 + $0x130] sm:$0xff]
        %v1820 = vld [vmem:[%s5 + $0x138] sm:$0xff]
        %v1821 = vld [vmem:[%s5 + $0x140] sm:$0xff]
        %v1822 = vld [vmem:[%s5 + $0x148] sm:$0xff]
        %v1823 = vld [vmem:[%s5 + $0x150] sm:$0xff]
        %v1824 = vld [vmem:[%s5 + $0x158] sm:$0xff]
        %v1825 = vld [vmem:[%s5 + $0x160] sm:$0xff]
        %v1826 = vld [vmem:[%s5 + $0x168] sm:$0xff]
        %v1827 = vld [vmem:[%s5 + $0x170] sm:$0xff]
        %v1828 = vld [vmem:[%s5 + $0x178] sm:$0xff]
        %v1829 = vld [vmem:[%s5 + $0x180] sm:$0xff]
        %v1830 = vld [vmem:[%s5 + $0x188] sm:$0xff]
        %v1831 = vld [vmem:[%s5 + $0x190] sm:$0xff]
        %v1832 = vld [vmem:[%s5 + $0x198] sm:$0xff]
        %v1833 = vld [vmem:[%s5 + $0x1a0] sm:$0xff]
        %v1834 = vld [vmem:[%s5 + $0x1a8] sm:$0xff]
        %v1835 = vld [vmem:[%s5 + $0x1b0] sm:$0xff]
        %v1836 = vld [vmem:[%s5 + $0x1b8] sm:$0xff]
        %v1837 = vld [vmem:[%s5 + $0x1c0] sm:$0xff]
        %v1838 = vld [vmem:[%s5 + $0x1c8] sm:$0xff]
        %v1839 = vld [vmem:[%s5 + $0x1d0] sm:$0xff]
        %v1840 = vld [vmem:[%s5 + $0x1d8] sm:$0xff]
        %v1841 = vld [vmem:[%s5 + $0x1e0] sm:$0xff]
        %v1842 = vld [vmem:[%s5 + $0x1e8] sm:$0xff]
        %v1843 = vld [vmem:[%s5 + $0x1f0] sm:$0xff]
        %v1844 = vld [vmem:[%s5 + $0x1f8] sm:$0xff]
        %v1845 = vld [vmem:[%s5 + $0x200] sm:$0xff]
        %v1846 = vld [vmem:[%s5 + $0x208] sm:$0xff]
        %v1847 = vld [vmem:[%s5 + $0x210] sm:$0xff]
        %v1848 = vld [vmem:[%s5 + $0x218] sm:$0xff]
        %v1849 = vld [vmem:[%s5 + $0x220] sm:$0xff]
        %v1850 = vld [vmem:[%s5 + $0x228] sm:$0xff]
        %v1851 = vld [vmem:[%s5 + $0x230] sm:$0xff]
        %v1852 = vld [vmem:[%s5 + $0x238] sm:$0xff]
        %v1853 = vld [vmem:[%s5 + $0x240] sm:$0xff]
        %v1854 = vld [vmem:[%s5 + $0x248] sm:$0xff]
        %v1855 = vld [vmem:[%s5 + $0x250] sm:$0xff]
        %v1856 = vld [vmem:[%s5 + $0x258] sm:$0xff]
        %v1857 = vld [vmem:[%s5 + $0x260] sm:$0xff]
        %v1858 = vld [vmem:[%s5 + $0x268] sm:$0xff]
        %v1859 = vld [vmem:[%s5 + $0x270] sm:$0xff]
        %v1860 = vld [vmem:[%s5 + $0x278] sm:$0xff]
        %1861 = vmatprep.subr.mxu0 0.0
        %1862 = vmatpush1.msra.mxu0 %v1781
        %1863 = vmatprep.subr.mxu0 0.0
        %1864 = vmatpush1.msra.mxu0 %v1782
        %1865 = vmatprep.subr.mxu0 0.0
        %1866 = vmatpush1.msra.mxu0 %v1783
        %1867 = vmatprep.subr.mxu0 0.0
        %1868 = vmatpush1.msra.mxu0 %v1784
        %1869 = vmatprep.subr.mxu0 0.0
        %1870 = vmatpush1.msra.mxu0 %v1785
        %1871 = vmatprep.subr.mxu0 0.0
        %1872 = vmatpush1.msra.mxu0 %v1786
        %1873 = vmatprep.subr.mxu0 0.0
        %1874 = vmatpush1.msra.mxu0 %v1787
        %1875 = vmatprep.subr.mxu0 0.0
        %1876 = vmatpush1.msra.mxu0 %v1788
        %1877 = vmatprep.subr.mxu0 0.0
        %1878 = vmatpush1.msra.mxu0 %v1789
        %1879 = vmatprep.subr.mxu0 0.0
        %1880 = vmatpush1.msra.mxu0 %v1790
        %1881 = vmatprep.subr.mxu0 0.0
        %1882 = vmatpush1.msra.mxu0 %v1791
        %1883 = vmatprep.subr.mxu0 0.0
        %1884 = vmatpush1.msra.mxu0 %v1792
        %1885 = vmatprep.subr.mxu0 0.0
        %1886 = vmatpush1.msra.mxu0 %v1793
        %1887 = vmatprep.subr.mxu0 0.0
        %1888 = vmatpush1.msra.mxu0 %v1794
        %1889 = vmatprep.subr.mxu0 0.0
        %1890 = vmatpush1.msra.mxu0 %v1795
        %1891 = vmatprep.subr.mxu0 0.0
        %1892 = vmatpush1.msra.mxu0 %v1796
        %1893 = vmatprep.subr.mxu0 0.0
        %1894 = vmatpush1.msra.mxu0 %v1797
        %1895 = vmatprep.subr.mxu0 0.0
        %1896 = vmatpush1.msra.mxu0 %v1798
        %1897 = vmatprep.subr.mxu0 0.0
        %1898 = vmatpush1.msra.mxu0 %v1799
        %1899 = vmatprep.subr.mxu0 0.0
        %1900 = vmatpush1.msra.mxu0 %v1800
        %1901 = vmatprep.subr.mxu0 0.0
        %1902 = vmatpush1.msra.mxu0 %v1801
        %1903 = vmatprep.subr.mxu0 0.0
        %1904 = vmatpush1.msra.mxu0 %v1802
        %1905 = vmatprep.subr.mxu0 0.0
        %1906 = vmatpush1.msra.mxu0 %v1803
        %1907 = vmatprep.subr.mxu0 0.0
        %1908 = vmatpush1.msra.mxu0 %v1804
        %1909 = vmatprep.subr.mxu0 0.0
        %1910 = vmatpush1.msra.mxu0 %v1805
        %1911 = vmatprep.subr.mxu0 0.0
        %1912 = vmatpush1.msra.mxu0 %v1806
        %1913 = vmatprep.subr.mxu0 0.0
        %1914 = vmatpush1.msra.mxu0 %v1807
        %1915 = vmatprep.subr.mxu0 0.0
        %1916 = vmatpush1.msra.mxu0 %v1808
        %1917 = vmatprep.subr.mxu0 0.0
        %1918 = vmatpush1.msra.mxu0 %v1809
        %1919 = vmatprep.subr.mxu0 0.0
        %1920 = vmatpush1.msra.mxu0 %v1810
        %1921 = vmatprep.subr.mxu0 0.0
        %1922 = vmatpush1.msra.mxu0 %v1811
        %1923 = vmatprep.subr.mxu0 0.0
        %1924 = vmatpush1.msra.mxu0 %v1812
        %1925 = vmatprep.mubr.f32.mxu0 %v1237
        %1926 = vmatmul.mubr.f32.gmra.mrb[0].mxu0 %v1054
        %v1927 = vpop.f32.mrb[0].mxu0
        %v1928 = vadd.f32 0.0, %v1927
        %v1929 = vpop.f32.mrb[0].mxu0
        %1930 = vmatprep.mubr.f32.mxu0 %v1238
        %1931 = vmatmul.mubr.f32.gmra.mrb[0].mxu0 %v1055
        %v1932 = vpop.f32.mrb[0].mxu0
        %v1933 = vadd.f32 0.0, %v1932
        %v1934 = vpop.f32.mrb[0].mxu0
        %1935 = vmatprep.mubr.f32.mxu0 %v1239
        %1936 = vmatmul.mubr.f32.gmra.mrb[0].mxu0 %v1056
        %v1937 = vpop.f32.mrb[0].mxu0
        %v1938 = vadd.f32 0.0, %v1937
        %v1939 = vpop.f32.mrb[0].mxu0
        %1940 = vmatprep.mubr.f32.mxu0 %v1240
        %1941 = vmatmul.mubr.f32.gmra.mrb[0].mxu0 %v1057
        %v1942 = vpop.f32.mrb[0].mxu0
        %v1943 = vadd.f32 0.0, %v1942
        %v1944 = vpop.f32.mrb[0].mxu0
        %1945 = vmatprep.mubr.f32.mxu0 %v1241
        %1946 = vmatmul.mubr.f32.gmra.mrb[0].mxu0 %v1058
        %v1947 = vpop.f32.mrb[0].mxu0
        %v1948 = vadd.f32 0.0, %v1947
        %v1949 = vpop.f32.mrb[0].mxu0
        %1950 = vmatprep.mubr.f32.mxu0 %v1242
        %1951 = vmatmul.mubr.f32.gmra.mrb[0].mxu0 %v1059
        %v1952 = vpop.f32.mrb[0].mxu0
        %v1953 = vadd.f32 0.0, %v1952
        %v1954 = vpop.f32.mrb[0].mxu0
        %1955 = vmatprep.mubr.f32.mxu0 %v1243
        %1956 = vmatmul.mubr.f32.gmra.mrb[0].mxu0 %v1060
        %v1957 = vpop.f32.mrb[0].mxu0
        %v1958 = vadd.f32 0.0, %v1957
        %v1959 = vpop.f32.mrb[0].mxu0
        %1960 = vmatprep.mubr.f32.mxu0 %v1244
        %1961 = vmatmul.mubr.f32.gmra.mrb[0].mxu0 %v1061
        %v1962 = vpop.f32.mrb[0].mxu0
        %v1963 = vadd.f32 0.0, %v1962
        %v1964 = vpop.f32.mrb[0].mxu0
        %1965 = vmatprep.mubr.f32.mxu0 %v1245
        %1966 = vmatmul.mubr.f32.gmra.mrb[0].mxu0 %v1062
        %v1967 = vpop.f32.mrb[0].mxu0
        %v1968 = vadd.f32 0.0, %v1967
        %v1969 = vpop.f32.mrb[0].mxu0
        %1970 = vmatprep.mubr.f32.mxu0 %v1246
        %1971 = vmatmul.mubr.f32.gmra.mrb[0].mxu0 %v1063
        %v1972 = vpop.f32.mrb[0].mxu0
        %v1973 = vadd.f32 0.0, %v1972
        %v1974 = vpop.f32.mrb[0].mxu0
        %1975 = vmatprep.mubr.f32.mxu0 %v1247
        %1976 = vmatmul.mubr.f32.gmra.mrb[0].mxu0 %v1064
        %v1977 = vpop.f32.mrb[0].mxu0
        %v1978 = vadd.f32 0.0, %v1977
        %v1979 = vpop.f32.mrb[0].mxu0
        %1980 = vmatprep.mubr.f32.mxu0 %v1248
        %1981 = vmatmul.mubr.f32.gmra.mrb[0].mxu0 %v1065
        %v1982 = vpop.f32.mrb[0].mxu0
        %v1983 = vadd.f32 0.0, %v1982
        %v1984 = vpop.f32.mrb[0].mxu0
        %1985 = vmatprep.mubr.f32.mxu0 %v1249
        %1986 = vmatmul.mubr.f32.gmra.mrb[0].mxu0 %v1066
        %v1987 = vpop.f32.mrb[0].mxu0
        %v1988 = vadd.f32 0.0, %v1987
        %v1989 = vpop.f32.mrb[0].mxu0
        %1990 = vmatprep.mubr.f32.mxu0 %v1250
        %1991 = vmatmul.mubr.f32.gmra.mrb[0].mxu0 %v1067
        %v1992 = vpop.f32.mrb[0].mxu0
        %v1993 = vadd.f32 0.0, %v1992
        %v1994 = vpop.f32.mrb[0].mxu0
        %1995 = vmatprep.mubr.f32.mxu0 %v1251
        %1996 = vmatmul.mubr.f32.gmra.mrb[0].mxu0 %v1068
        %v1997 = vpop.f32.mrb[0].mxu0
        %v1998 = vadd.f32 0.0, %v1997
        %v1999 = vpop.f32.mrb[0].mxu0
        %2000 = vmatprep.mubr.f32.mxu0 %v1252
        %2001 = vmatmul.mubr.f32.gmra.mrb[0].mxu0 %v1069
        %v2002 = vpop.f32.mrb[0].mxu0
        %v2003 = vadd.f32 0.0, %v2002
        %v2004 = vpop.f32.mrb[0].mxu0
        %2005 = vdwg.mxu0
        %2006 = vmatprep.subr.mxu0 0.0
        %2007 = vmatpush1.msra.mxu0 %v1813
        %2008 = vmatprep.subr.mxu0 0.0
        %2009 = vmatpush1.msra.mxu0 %v1814
        %2010 = vmatprep.subr.mxu0 0.0
        %2011 = vmatpush1.msra.mxu0 %v1815
        %2012 = vmatprep.subr.mxu0 0.0
        %2013 = vmatpush1.msra.mxu0 %v1816
        %2014 = vmatprep.subr.mxu0 0.0
        %2015 = vmatpush1.msra.mxu0 %v1817
        %2016 = vmatprep.subr.mxu0 0.0
        %2017 = vmatpush1.msra.mxu0 %v1818
        %2018 = vmatprep.subr.mxu0 0.0
        %2019 = vmatpush1.msra.mxu0 %v1819
        %2020 = vmatprep.subr.mxu0 0.0
        %2021 = vmatpush1.msra.mxu0 %v1820
        %2022 = vmatprep.subr.mxu0 0.0
        %2023 = vmatpush1.msra.mxu0 %v1821
        %2024 = vmatprep.subr.mxu0 0.0
        %2025 = vmatpush1.msra.mxu0 %v1822
        %2026 = vmatprep.subr.mxu0 0.0
        %2027 = vmatpush1.msra.mxu0 %v1823
        %2028 = vmatprep.subr.mxu0 0.0
        %2029 = vmatpush1.msra.mxu0 %v1824
        %2030 = vmatprep.subr.mxu0 0.0
        %2031 = vmatpush1.msra.mxu0 %v1825
        %2032 = vmatprep.subr.mxu0 0.0
        %2033 = vmatpush1.msra.mxu0 %v1826
        %2034 = vmatprep.subr.mxu0 0.0
        %2035 = vmatpush1.msra.mxu0 %v1827
        %2036 = vmatprep.subr.mxu0 0.0
        %2037 = vmatpush1.msra.mxu0 %v1828
        %2038 = vmatprep.subr.mxu0 0.0
        %2039 = vmatpush1.msra.mxu0 %v1829
        %2040 = vmatprep.subr.mxu0 0.0
        %2041 = vmatpush1.msra.mxu0 %v1830
        %2042 = vmatprep.subr.mxu0 0.0
        %2043 = vmatpush1.msra.mxu0 %v1831
        %2044 = vmatprep.subr.mxu0 0.0
        %2045 = vmatpush1.msra.mxu0 %v1832
        %2046 = vmatprep.subr.mxu0 0.0
        %2047 = vmatpush1.msra.mxu0 %v1833
        %2048 = vmatprep.subr.mxu0 0.0
        %2049 = vmatpush1.msra.mxu0 %v1834
        %2050 = vmatprep.subr.mxu0 0.0
        %2051 = vmatpush1.msra.mxu0 %v1835
        %2052 = vmatprep.subr.mxu0 0.0
        %2053 = vmatpush1.msra.mxu0 %v1836
        %2054 = vmatprep.subr.mxu0 0.0
        %2055 = vmatpush1.msra.mxu0 %v1837
        %2056 = vmatprep.subr.mxu0 0.0
        %2057 = vmatpush1.msra.mxu0 %v1838
        %2058 = vmatprep.subr.mxu0 0.0
        %2059 = vmatpush1.msra.mxu0 %v1839
        %2060 = vmatprep.subr.mxu0 0.0
        %2061 = vmatpush1.msra.mxu0 %v1840
        %2062 = vmatprep.subr.mxu0 0.0
        %2063 = vmatpush1.msra.mxu0 %v1841
        %2064 = vmatprep.subr.mxu0 0.0
        %2065 = vmatpush1.msra.mxu0 %v1842
        %2066 = vmatprep.subr.mxu0 0.0
        %2067 = vmatpush1.msra.mxu0 %v1843
        %2068 = vmatprep.subr.mxu0 0.0
        %2069 = vmatpush1.msra.mxu0 %v1844
        %2070 = vmatprep.mubr.f32.mxu0 %v1603
        %2071 = vmatmul.mubr.f32.gmra.mrb[0].mxu0 %v1420
        %v2072 = vpop.f32.mrb[0].mxu0
        %v2073 = vadd.f32 %v1928, %v2072
        %v2074 = vpop.f32.mrb[0].mxu0
        %2075 = vmatprep.mubr.f32.mxu0 %v1604
        %2076 = vmatmul.mubr.f32.gmra.mrb[0].mxu0 %v1421
        %v2077 = vpop.f32.mrb[0].mxu0
        %v2078 = vadd.f32 %v1933, %v2077
        %v2079 = vpop.f32.mrb[0].mxu0
        %2080 = vmatprep.mubr.f32.mxu0 %v1605
        %2081 = vmatmul.mubr.f32.gmra.mrb[0].mxu0 %v1422
        %v2082 = vpop.f32.mrb[0].mxu0
        %v2083 = vadd.f32 %v1938, %v2082
        %v2084 = vpop.f32.mrb[0].mxu0
        %2085 = vmatprep.mubr.f32.mxu0 %v1606
        %2086 = vmatmul.mubr.f32.gmra.mrb[0].mxu0 %v1423
        %v2087 = vpop.f32.mrb[0].mxu0
        %v2088 = vadd.f32 %v1943, %v2087
        %v2089 = vpop.f32.mrb[0].mxu0
        %2090 = vmatprep.mubr.f32.mxu0 %v1607
        %2091 = vmatmul.mubr.f32.gmra.mrb[0].mxu0 %v1424
        %v2092 = vpop.f32.mrb[0].mxu0
        %v2093 = vadd.f32 %v1948, %v2092
        %v2094 = vpop.f32.mrb[0].mxu0
        %2095 = vmatprep.mubr.f32.mxu0 %v1608
        %2096 = vmatmul.mubr.f32.gmra.mrb[0].mxu0 %v1425
        %v2097 = vpop.f32.mrb[0].mxu0
        %v2098 = vadd.f32 %v1953, %v2097
        %v2099 = vpop.f32.mrb[0].mxu0
        %2100 = vmatprep.mubr.f32.mxu0 %v1609
        %2101 = vmatmul.mubr.f32.gmra.mrb[0].mxu0 %v1426
        %v2102 = vpop.f32.mrb[0].mxu0
        %v2103 = vadd.f32 %v1958, %v2102
        %v2104 = vpop.f32.mrb[0].mxu0
        %2105 = vmatprep.mubr.f32.mxu0 %v1610
        %2106 = vmatmul.mubr.f32.gmra.mrb[0].mxu0 %v1427
        %v2107 = vpop.f32.mrb[0].mxu0
        %v2108 = vadd.f32 %v1963, %v2107
        %v2109 = vpop.f32.mrb[0].mxu0
        %2110 = vmatprep.mubr.f32.mxu0 %v1611
        %2111 = vmatmul.mubr.f32.gmra.mrb[0].mxu0 %v1428
        %v2112 = vpop.f32.mrb[0].mxu0
        %v2113 = vadd.f32 %v1968, %v2112
        %v2114 = vpop.f32.mrb[0].mxu0
        %2115 = vmatprep.mubr.f32.mxu0 %v1612
        %2116 = vmatmul.mubr.f32.gmra.mrb[0].mxu0 %v1429
        %v2117 = vpop.f32.mrb[0].mxu0
        %v2118 = vadd.f32 %v1973, %v2117
        %v2119 = vpop.f32.mrb[0].mxu0
        %2120 = vmatprep.mubr.f32.mxu0 %v1613
        %2121 = vmatmul.mubr.f32.gmra.mrb[0].mxu0 %v1430
        %v2122 = vpop.f32.mrb[0].mxu0
        %v2123 = vadd.f32 %v1978, %v2122
        %v2124 = vpop.f32.mrb[0].mxu0
        %2125 = vmatprep.mubr.f32.mxu0 %v1614
        %2126 = vmatmul.mubr.f32.gmra.mrb[0].mxu0 %v1431
        %v2127 = vpop.f32.mrb[0].mxu0
        %v2128 = vadd.f32 %v1983, %v2127
        %v2129 = vpop.f32.mrb[0].mxu0
        %2130 = vmatprep.mubr.f32.mxu0 %v1615
        %2131 = vmatmul.mubr.f32.gmra.mrb[0].mxu0 %v1432
        %v2132 = vpop.f32.mrb[0].mxu0
        %v2133 = vadd.f32 %v1988, %v2132
        %v2134 = vpop.f32.mrb[0].mxu0
        %2135 = vmatprep.mubr.f32.mxu0 %v1616
        %2136 = vmatmul.mubr.f32.gmra.mrb[0].mxu0 %v1433
        %v2137 = vpop.f32.mrb[0].mxu0
        %v2138 = vadd.f32 %v1993, %v2137
        %v2139 = vpop.f32.mrb[0].mxu0
        %2140 = vmatprep.mubr.f32.mxu0 %v1617
        %2141 = vmatmul.mubr.f32.gmra.mrb[0].mxu0 %v1434
        %v2142 = vpop.f32.mrb[0].mxu0
        %v2143 = vadd.f32 %v1998, %v2142
        %v2144 = vpop.f32.mrb[0].mxu0
        %2145 = vmatprep.mubr.f32.mxu0 %v1618
        %2146 = vmatmul.mubr.f32.gmra.mrb[0].mxu0 %v1435
        %v2147 = vpop.f32.mrb[0].mxu0
        %v2148 = vadd.f32 %v2003, %v2147
        %v2149 = vpop.f32.mrb[0].mxu0
        %2150 = vdwg.mxu0
        %2151 = vmatprep.subr.mxu0 0.0
        %2152 = vmatpush1.msra.mxu0 %v1845
        %2153 = vmatprep.subr.mxu0 0.0
        %2154 = vmatpush1.msra.mxu0 %v1846
        %2155 = vmatprep.subr.mxu0 0.0
        %2156 = vmatpush1.msra.mxu0 %v1847
        %2157 = vmatprep.subr.mxu0 0.0
        %2158 = vmatpush1.msra.mxu0 %v1848
        %2159 = vmatprep.subr.mxu0 0.0
        %2160 = vmatpush1.msra.mxu0 %v1849
        %2161 = vmatprep.subr.mxu0 0.0
        %2162 = vmatpush1.msra.mxu0 %v1850
        %2163 = vmatprep.subr.mxu0 0.0
        %2164 = vmatpush1.msra.mxu0 %v1851
        %2165 = vmatprep.subr.mxu0 0.0
        %2166 = vmatpush1.msra.mxu0 %v1852
        %2167 = vmatprep.subr.mxu0 0.0
        %2168 = vmatpush1.msra.mxu0 %v1853
        %2169 = vmatprep.subr.mxu0 0.0
        %2170 = vmatpush1.msra.mxu0 %v1854
        %2171 = vmatprep.subr.mxu0 0.0
        %2172 = vmatpush1.msra.mxu0 %v1855
        %2173 = vmatprep.subr.mxu0 0.0
        %2174 = vmatpush1.msra.mxu0 %v1856
        %2175 = vmatprep.subr.mxu0 0.0
        %2176 = vmatpush1.msra.mxu0 %v1857
        %2177 = vmatprep.subr.mxu0 0.0
        %2178 = vmatpush1.msra.mxu0 %v1858
        %2179 = vmatprep.subr.mxu0 0.0
        %2180 = vmatpush1.msra.mxu0 %v1859
        %2181 = vmatprep.subr.mxu0 0.0
        %2182 = vmatpush1.msra.mxu0 %v1860
        %2183 = vmatprep.subr.mxu0 0.0
        %2184 = vmatpush1.msra.mxu0 0.0
        %2185 = vmatprep.subr.mxu0 0.0
        %2186 = vmatpush1.msra.mxu0 0.0
        %2187 = vmatprep.subr.mxu0 0.0
        %2188 = vmatpush1.msra.mxu0 0.0
        %2189 = vmatprep.subr.mxu0 0.0
        %2190 = vmatpush1.msra.mxu0 0.0
        %2191 = vmatprep.subr.mxu0 0.0
        %2192 = vmatpush1.msra.mxu0 0.0
        %2193 = vmatprep.subr.mxu0 0.0
        %2194 = vmatpush1.msra.mxu0 0.0
        %2195 = vmatprep.subr.mxu0 0.0
        %2196 = vmatpush1.msra.mxu0 0.0
        %2197 = vmatprep.subr.mxu0 0.0
        %2198 = vmatpush1.msra.mxu0 0.0
        %2199 = vmatprep.subr.mxu0 0.0
        %2200 = vmatpush1.msra.mxu0 0.0
        %2201 = vmatprep.subr.mxu0 0.0
        %2202 = vmatpush1.msra.mxu0 0.0
        %2203 = vmatprep.subr.mxu0 0.0
        %2204 = vmatpush1.msra.mxu0 0.0
        %2205 = vmatprep.subr.mxu0 0.0
        %2206 = vmatpush1.msra.mxu0 0.0
        %2207 = vmatprep.subr.mxu0 0.0
        %2208 = vmatpush1.msra.mxu0 0.0
        %2209 = vmatprep.subr.mxu0 0.0
        %2210 = vmatpush1.msra.mxu0 0.0
        %2211 = vmatprep.subr.mxu0 0.0
        %2212 = vmatpush1.msra.mxu0 0.0
        %2213 = vmatprep.subr.mxu0 0.0
        %2214 = vmatpush1.msra.mxu0 0.0
        %2215 = vmatprep.mubr.f32.mxu0 0.0
        %2216 = vmatmul.mubr.f32.gmra.mrb[0].mxu0 %v1703
        %v2217 = vpop.f32.mrb[0].mxu0
        %v2218 = vadd.f32 %v2073, %v2217
        %v2219 = vpop.f32.mrb[0].mxu0
        %2220 = vmatprep.mubr.f32.mxu0 0.0
        %2221 = vmatmul.mubr.f32.gmra.mrb[0].mxu0 %v1708
        %v2222 = vpop.f32.mrb[0].mxu0
        %v2223 = vadd.f32 %v2078, %v2222
        %v2224 = vpop.f32.mrb[0].mxu0
        %2225 = vmatprep.mubr.f32.mxu0 0.0
        %2226 = vmatmul.mubr.f32.gmra.mrb[0].mxu0 %v1713
        %v2227 = vpop.f32.mrb[0].mxu0
        %v2228 = vadd.f32 %v2083, %v2227
        %v2229 = vpop.f32.mrb[0].mxu0
        %2230 = vmatprep.mubr.f32.mxu0 0.0
        %2231 = vmatmul.mubr.f32.gmra.mrb[0].mxu0 %v1718
        %v2232 = vpop.f32.mrb[0].mxu0
        %v2233 = vadd.f32 %v2088, %v2232
        %v2234 = vpop.f32.mrb[0].mxu0
        %2235 = vmatprep.mubr.f32.mxu0 0.0
        %2236 = vmatmul.mubr.f32.gmra.mrb[0].mxu0 %v1723
        %v2237 = vpop.f32.mrb[0].mxu0
        %v2238 = vadd.f32 %v2093, %v2237
        %v2239 = vpop.f32.mrb[0].mxu0
        %2240 = vmatprep.mubr.f32.mxu0 0.0
        %2241 = vmatmul.mubr.f32.gmra.mrb[0].mxu0 %v1728
        %v2242 = vpop.f32.mrb[0].mxu0
        %v2243 = vadd.f32 %v2098, %v2242
        %v2244 = vpop.f32.mrb[0].mxu0
        %2245 = vmatprep.mubr.f32.mxu0 0.0
        %2246 = vmatmul.mubr.f32.gmra.mrb[0].mxu0 %v1733
        %v2247 = vpop.f32.mrb[0].mxu0
        %v2248 = vadd.f32 %v2103, %v2247
        %v2249 = vpop.f32.mrb[0].mxu0
        %2250 = vmatprep.mubr.f32.mxu0 0.0
        %2251 = vmatmul.mubr.f32.gmra.mrb[0].mxu0 %v1738
        %v2252 = vpop.f32.mrb[0].mxu0
        %v2253 = vadd.f32 %v2108, %v2252
        %v2254 = vpop.f32.mrb[0].mxu0
        %2255 = vmatprep.mubr.f32.mxu0 0.0
        %2256 = vmatmul.mubr.f32.gmra.mrb[0].mxu0 %v1743
        %v2257 = vpop.f32.mrb[0].mxu0
        %v2258 = vadd.f32 %v2113, %v2257
        %v2259 = vpop.f32.mrb[0].mxu0
        %2260 = vmatprep.mubr.f32.mxu0 0.0
        %2261 = vmatmul.mubr.f32.gmra.mrb[0].mxu0 %v1748
        %v2262 = vpop.f32.mrb[0].mxu0
        %v2263 = vadd.f32 %v2118, %v2262
        %v2264 = vpop.f32.mrb[0].mxu0
        %2265 = vmatprep.mubr.f32.mxu0 0.0
        %2266 = vmatmul.mubr.f32.gmra.mrb[0].mxu0 %v1753
        %v2267 = vpop.f32.mrb[0].mxu0
        %v2268 = vadd.f32 %v2123, %v2267
        %v2269 = vpop.f32.mrb[0].mxu0
        %2270 = vmatprep.mubr.f32.mxu0 0.0
        %2271 = vmatmul.mubr.f32.gmra.mrb[0].mxu0 %v1758
        %v2272 = vpop.f32.mrb[0].mxu0
        %v2273 = vadd.f32 %v2128, %v2272
        %v2274 = vpop.f32.mrb[0].mxu0
        %2275 = vmatprep.mubr.f32.mxu0 0.0
        %2276 = vmatmul.mubr.f32.gmra.mrb[0].mxu0 %v1763
        %v2277 = vpop.f32.mrb[0].mxu0
        %v2278 = vadd.f32 %v2133, %v2277
        %v2279 = vpop.f32.mrb[0].mxu0
        %2280 = vmatprep.mubr.f32.mxu0 0.0
        %2281 = vmatmul.mubr.f32.gmra.mrb[0].mxu0 %v1768
        %v2282 = vpop.f32.mrb[0].mxu0
        %v2283 = vadd.f32 %v2138, %v2282
        %v2284 = vpop.f32.mrb[0].mxu0
        %2285 = vmatprep.mubr.f32.mxu0 0.0
        %2286 = vmatmul.mubr.f32.gmra.mrb[0].mxu0 %v1773
        %v2287 = vpop.f32.mrb[0].mxu0
        %v2288 = vadd.f32 %v2143, %v2287
        %v2289 = vpop.f32.mrb[0].mxu0
        %2290 = vmatprep.mubr.f32.mxu0 0.0
        %2291 = vmatmul.mubr.f32.gmra.mrb[0].mxu0 %v1778
        %v2292 = vpop.f32.mrb[0].mxu0
        %v2293 = vadd.f32 %v2148, %v2292
        %v2294 = vpop.f32.mrb[0].mxu0
        %2295 = vdwg.mxu0
        %v2296 = vld [vmem:[%s2] sm:$0x3f]
        %2297 = vmatprep.subr.mxu0 0.0
        %2298 = vmatpush1.msra.mxu0 %v2218
        %2299 = vmatprep.subr.mxu0 0.0
        %2300 = vmatpush1.msra.mxu0 %v2223
        %2301 = vmatprep.subr.mxu0 0.0
        %2302 = vmatpush1.msra.mxu0 %v2228
        %2303 = vmatprep.subr.mxu0 0.0
        %2304 = vmatpush1.msra.mxu0 %v2233
        %2305 = vmatprep.subr.mxu0 0.0
        %2306 = vmatpush1.msra.mxu0 %v2238
        %2307 = vmatprep.subr.mxu0 0.0
        %2308 = vmatpush1.msra.mxu0 %v2243
        %2309 = vmatprep.subr.mxu0 0.0
        %2310 = vmatpush1.msra.mxu0 %v2248
        %2311 = vmatprep.subr.mxu0 0.0
        %2312 = vmatpush1.msra.mxu0 %v2253
        %2313 = vmatprep.subr.mxu0 0.0
        %2314 = vmatpush1.msra.mxu0 %v2258
        %2315 = vmatprep.subr.mxu0 0.0
        %2316 = vmatpush1.msra.mxu0 %v2263
        %2317 = vmatprep.subr.mxu0 0.0
        %2318 = vmatpush1.msra.mxu0 %v2268
        %2319 = vmatprep.subr.mxu0 0.0
        %2320 = vmatpush1.msra.mxu0 %v2273
        %2321 = vmatprep.subr.mxu0 0.0
        %2322 = vmatpush1.msra.mxu0 %v2278
        %2323 = vmatprep.subr.mxu0 0.0
        %2324 = vmatpush1.msra.mxu0 %v2283
        %2325 = vmatprep.subr.mxu0 0.0
        %2326 = vmatpush1.msra.mxu0 %v2288
        %2327 = vmatprep.subr.mxu0 0.0
        %2328 = vmatpush1.msra.mxu0 %v2293
        %2329 = vmatprep.subr.mxu0 0.0
        %2330 = vmatpush1.msra.mxu0 0.0
        %2331 = vmatprep.subr.mxu0 0.0
        %2332 = vmatpush1.msra.mxu0 0.0
        %2333 = vmatprep.subr.mxu0 0.0
        %2334 = vmatpush1.msra.mxu0 0.0
        %2335 = vmatprep.subr.mxu0 0.0
        %2336 = vmatpush1.msra.mxu0 0.0
        %2337 = vmatprep.subr.mxu0 0.0
        %2338 = vmatpush1.msra.mxu0 0.0
        %2339 = vmatprep.subr.mxu0 0.0
        %2340 = vmatpush1.msra.mxu0 0.0
        %2341 = vmatprep.subr.mxu0 0.0
        %2342 = vmatpush1.msra.mxu0 0.0
        %2343 = vmatprep.subr.mxu0 0.0
        %2344 = vmatpush1.msra.mxu0 0.0
        %2345 = vmatprep.subr.mxu0 0.0
        %2346 = vmatpush1.msra.mxu0 0.0
        %2347 = vmatprep.subr.mxu0 0.0
        %2348 = vmatpush1.msra.mxu0 0.0
        %2349 = vmatprep.subr.mxu0 0.0
        %2350 = vmatpush1.msra.mxu0 0.0
        %2351 = vmatprep.subr.mxu0 0.0
        %2352 = vmatpush1.msra.mxu0 0.0
        %2353 = vmatprep.subr.mxu0 0.0
        %2354 = vmatpush1.msra.mxu0 0.0
        %2355 = vmatprep.subr.mxu0 0.0
        %2356 = vmatpush1.msra.mxu0 0.0
        %2357 = vmatprep.subr.mxu0 0.0
        %2358 = vmatpush1.msra.mxu0 0.0
        %2359 = vmatprep.subr.mxu0 0.0
        %2360 = vmatpush1.msra.mxu0 0.0
        %2361 = vmatprep.mubr.f32.mxu0 0.0
        %2362 = vmatmul.mubr.f32.gmra.mrb[0].mxu0 %v2296
        %v2363 = vpop.f32.mrb[0].mxu0
        %v2364 = vadd.f32 0.0, %v2363
        %v2365 = vpop.f32.mrb[0].mxu0
        %2366 = vdwg.mxu0
        %v2367 = vmul.f32 %v2364, 0.0625
        %v2368 = vmul.f32 %v2218, %v2218
        %v2369 = vmul.f32 %v2223, %v2223
        %v2370 = vmul.f32 %v2228, %v2228
        %v2371 = vmul.f32 %v2233, %v2233
        %v2372 = vmul.f32 %v2238, %v2238
        %v2373 = vmul.f32 %v2243, %v2243
        %v2374 = vmul.f32 %v2248, %v2248
        %v2375 = vmul.f32 %v2253, %v2253
        %v2376 = vmul.f32 %v2258, %v2258
        %v2377 = vmul.f32 %v2263, %v2263
        %v2378 = vmul.f32 %v2268, %v2268
        %v2379 = vmul.f32 %v2273, %v2273
        %v2380 = vmul.f32 %v2278, %v2278
        %v2381 = vmul.f32 %v2283, %v2283
        %v2382 = vmul.f32 %v2288, %v2288
        %v2383 = vmul.f32 %v2293, %v2293
        %2384 = vadd.xlane.f32.xlu0 %v2368
        %v2385 = vpop.xlane.xlu0 %2384
        %2386 = vadd.xlane.f32.xlu0 %v2369
        %v2387 = vpop.xlane.xlu0 %2386
        %2388 = vadd.xlane.f32.xlu0 %v2370
        %v2389 = vpop.xlane.xlu0 %2388
        %2390 = vadd.xlane.f32.xlu0 %v2371
        %v2391 = vpop.xlane.xlu0 %2390
        %2392 = vadd.xlane.f32.xlu0 %v2372
        %v2393 = vpop.xlane.xlu0 %2392
        %2394 = vadd.xlane.f32.xlu0 %v2373
        %v2395 = vpop.xlane.xlu0 %2394
        %2396 = vadd.xlane.f32.xlu0 %v2374
        %v2397 = vpop.xlane.xlu0 %2396
        %2398 = vadd.xlane.f32.xlu0 %v2375
        %v2399 = vpop.xlane.xlu0 %2398
        %2400 = vadd.xlane.f32.xlu0 %v2376
        %v2401 = vpop.xlane.xlu0 %2400
        %2402 = vadd.xlane.f32.xlu0 %v2377
        %v2403 = vpop.xlane.xlu0 %2402
        %2404 = vadd.xlane.f32.xlu0 %v2378
        %v2405 = vpop.xlane.xlu0 %2404
        %2406 = vadd.xlane.f32.xlu0 %v2379
        %v2407 = vpop.xlane.xlu0 %2406
        %2408 = vadd.xlane.f32.xlu0 %v2380
        %v2409 = vpop.xlane.xlu0 %2408
        %2410 = vadd.xlane.f32.xlu0 %v2381
        %v2411 = vpop.xlane.xlu0 %2410
        %2412 = vadd.xlane.f32.xlu0 %v2382
        %v2413 = vpop.xlane.xlu0 %2412
        %2414 = vadd.xlane.f32.xlu0 %v2383
        %v2415 = vpop.xlane.xlu0 %2414
        %v2416 = vmax.f32 %v2385, 1e-24
        %v2417 = vmax.f32 %v2387, 1e-24
        %v2418 = vmax.f32 %v2389, 1e-24
        %v2419 = vmax.f32 %v2391, 1e-24
        %v2420 = vmax.f32 %v2393, 1e-24
        %v2421 = vmax.f32 %v2395, 1e-24
        %v2422 = vmax.f32 %v2397, 1e-24
        %v2423 = vmax.f32 %v2399, 1e-24
        %v2424 = vmax.f32 %v2401, 1e-24
        %v2425 = vmax.f32 %v2403, 1e-24
        %v2426 = vmax.f32 %v2405, 1e-24
        %v2427 = vmax.f32 %v2407, 1e-24
        %v2428 = vmax.f32 %v2409, 1e-24
        %v2429 = vmax.f32 %v2411, 1e-24
        %v2430 = vmax.f32 %v2413, 1e-24
        %v2431 = vmax.f32 %v2415, 1e-24
        %v2432 = vrsqrt.pop %v2416
        %v2433 = vrsqrt.pop %v2417
        %v2434 = vrsqrt.pop %v2418
        %v2435 = vrsqrt.pop %v2419
        %v2436 = vrsqrt.pop %v2420
        %v2437 = vrsqrt.pop %v2421
        %v2438 = vrsqrt.pop %v2422
        %v2439 = vrsqrt.pop %v2423
        %v2440 = vrsqrt.pop %v2424
        %v2441 = vrsqrt.pop %v2425
        %v2442 = vrsqrt.pop %v2426
        %v2443 = vrsqrt.pop %v2427
        %v2444 = vrsqrt.pop %v2428
        %v2445 = vrsqrt.pop %v2429
        %v2446 = vrsqrt.pop %v2430
        %v2447 = vrsqrt.pop %v2431
        %v2448 = vmul.f32 %v2218, %v2432
        %v2449 = vmul.f32 %v2223, %v2433
        %v2450 = vmul.f32 %v2228, %v2434
        %v2451 = vmul.f32 %v2233, %v2435
        %v2452 = vmul.f32 %v2238, %v2436
        %v2453 = vmul.f32 %v2243, %v2437
        %v2454 = vmul.f32 %v2248, %v2438
        %v2455 = vmul.f32 %v2253, %v2439
        %v2456 = vmul.f32 %v2258, %v2440
        %v2457 = vmul.f32 %v2263, %v2441
        %v2458 = vmul.f32 %v2268, %v2442
        %v2459 = vmul.f32 %v2273, %v2443
        %v2460 = vmul.f32 %v2278, %v2444
        %v2461 = vmul.f32 %v2283, %v2445
        %v2462 = vmul.f32 %v2288, %v2446
        %v2463 = vmul.f32 %v2293, %v2447
        %2464 = vmatprep.subr.mxu0 0.0
        %2465 = vmatpush1.xpose.msra.mxu0 %v2448
        %2466 = vmatprep.subr.mxu0 0.0
        %2467 = vmatpush1.xpose.msra.mxu0 %v2449
        %2468 = vmatprep.subr.mxu0 0.0
        %2469 = vmatpush1.xpose.msra.mxu0 %v2450
        %2470 = vmatprep.subr.mxu0 0.0
        %2471 = vmatpush1.xpose.msra.mxu0 %v2451
        %2472 = vmatprep.subr.mxu0 0.0
        %2473 = vmatpush1.xpose.msra.mxu0 %v2452
        %2474 = vmatprep.subr.mxu0 0.0
        %2475 = vmatpush1.xpose.msra.mxu0 %v2453
        %2476 = vmatprep.subr.mxu0 0.0
        %2477 = vmatpush1.xpose.msra.mxu0 %v2454
        %2478 = vmatprep.subr.mxu0 0.0
        %2479 = vmatpush1.xpose.msra.mxu0 %v2455
        %2480 = vmatprep.subr.mxu0 0.0
        %2481 = vmatpush1.xpose.msra.mxu0 %v2456
        %2482 = vmatprep.subr.mxu0 0.0
        %2483 = vmatpush1.xpose.msra.mxu0 %v2457
        %2484 = vmatprep.subr.mxu0 0.0
        %2485 = vmatpush1.xpose.msra.mxu0 %v2458
        %2486 = vmatprep.subr.mxu0 0.0
        %2487 = vmatpush1.xpose.msra.mxu0 %v2459
        %2488 = vmatprep.subr.mxu0 0.0
        %2489 = vmatpush1.xpose.msra.mxu0 %v2460
        %2490 = vmatprep.subr.mxu0 0.0
        %2491 = vmatpush1.xpose.msra.mxu0 %v2461
        %2492 = vmatprep.subr.mxu0 0.0
        %2493 = vmatpush1.xpose.msra.mxu0 %v2462
        %2494 = vmatprep.subr.mxu0 0.0
        %2495 = vmatpush1.xpose.msra.mxu0 %v2463
        %2496 = vmatprep.subr.mxu0 0.0
        %2497 = vmatpush1.xpose.msra.mxu0 0.0
        %2498 = vmatprep.subr.mxu0 0.0
        %2499 = vmatpush1.xpose.msra.mxu0 0.0
        %2500 = vmatprep.subr.mxu0 0.0
        %2501 = vmatpush1.xpose.msra.mxu0 0.0
        %2502 = vmatprep.subr.mxu0 0.0
        %2503 = vmatpush1.xpose.msra.mxu0 0.0
        %2504 = vmatprep.subr.mxu0 0.0
        %2505 = vmatpush1.xpose.msra.mxu0 0.0
        %2506 = vmatprep.subr.mxu0 0.0
        %2507 = vmatpush1.xpose.msra.mxu0 0.0
        %2508 = vmatprep.subr.mxu0 0.0
        %2509 = vmatpush1.xpose.msra.mxu0 0.0
        %2510 = vmatprep.subr.mxu0 0.0
        %2511 = vmatpush1.xpose.msra.mxu0 0.0
        %2512 = vmatprep.subr.mxu0 0.0
        %2513 = vmatpush1.xpose.msra.mxu0 0.0
        %2514 = vmatprep.subr.mxu0 0.0
        %2515 = vmatpush1.xpose.msra.mxu0 0.0
        %2516 = vmatprep.subr.mxu0 0.0
        %2517 = vmatpush1.xpose.msra.mxu0 0.0
        %2518 = vmatprep.subr.mxu0 0.0
        %2519 = vmatpush1.xpose.msra.mxu0 0.0
        %2520 = vmatprep.subr.mxu0 0.0
        %2521 = vmatpush1.xpose.msra.mxu0 0.0
        %2522 = vmatprep.subr.mxu0 0.0
        %2523 = vmatpush1.xpose.msra.mxu0 0.0
        %2524 = vmatprep.subr.mxu0 0.0
        %2525 = vmatpush1.xpose.msra.mxu0 0.0
        %2526 = vmatprep.subr.mxu0 0.0
        %2527 = vmatpush1.xpose.msra.mxu0 0.0
        %2528 = vmatprep.mubr.f32.mxu0 0.0
        %2529 = vmatmul.mubr.f32.gmra.mrb[0].mxu0 %v2448
        %v2530 = vpop.f32.mrb[0].mxu0
        %v2531 = vadd.f32 0.0, %v2530
        %v2532 = vpop.f32.mrb[0].mxu0
        %2533 = vmatprep.mubr.f32.mxu0 0.0
        %2534 = vmatmul.mubr.f32.gmra.mrb[0].mxu0 %v2449
        %v2535 = vpop.f32.mrb[0].mxu0
        %v2536 = vadd.f32 0.0, %v2535
        %v2537 = vpop.f32.mrb[0].mxu0
        %2538 = vmatprep.mubr.f32.mxu0 0.0
        %2539 = vmatmul.mubr.f32.gmra.mrb[0].mxu0 %v2450
        %v2540 = vpop.f32.mrb[0].mxu0
        %v2541 = vadd.f32 0.0, %v2540
        %v2542 = vpop.f32.mrb[0].mxu0
        %2543 = vmatprep.mubr.f32.mxu0 0.0
        %2544 = vmatmul.mubr.f32.gmra.mrb[0].mxu0 %v2451
        %v2545 = vpop.f32.mrb[0].mxu0
        %v2546 = vadd.f32 0.0, %v2545
        %v2547 = vpop.f32.mrb[0].mxu0
        %2548 = vmatprep.mubr.f32.mxu0 0.0
        %2549 = vmatmul.mubr.f32.gmra.mrb[0].mxu0 %v2452
        %v2550 = vpop.f32.mrb[0].mxu0
        %v2551 = vadd.f32 0.0, %v2550
        %v2552 = vpop.f32.mrb[0].mxu0
        %2553 = vmatprep.mubr.f32.mxu0 0.0
        %2554 = vmatmul.mubr.f32.gmra.mrb[0].mxu0 %v2453
        %v2555 = vpop.f32.mrb[0].mxu0
        %v2556 = vadd.f32 0.0, %v2555
        %v2557 = vpop.f32.mrb[0].mxu0
        %2558 = vmatprep.mubr.f32.mxu0 0.0
        %2559 = vmatmul.mubr.f32.gmra.mrb[0].mxu0 %v2454
        %v2560 = vpop.f32.mrb[0].mxu0
        %v2561 = vadd.f32 0.0, %v2560
        %v2562 = vpop.f32.mrb[0].mxu0
        %2563 = vmatprep.mubr.f32.mxu0 0.0
        %2564 = vmatmul.mubr.f32.gmra.mrb[0].mxu0 %v2455
        %v2565 = vpop.f32.mrb[0].mxu0
        %v2566 = vadd.f32 0.0, %v2565
        %v2567 = vpop.f32.mrb[0].mxu0
        %2568 = vmatprep.mubr.f32.mxu0 0.0
        %2569 = vmatmul.mubr.f32.gmra.mrb[0].mxu0 %v2456
        %v2570 = vpop.f32.mrb[0].mxu0
        %v2571 = vadd.f32 0.0, %v2570
        %v2572 = vpop.f32.mrb[0].mxu0
        %2573 = vmatprep.mubr.f32.mxu0 0.0
        %2574 = vmatmul.mubr.f32.gmra.mrb[0].mxu0 %v2457
        %v2575 = vpop.f32.mrb[0].mxu0
        %v2576 = vadd.f32 0.0, %v2575
        %v2577 = vpop.f32.mrb[0].mxu0
        %2578 = vmatprep.mubr.f32.mxu0 0.0
        %2579 = vmatmul.mubr.f32.gmra.mrb[0].mxu0 %v2458
        %v2580 = vpop.f32.mrb[0].mxu0
        %v2581 = vadd.f32 0.0, %v2580
        %v2582 = vpop.f32.mrb[0].mxu0
        %2583 = vmatprep.mubr.f32.mxu0 0.0
        %2584 = vmatmul.mubr.f32.gmra.mrb[0].mxu0 %v2459
        %v2585 = vpop.f32.mrb[0].mxu0
        %v2586 = vadd.f32 0.0, %v2585
        %v2587 = vpop.f32.mrb[0].mxu0
        %2588 = vmatprep.mubr.f32.mxu0 0.0
        %2589 = vmatmul.mubr.f32.gmra.mrb[0].mxu0 %v2460
        %v2590 = vpop.f32.mrb[0].mxu0
        %v2591 = vadd.f32 0.0, %v2590
        %v2592 = vpop.f32.mrb[0].mxu0
        %2593 = vmatprep.mubr.f32.mxu0 0.0
        %2594 = vmatmul.mubr.f32.gmra.mrb[0].mxu0 %v2461
        %v2595 = vpop.f32.mrb[0].mxu0
        %v2596 = vadd.f32 0.0, %v2595
        %v2597 = vpop.f32.mrb[0].mxu0
        %2598 = vmatprep.mubr.f32.mxu0 0.0
        %2599 = vmatmul.mubr.f32.gmra.mrb[0].mxu0 %v2462
        %v2600 = vpop.f32.mrb[0].mxu0
        %v2601 = vadd.f32 0.0, %v2600
        %v2602 = vpop.f32.mrb[0].mxu0
        %2603 = vmatprep.mubr.f32.mxu0 0.0
        %2604 = vmatmul.mubr.f32.gmra.mrb[0].mxu0 %v2463
        %v2605 = vpop.f32.mrb[0].mxu0
        %v2606 = vadd.f32 0.0, %v2605
        %v2607 = vpop.f32.mrb[0].mxu0
        %2608 = vdwg.mxu0
        %v2609 = vtanh.pop %v2531
        %v2610 = vtanh.pop %v2536
        %v2611 = vtanh.pop %v2541
        %v2612 = vtanh.pop %v2546
        %v2613 = vtanh.pop %v2551
        %v2614 = vtanh.pop %v2556
        %v2615 = vtanh.pop %v2561
        %v2616 = vtanh.pop %v2566
        %v2617 = vtanh.pop %v2571
        %v2618 = vtanh.pop %v2576
        %v2619 = vtanh.pop %v2581
        %v2620 = vtanh.pop %v2586
        %v2621 = vtanh.pop %v2591
        %v2622 = vtanh.pop %v2596
        %v2623 = vtanh.pop %v2601
        %v2624 = vtanh.pop %v2606
        %v2625 = vadd.f32 %v2609, 1.0
        %v2626 = vadd.f32 %v2610, 1.0
        %v2627 = vadd.f32 %v2611, 1.0
        %v2628 = vadd.f32 %v2612, 1.0
        %v2629 = vadd.f32 %v2613, 1.0
        %v2630 = vadd.f32 %v2614, 1.0
        %v2631 = vadd.f32 %v2615, 1.0
        %v2632 = vadd.f32 %v2616, 1.0
        %v2633 = vadd.f32 %v2617, 1.0
        %v2634 = vadd.f32 %v2618, 1.0
        %v2635 = vadd.f32 %v2619, 1.0
        %v2636 = vadd.f32 %v2620, 1.0
        %v2637 = vadd.f32 %v2621, 1.0
        %v2638 = vadd.f32 %v2622, 1.0
        %v2639 = vadd.f32 %v2623, 1.0
        %v2640 = vadd.f32 %v2624, 1.0
        %v2641 = vrcp.pop 0.0952381
        %v2642 = vmul.f32 %v2625, %v2641
        %v2643 = vmul.f32 %v2626, %v2641
        %v2644 = vmul.f32 %v2627, %v2641
        %v2645 = vmul.f32 %v2628, %v2641
        %v2646 = vmul.f32 %v2629, %v2641
        %v2647 = vmul.f32 %v2630, %v2641
        %v2648 = vmul.f32 %v2631, %v2641
        %v2649 = vmul.f32 %v2632, %v2641
        %v2650 = vmul.f32 %v2633, %v2641
        %v2651 = vmul.f32 %v2634, %v2641
        %v2652 = vmul.f32 %v2635, %v2641
        %v2653 = vmul.f32 %v2636, %v2641
        %v2654 = vmul.f32 %v2637, %v2641
        %v2655 = vmul.f32 %v2638, %v2641
        %v2656 = vmul.f32 %v2639, %v2641
        %v2657 = vmul.f32 %v2640, %v2641
        %v2658 = vfloor.f32 %v2642
        %v2659 = vfloor.f32 %v2643
        %v2660 = vfloor.f32 %v2644
        %v2661 = vfloor.f32 %v2645
        %v2662 = vfloor.f32 %v2646
        %v2663 = vfloor.f32 %v2647
        %v2664 = vfloor.f32 %v2648
        %v2665 = vfloor.f32 %v2649
        %v2666 = vfloor.f32 %v2650
        %v2667 = vfloor.f32 %v2651
        %v2668 = vfloor.f32 %v2652
        %v2669 = vfloor.f32 %v2653
        %v2670 = vfloor.f32 %v2654
        %v2671 = vfloor.f32 %v2655
        %v2672 = vfloor.f32 %v2656
        %v2673 = vfloor.f32 %v2657
        %v2674 = vmax.f32 %v2658, 0.0
        %v2675 = vmax.f32 %v2659, 0.0
        %v2676 = vmax.f32 %v2660, 0.0
        %v2677 = vmax.f32 %v2661, 0.0
        %v2678 = vmax.f32 %v2662, 0.0
        %v2679 = vmax.f32 %v2663, 0.0
        %v2680 = vmax.f32 %v2664, 0.0
        %v2681 = vmax.f32 %v2665, 0.0
        %v2682 = vmax.f32 %v2666, 0.0
        %v2683 = vmax.f32 %v2667, 0.0
        %v2684 = vmax.f32 %v2668, 0.0
        %v2685 = vmax.f32 %v2669, 0.0
        %v2686 = vmax.f32 %v2670, 0.0
        %v2687 = vmax.f32 %v2671, 0.0
        %v2688 = vmax.f32 %v2672, 0.0
        %v2689 = vmax.f32 %v2673, 0.0
        %v2690 = vmin.f32 %v2674, 20.0
        %v2691 = vmin.f32 %v2675, 20.0
        %v2692 = vmin.f32 %v2676, 20.0
        %v2693 = vmin.f32 %v2677, 20.0
        %v2694 = vmin.f32 %v2678, 20.0
        %v2695 = vmin.f32 %v2679, 20.0
        %v2696 = vmin.f32 %v2680, 20.0
        %v2697 = vmin.f32 %v2681, 20.0
        %v2698 = vmin.f32 %v2682, 20.0
        %v2699 = vmin.f32 %v2683, 20.0
        %v2700 = vmin.f32 %v2684, 20.0
        %v2701 = vmin.f32 %v2685, 20.0
        %v2702 = vmin.f32 %v2686, 20.0
        %v2703 = vmin.f32 %v2687, 20.0
        %v2704 = vmin.f32 %v2688, 20.0
        %v2705 = vmin.f32 %v2689, 20.0
        %v2706 = vmul.f32 %v2690, 0.1
        %v2707 = vmul.f32 %v2691, 0.1
        %v2708 = vmul.f32 %v2692, 0.1
        %v2709 = vmul.f32 %v2693, 0.1
        %v2710 = vmul.f32 %v2694, 0.1
        %v2711 = vmul.f32 %v2695, 0.1
        %v2712 = vmul.f32 %v2696, 0.1
        %v2713 = vmul.f32 %v2697, 0.1
        %v2714 = vmul.f32 %v2698, 0.1
        %v2715 = vmul.f32 %v2699, 0.1
        %v2716 = vmul.f32 %v2700, 0.1
        %v2717 = vmul.f32 %v2701, 0.1
        %v2718 = vmul.f32 %v2702, 0.1
        %v2719 = vmul.f32 %v2703, 0.1
        %v2720 = vmul.f32 %v2704, 0.1
        %v2721 = vmul.f32 %v2705, 0.1
        %v2722 = vadd.f32 %v2706, -1.0
        %v2723 = vadd.f32 %v2707, -1.0
        %v2724 = vadd.f32 %v2708, -1.0
        %v2725 = vadd.f32 %v2709, -1.0
        %v2726 = vadd.f32 %v2710, -1.0
        %v2727 = vadd.f32 %v2711, -1.0
        %v2728 = vadd.f32 %v2712, -1.0
        %v2729 = vadd.f32 %v2713, -1.0
        %v2730 = vadd.f32 %v2714, -1.0
        %v2731 = vadd.f32 %v2715, -1.0
        %v2732 = vadd.f32 %v2716, -1.0
        %v2733 = vadd.f32 %v2717, -1.0
        %v2734 = vadd.f32 %v2718, -1.0
        %v2735 = vadd.f32 %v2719, -1.0
        %v2736 = vadd.f32 %v2720, -1.0
        %v2737 = vadd.f32 %v2721, -1.0
        %2738 = vmatprep.subr.mxu0 0.0
        %2739 = vmatpush1.msra.mxu0 %v2722
        %2740 = vmatprep.subr.mxu0 0.0
        %2741 = vmatpush1.msra.mxu0 %v2723
        %2742 = vmatprep.subr.mxu0 0.0
        %2743 = vmatpush1.msra.mxu0 %v2724
        %2744 = vmatprep.subr.mxu0 0.0
        %2745 = vmatpush1.msra.mxu0 %v2725
        %2746 = vmatprep.subr.mxu0 0.0
        %2747 = vmatpush1.msra.mxu0 %v2726
        %2748 = vmatprep.subr.mxu0 0.0
        %2749 = vmatpush1.msra.mxu0 %v2727
        %2750 = vmatprep.subr.mxu0 0.0
        %2751 = vmatpush1.msra.mxu0 %v2728
        %2752 = vmatprep.subr.mxu0 0.0
        %2753 = vmatpush1.msra.mxu0 %v2729
        %2754 = vmatprep.subr.mxu0 0.0
        %2755 = vmatpush1.msra.mxu0 %v2730
        %2756 = vmatprep.subr.mxu0 0.0
        %2757 = vmatpush1.msra.mxu0 %v2731
        %2758 = vmatprep.subr.mxu0 0.0
        %2759 = vmatpush1.msra.mxu0 %v2732
        %2760 = vmatprep.subr.mxu0 0.0
        %2761 = vmatpush1.msra.mxu0 %v2733
        %2762 = vmatprep.subr.mxu0 0.0
        %2763 = vmatpush1.msra.mxu0 %v2734
        %2764 = vmatprep.subr.mxu0 0.0
        %2765 = vmatpush1.msra.mxu0 %v2735
        %2766 = vmatprep.subr.mxu0 0.0
        %2767 = vmatpush1.msra.mxu0 %v2736
        %2768 = vmatprep.subr.mxu0 0.0
        %2769 = vmatpush1.msra.mxu0 %v2737
        %2770 = vmatprep.subr.mxu0 0.0
        %2771 = vmatpush1.msra.mxu0 0.0
        %2772 = vmatprep.subr.mxu0 0.0
        %2773 = vmatpush1.msra.mxu0 0.0
        %2774 = vmatprep.subr.mxu0 0.0
        %2775 = vmatpush1.msra.mxu0 0.0
        %2776 = vmatprep.subr.mxu0 0.0
        %2777 = vmatpush1.msra.mxu0 0.0
        %2778 = vmatprep.subr.mxu0 0.0
        %2779 = vmatpush1.msra.mxu0 0.0
        %2780 = vmatprep.subr.mxu0 0.0
        %2781 = vmatpush1.msra.mxu0 0.0
        %2782 = vmatprep.subr.mxu0 0.0
        %2783 = vmatpush1.msra.mxu0 0.0
        %2784 = vmatprep.subr.mxu0 0.0
        %2785 = vmatpush1.msra.mxu0 0.0
        %2786 = vmatprep.subr.mxu0 0.0
        %2787 = vmatpush1.msra.mxu0 0.0
        %2788 = vmatprep.subr.mxu0 0.0
        %2789 = vmatpush1.msra.mxu0 0.0
        %2790 = vmatprep.subr.mxu0 0.0
        %2791 = vmatpush1.msra.mxu0 0.0
        %2792 = vmatprep.subr.mxu0 0.0
        %2793 = vmatpush1.msra.mxu0 0.0
        %2794 = vmatprep.subr.mxu0 0.0
        %2795 = vmatpush1.msra.mxu0 0.0
        %2796 = vmatprep.subr.mxu0 0.0
        %2797 = vmatpush1.msra.mxu0 0.0
        %2798 = vmatprep.subr.mxu0 0.0
        %2799 = vmatpush1.msra.mxu0 0.0
        %2800 = vmatprep.subr.mxu0 0.0
        %2801 = vmatpush1.msra.mxu0 0.0
        %2802 = vmatprep.mubr.f32.mxu0 0.0
        %2803 = vmatmul.mubr.f32.gmra.mrb[0].mxu0 %v2296
        %v2804 = vpop.f32.mrb[0].mxu0
        %v2805 = vadd.f32 0.0, %v2804
        %v2806 = vpop.f32.mrb[0].mxu0
        %2807 = vdwg.mxu0
        %2808 = vmatprep.subr.mxu0 0.0
        %2809 = vmatpush1.xpose.msra.mxu0 %v2296
        %2810 = vmatprep.subr.mxu0 0.0
        %2811 = vmatpush1.xpose.msra.mxu0 0.0
        %2812 = vmatprep.subr.mxu0 0.0
        %2813 = vmatpush1.xpose.msra.mxu0 0.0
        %2814 = vmatprep.subr.mxu0 0.0
        %2815 = vmatpush1.xpose.msra.mxu0 0.0
        %2816 = vmatprep.subr.mxu0 0.0
        %2817 = vmatpush1.xpose.msra.mxu0 0.0
        %2818 = vmatprep.subr.mxu0 0.0
        %2819 = vmatpush1.xpose.msra.mxu0 0.0
        %2820 = vmatprep.subr.mxu0 0.0
        %2821 = vmatpush1.xpose.msra.mxu0 0.0
        %2822 = vmatprep.subr.mxu0 0.0
        %2823 = vmatpush1.xpose.msra.mxu0 0.0
        %2824 = vmatprep.subr.mxu0 0.0
        %2825 = vmatpush1.xpose.msra.mxu0 0.0
        %2826 = vmatprep.subr.mxu0 0.0
        %2827 = vmatpush1.xpose.msra.mxu0 0.0
        %2828 = vmatprep.subr.mxu0 0.0
        %2829 = vmatpush1.xpose.msra.mxu0 0.0
        %2830 = vmatprep.subr.mxu0 0.0
        %2831 = vmatpush1.xpose.msra.mxu0 0.0
        %2832 = vmatprep.subr.mxu0 0.0
        %2833 = vmatpush1.xpose.msra.mxu0 0.0
        %2834 = vmatprep.subr.mxu0 0.0
        %2835 = vmatpush1.xpose.msra.mxu0 0.0
        %2836 = vmatprep.subr.mxu0 0.0
        %2837 = vmatpush1.xpose.msra.mxu0 0.0
        %2838 = vmatprep.subr.mxu0 0.0
        %2839 = vmatpush1.xpose.msra.mxu0 0.0
        %2840 = vmatprep.subr.mxu0 0.0
        %2841 = vmatpush1.xpose.msra.mxu0 0.0
        %2842 = vmatprep.subr.mxu0 0.0
        %2843 = vmatpush1.xpose.msra.mxu0 0.0
        %2844 = vmatprep.subr.mxu0 0.0
        %2845 = vmatpush1.xpose.msra.mxu0 0.0
        %2846 = vmatprep.subr.mxu0 0.0
        %2847 = vmatpush1.xpose.msra.mxu0 0.0
        %2848 = vmatprep.subr.mxu0 0.0
        %2849 = vmatpush1.xpose.msra.mxu0 0.0
        %2850 = vmatprep.subr.mxu0 0.0
        %2851 = vmatpush1.xpose.msra.mxu0 0.0
        %2852 = vmatprep.subr.mxu0 0.0
        %2853 = vmatpush1.xpose.msra.mxu0 0.0
        %2854 = vmatprep.subr.mxu0 0.0
        %2855 = vmatpush1.xpose.msra.mxu0 0.0
        %2856 = vmatprep.subr.mxu0 0.0
        %2857 = vmatpush1.xpose.msra.mxu0 0.0
        %2858 = vmatprep.subr.mxu0 0.0
        %2859 = vmatpush1.xpose.msra.mxu0 0.0
        %2860 = vmatprep.subr.mxu0 0.0
        %2861 = vmatpush1.xpose.msra.mxu0 0.0
        %2862 = vmatprep.subr.mxu0 0.0
        %2863 = vmatpush1.xpose.msra.mxu0 0.0
        %2864 = vmatprep.subr.mxu0 0.0
        %2865 = vmatpush1.xpose.msra.mxu0 0.0
        %2866 = vmatprep.subr.mxu0 0.0
        %2867 = vmatpush1.xpose.msra.mxu0 0.0
        %2868 = vmatprep.subr.mxu0 0.0
        %2869 = vmatpush1.xpose.msra.mxu0 0.0
        %2870 = vmatprep.subr.mxu0 0.0
        %2871 = vmatpush1.xpose.msra.mxu0 0.0
        %2872 = vmatprep.mubr.f32.mxu0 0.0
        %2873 = vmatmul.mubr.f32.gmra.mrb[0].mxu0 %v2805
        %v2874 = vpop.f32.mrb[0].mxu0
        %v2875 = vadd.f32 0.0, %v2874
        %v2876 = vpop.f32.mrb[0].mxu0
        %2877 = vdwg.mxu0
        %v2878 = vmul.f32 %v2875, 0.00390625
        %v2879 = vld [vmem:[%s6] sm:$0xff]
        %v2880 = vld [vmem:[%s6 + $0x8] sm:$0xff]
        %v2881 = vld [vmem:[%s6 + $0x10] sm:$0xff]
        %v2882 = vld [vmem:[%s6 + $0x18] sm:$0xff]
        %v2883 = vld [vmem:[%s6 + $0x20] sm:$0xff]
        %v2884 = vld [vmem:[%s6 + $0x28] sm:$0xff]
        %v2885 = vld [vmem:[%s6 + $0x30] sm:$0xff]
        %v2886 = vld [vmem:[%s6 + $0x38] sm:$0xff]
        %v2887 = vld [vmem:[%s6 + $0x40] sm:$0xff]
        %v2888 = vld [vmem:[%s6 + $0x48] sm:$0xff]
        %v2889 = vld [vmem:[%s6 + $0x50] sm:$0xff]
        %v2890 = vld [vmem:[%s6 + $0x58] sm:$0xff]
        %v2891 = vld [vmem:[%s6 + $0x60] sm:$0xff]
        %v2892 = vld [vmem:[%s6 + $0x68] sm:$0xff]
        %v2893 = vld [vmem:[%s6 + $0x70] sm:$0xff]
        %v2894 = vld [vmem:[%s6 + $0x78] sm:$0xff]
        %v2895 = vld [vmem:[%s10] sm:$0xff]
        %v2896 = vld [vmem:[%s10 + $0x8] sm:$0xff]
        %v2897 = vld [vmem:[%s10 + $0x10] sm:$0xff]
        %v2898 = vld [vmem:[%s10 + $0x18] sm:$0xff]
        %v2899 = vld [vmem:[%s10 + $0x20] sm:$0xff]
        %v2900 = vld [vmem:[%s10 + $0x28] sm:$0xff]
        %v2901 = vld [vmem:[%s10 + $0x30] sm:$0xff]
        %v2902 = vld [vmem:[%s10 + $0x38] sm:$0xff]
        %v2903 = vld [vmem:[%s10 + $0x40] sm:$0xff]
        %v2904 = vld [vmem:[%s10 + $0x48] sm:$0xff]
        %v2905 = vld [vmem:[%s10 + $0x50] sm:$0xff]
        %v2906 = vld [vmem:[%s10 + $0x58] sm:$0xff]
        %v2907 = vld [vmem:[%s10 + $0x60] sm:$0xff]
        %v2908 = vld [vmem:[%s10 + $0x68] sm:$0xff]
        %v2909 = vld [vmem:[%s10 + $0x70] sm:$0xff]
        %v2910 = vld [vmem:[%s10 + $0x78] sm:$0xff]
        %s2911 = scalar_lea.vmem %s6, 128
        %v2912 = vld [vmem:[%s2911] sm:$0xff]
        %v2913 = vld [vmem:[%s2911 + $0x8] sm:$0xff]
        %v2914 = vld [vmem:[%s2911 + $0x10] sm:$0xff]
        %v2915 = vld [vmem:[%s2911 + $0x18] sm:$0xff]
        %v2916 = vld [vmem:[%s2911 + $0x20] sm:$0xff]
        %v2917 = vld [vmem:[%s2911 + $0x28] sm:$0xff]
        %v2918 = vld [vmem:[%s2911 + $0x30] sm:$0xff]
        %v2919 = vld [vmem:[%s2911 + $0x38] sm:$0xff]
        %v2920 = vld [vmem:[%s2911 + $0x40] sm:$0xff]
        %v2921 = vld [vmem:[%s2911 + $0x48] sm:$0xff]
        %v2922 = vld [vmem:[%s2911 + $0x50] sm:$0xff]
        %v2923 = vld [vmem:[%s2911 + $0x58] sm:$0xff]
        %v2924 = vld [vmem:[%s2911 + $0x60] sm:$0xff]
        %v2925 = vld [vmem:[%s2911 + $0x68] sm:$0xff]
        %v2926 = vld [vmem:[%s2911 + $0x70] sm:$0xff]
        %v2927 = vld [vmem:[%s2911 + $0x78] sm:$0xff]
        %v2929 = vrot.slane %v2367, 1
        %2931 = vmatprep.subr.mxu0 0.0
        %2932 = vmatpush1.msra.mxu0 %v2912
        %2933 = vmatprep.subr.mxu0 0.0
        %2934 = vmatpush1.msra.mxu0 %v2913
        %2935 = vmatprep.subr.mxu0 0.0
        %2936 = vmatpush1.msra.mxu0 %v2914
        %2937 = vmatprep.subr.mxu0 0.0
        %2938 = vmatpush1.msra.mxu0 %v2915
        %2939 = vmatprep.subr.mxu0 0.0
        %2940 = vmatpush1.msra.mxu0 %v2916
        %2941 = vmatprep.subr.mxu0 0.0
        %2942 = vmatpush1.msra.mxu0 %v2917
        %2943 = vmatprep.subr.mxu0 0.0
        %2944 = vmatpush1.msra.mxu0 %v2918
        %2945 = vmatprep.subr.mxu0 0.0
        %2946 = vmatpush1.msra.mxu0 %v2919
        %2947 = vmatprep.subr.mxu0 0.0
        %2948 = vmatpush1.msra.mxu0 %v2920
        %2949 = vmatprep.subr.mxu0 0.0
        %2950 = vmatpush1.msra.mxu0 %v2921
        %2951 = vmatprep.subr.mxu0 0.0
        %2952 = vmatpush1.msra.mxu0 %v2922
        %2953 = vmatprep.subr.mxu0 0.0
        %2954 = vmatpush1.msra.mxu0 %v2923
        %2955 = vmatprep.subr.mxu0 0.0
        %2956 = vmatpush1.msra.mxu0 %v2924
        %2957 = vmatprep.subr.mxu0 0.0
        %2958 = vmatpush1.msra.mxu0 %v2925
        %2959 = vmatprep.subr.mxu0 0.0
        %2960 = vmatpush1.msra.mxu0 %v2926
        %2961 = vmatprep.subr.mxu0 0.0
        %2962 = vmatpush1.msra.mxu0 %v2927
        %2963 = vmatprep.subr.mxu0 0.0
        %2964 = vmatpush1.msra.mxu0 0.0
        %2965 = vmatprep.subr.mxu0 0.0
        %2966 = vmatpush1.msra.mxu0 0.0
        %2967 = vmatprep.subr.mxu0 0.0
        %2968 = vmatpush1.msra.mxu0 0.0
        %2969 = vmatprep.subr.mxu0 0.0
        %2970 = vmatpush1.msra.mxu0 0.0
        %2971 = vmatprep.subr.mxu0 0.0
        %2972 = vmatpush1.msra.mxu0 0.0
        %2973 = vmatprep.subr.mxu0 0.0
        %2974 = vmatpush1.msra.mxu0 0.0
        %2975 = vmatprep.subr.mxu0 0.0
        %2976 = vmatpush1.msra.mxu0 0.0
        %2977 = vmatprep.subr.mxu0 0.0
        %2978 = vmatpush1.msra.mxu0 0.0
        %2979 = vmatprep.subr.mxu0 0.0
        %2980 = vmatpush1.msra.mxu0 0.0
        %2981 = vmatprep.subr.mxu0 0.0
        %2982 = vmatpush1.msra.mxu0 0.0
        %2983 = vmatprep.subr.mxu0 0.0
        %2984 = vmatpush1.msra.mxu0 0.0
        %2985 = vmatprep.subr.mxu0 0.0
        %2986 = vmatpush1.msra.mxu0 0.0
        %2987 = vmatprep.subr.mxu0 0.0
        %2988 = vmatpush1.msra.mxu0 0.0
        %2989 = vmatprep.subr.mxu0 0.0
        %2990 = vmatpush1.msra.mxu0 0.0
        %2991 = vmatprep.subr.mxu0 0.0
        %2992 = vmatpush1.msra.mxu0 0.0
        %2993 = vmatprep.subr.mxu0 0.0
        %2994 = vmatpush1.msra.mxu0 0.0
        %2995 = vmatprep.mubr.f32.mxu0 0.0
        %2996 = vmatmul.mubr.f32.gmra.mrb[0].mxu0 %v2929
        %v2997 = vpop.f32.mrb[0].mxu0
        %v2998 = vadd.f32 0.0, %v2997
        %v2999 = vpop.f32.mrb[0].mxu0
        %3000 = vdwg.mxu0
        %3001 = vmatprep.subr.mxu0 0.0
        %3002 = vmatpush1.msra.mxu0 %v2879
        %3003 = vmatprep.subr.mxu0 0.0
        %3004 = vmatpush1.msra.mxu0 %v2880
        %3005 = vmatprep.subr.mxu0 0.0
        %3006 = vmatpush1.msra.mxu0 %v2881
        %3007 = vmatprep.subr.mxu0 0.0
        %3008 = vmatpush1.msra.mxu0 %v2882
        %3009 = vmatprep.subr.mxu0 0.0
        %3010 = vmatpush1.msra.mxu0 %v2883
        %3011 = vmatprep.subr.mxu0 0.0
        %3012 = vmatpush1.msra.mxu0 %v2884
        %3013 = vmatprep.subr.mxu0 0.0
        %3014 = vmatpush1.msra.mxu0 %v2885
        %3015 = vmatprep.subr.mxu0 0.0
        %3016 = vmatpush1.msra.mxu0 %v2886
        %3017 = vmatprep.subr.mxu0 0.0
        %3018 = vmatpush1.msra.mxu0 %v2887
        %3019 = vmatprep.subr.mxu0 0.0
        %3020 = vmatpush1.msra.mxu0 %v2888
        %3021 = vmatprep.subr.mxu0 0.0
        %3022 = vmatpush1.msra.mxu0 %v2889
        %3023 = vmatprep.subr.mxu0 0.0
        %3024 = vmatpush1.msra.mxu0 %v2890
        %3025 = vmatprep.subr.mxu0 0.0
        %3026 = vmatpush1.msra.mxu0 %v2891
        %3027 = vmatprep.subr.mxu0 0.0
        %3028 = vmatpush1.msra.mxu0 %v2892
        %3029 = vmatprep.subr.mxu0 0.0
        %3030 = vmatpush1.msra.mxu0 %v2893
        %3031 = vmatprep.subr.mxu0 0.0
        %3032 = vmatpush1.msra.mxu0 %v2894
        %3033 = vmatprep.subr.mxu0 0.0
        %3034 = vmatpush1.msra.mxu0 0.0
        %3035 = vmatprep.subr.mxu0 0.0
        %3036 = vmatpush1.msra.mxu0 0.0
        %3037 = vmatprep.subr.mxu0 0.0
        %3038 = vmatpush1.msra.mxu0 0.0
        %3039 = vmatprep.subr.mxu0 0.0
        %3040 = vmatpush1.msra.mxu0 0.0
        %3041 = vmatprep.subr.mxu0 0.0
        %3042 = vmatpush1.msra.mxu0 0.0
        %3043 = vmatprep.subr.mxu0 0.0
        %3044 = vmatpush1.msra.mxu0 0.0
        %3045 = vmatprep.subr.mxu0 0.0
        %3046 = vmatpush1.msra.mxu0 0.0
        %3047 = vmatprep.subr.mxu0 0.0
        %3048 = vmatpush1.msra.mxu0 0.0
        %3049 = vmatprep.subr.mxu0 0.0
        %3050 = vmatpush1.msra.mxu0 0.0
        %3051 = vmatprep.subr.mxu0 0.0
        %3052 = vmatpush1.msra.mxu0 0.0
        %3053 = vmatprep.subr.mxu0 0.0
        %3054 = vmatpush1.msra.mxu0 0.0
        %3055 = vmatprep.subr.mxu0 0.0
        %3056 = vmatpush1.msra.mxu0 0.0
        %3057 = vmatprep.subr.mxu0 0.0
        %3058 = vmatpush1.msra.mxu0 0.0
        %3059 = vmatprep.subr.mxu0 0.0
        %3060 = vmatpush1.msra.mxu0 0.0
        %3061 = vmatprep.subr.mxu0 0.0
        %3062 = vmatpush1.msra.mxu0 0.0
        %3063 = vmatprep.subr.mxu0 0.0
        %3064 = vmatpush1.msra.mxu0 0.0
        %3065 = vmatprep.mubr.f32.mxu0 0.0
        %3066 = vmatmul.mubr.f32.gmra.mrb[0].mxu0 %v2367
        %v3067 = vpop.f32.mrb[0].mxu0
        %v3068 = vadd.f32 %v2998, %v3067
        %v3069 = vpop.f32.mrb[0].mxu0
        %3070 = vdwg.mxu0
        %s3071 = scalar_lea.vmem %s10, 128
        %v3072 = vld [vmem:[%s3071] sm:$0xff]
        %v3073 = vld [vmem:[%s3071 + $0x8] sm:$0xff]
        %v3074 = vld [vmem:[%s3071 + $0x10] sm:$0xff]
        %v3075 = vld [vmem:[%s3071 + $0x18] sm:$0xff]
        %v3076 = vld [vmem:[%s3071 + $0x20] sm:$0xff]
        %v3077 = vld [vmem:[%s3071 + $0x28] sm:$0xff]
        %v3078 = vld [vmem:[%s3071 + $0x30] sm:$0xff]
        %v3079 = vld [vmem:[%s3071 + $0x38] sm:$0xff]
        %v3080 = vld [vmem:[%s3071 + $0x40] sm:$0xff]
        %v3081 = vld [vmem:[%s3071 + $0x48] sm:$0xff]
        %v3082 = vld [vmem:[%s3071 + $0x50] sm:$0xff]
        %v3083 = vld [vmem:[%s3071 + $0x58] sm:$0xff]
        %v3084 = vld [vmem:[%s3071 + $0x60] sm:$0xff]
        %v3085 = vld [vmem:[%s3071 + $0x68] sm:$0xff]
        %v3086 = vld [vmem:[%s3071 + $0x70] sm:$0xff]
        %v3087 = vld [vmem:[%s3071 + $0x78] sm:$0xff]
        %3088 = vmatprep.subr.mxu0 0.0
        %3089 = vmatpush1.msra.mxu0 %v3072
        %3090 = vmatprep.subr.mxu0 0.0
        %3091 = vmatpush1.msra.mxu0 %v3073
        %3092 = vmatprep.subr.mxu0 0.0
        %3093 = vmatpush1.msra.mxu0 %v3074
        %3094 = vmatprep.subr.mxu0 0.0
        %3095 = vmatpush1.msra.mxu0 %v3075
        %3096 = vmatprep.subr.mxu0 0.0
        %3097 = vmatpush1.msra.mxu0 %v3076
        %3098 = vmatprep.subr.mxu0 0.0
        %3099 = vmatpush1.msra.mxu0 %v3077
        %3100 = vmatprep.subr.mxu0 0.0
        %3101 = vmatpush1.msra.mxu0 %v3078
        %3102 = vmatprep.subr.mxu0 0.0
        %3103 = vmatpush1.msra.mxu0 %v3079
        %3104 = vmatprep.subr.mxu0 0.0
        %3105 = vmatpush1.msra.mxu0 %v3080
        %3106 = vmatprep.subr.mxu0 0.0
        %3107 = vmatpush1.msra.mxu0 %v3081
        %3108 = vmatprep.subr.mxu0 0.0
        %3109 = vmatpush1.msra.mxu0 %v3082
        %3110 = vmatprep.subr.mxu0 0.0
        %3111 = vmatpush1.msra.mxu0 %v3083
        %3112 = vmatprep.subr.mxu0 0.0
        %3113 = vmatpush1.msra.mxu0 %v3084
        %3114 = vmatprep.subr.mxu0 0.0
        %3115 = vmatpush1.msra.mxu0 %v3085
        %3116 = vmatprep.subr.mxu0 0.0
        %3117 = vmatpush1.msra.mxu0 %v3086
        %3118 = vmatprep.subr.mxu0 0.0
        %3119 = vmatpush1.msra.mxu0 %v3087
        %3120 = vmatprep.subr.mxu0 0.0
        %3121 = vmatpush1.msra.mxu0 0.0
        %3122 = vmatprep.subr.mxu0 0.0
        %3123 = vmatpush1.msra.mxu0 0.0
        %3124 = vmatprep.subr.mxu0 0.0
        %3125 = vmatpush1.msra.mxu0 0.0
        %3126 = vmatprep.subr.mxu0 0.0
        %3127 = vmatpush1.msra.mxu0 0.0
        %3128 = vmatprep.subr.mxu0 0.0
        %3129 = vmatpush1.msra.mxu0 0.0
        %3130 = vmatprep.subr.mxu0 0.0
        %3131 = vmatpush1.msra.mxu0 0.0
        %3132 = vmatprep.subr.mxu0 0.0
        %3133 = vmatpush1.msra.mxu0 0.0
        %3134 = vmatprep.subr.mxu0 0.0
        %3135 = vmatpush1.msra.mxu0 0.0
        %3136 = vmatprep.subr.mxu0 0.0
        %3137 = vmatpush1.msra.mxu0 0.0
        %3138 = vmatprep.subr.mxu0 0.0
        %3139 = vmatpush1.msra.mxu0 0.0
        %3140 = vmatprep.subr.mxu0 0.0
        %3141 = vmatpush1.msra.mxu0 0.0
        %3142 = vmatprep.subr.mxu0 0.0
        %3143 = vmatpush1.msra.mxu0 0.0
        %3144 = vmatprep.subr.mxu0 0.0
        %3145 = vmatpush1.msra.mxu0 0.0
        %3146 = vmatprep.subr.mxu0 0.0
        %3147 = vmatpush1.msra.mxu0 0.0
        %3148 = vmatprep.subr.mxu0 0.0
        %3149 = vmatpush1.msra.mxu0 0.0
        %3150 = vmatprep.subr.mxu0 0.0
        %3151 = vmatpush1.msra.mxu0 0.0
        %3152 = vmatprep.mubr.f32.mxu0 0.0
        %3153 = vmatmul.mubr.f32.gmra.mrb[0].mxu0 %v2929
        %v3154 = vpop.f32.mrb[0].mxu0
        %v3155 = vadd.f32 0.0, %v3154
        %v3156 = vpop.f32.mrb[0].mxu0
        %3157 = vdwg.mxu0
        %3158 = vmatprep.subr.mxu0 0.0
        %3159 = vmatpush1.msra.mxu0 %v2895
        %3160 = vmatprep.subr.mxu0 0.0
        %3161 = vmatpush1.msra.mxu0 %v2896
        %3162 = vmatprep.subr.mxu0 0.0
        %3163 = vmatpush1.msra.mxu0 %v2897
        %3164 = vmatprep.subr.mxu0 0.0
        %3165 = vmatpush1.msra.mxu0 %v2898
        %3166 = vmatprep.subr.mxu0 0.0
        %3167 = vmatpush1.msra.mxu0 %v2899
        %3168 = vmatprep.subr.mxu0 0.0
        %3169 = vmatpush1.msra.mxu0 %v2900
        %3170 = vmatprep.subr.mxu0 0.0
        %3171 = vmatpush1.msra.mxu0 %v2901
        %3172 = vmatprep.subr.mxu0 0.0
        %3173 = vmatpush1.msra.mxu0 %v2902
        %3174 = vmatprep.subr.mxu0 0.0
        %3175 = vmatpush1.msra.mxu0 %v2903
        %3176 = vmatprep.subr.mxu0 0.0
        %3177 = vmatpush1.msra.mxu0 %v2904
        %3178 = vmatprep.subr.mxu0 0.0
        %3179 = vmatpush1.msra.mxu0 %v2905
        %3180 = vmatprep.subr.mxu0 0.0
        %3181 = vmatpush1.msra.mxu0 %v2906
        %3182 = vmatprep.subr.mxu0 0.0
        %3183 = vmatpush1.msra.mxu0 %v2907
        %3184 = vmatprep.subr.mxu0 0.0
        %3185 = vmatpush1.msra.mxu0 %v2908
        %3186 = vmatprep.subr.mxu0 0.0
        %3187 = vmatpush1.msra.mxu0 %v2909
        %3188 = vmatprep.subr.mxu0 0.0
        %3189 = vmatpush1.msra.mxu0 %v2910
        %3190 = vmatprep.subr.mxu0 0.0
        %3191 = vmatpush1.msra.mxu0 0.0
        %3192 = vmatprep.subr.mxu0 0.0
        %3193 = vmatpush1.msra.mxu0 0.0
        %3194 = vmatprep.subr.mxu0 0.0
        %3195 = vmatpush1.msra.mxu0 0.0
        %3196 = vmatprep.subr.mxu0 0.0
        %3197 = vmatpush1.msra.mxu0 0.0
        %3198 = vmatprep.subr.mxu0 0.0
        %3199 = vmatpush1.msra.mxu0 0.0
        %3200 = vmatprep.subr.mxu0 0.0
        %3201 = vmatpush1.msra.mxu0 0.0
        %3202 = vmatprep.subr.mxu0 0.0
        %3203 = vmatpush1.msra.mxu0 0.0
        %3204 = vmatprep.subr.mxu0 0.0
        %3205 = vmatpush1.msra.mxu0 0.0
        %3206 = vmatprep.subr.mxu0 0.0
        %3207 = vmatpush1.msra.mxu0 0.0
        %3208 = vmatprep.subr.mxu0 0.0
        %3209 = vmatpush1.msra.mxu0 0.0
        %3210 = vmatprep.subr.mxu0 0.0
        %3211 = vmatpush1.msra.mxu0 0.0
        %3212 = vmatprep.subr.mxu0 0.0
        %3213 = vmatpush1.msra.mxu0 0.0
        %3214 = vmatprep.subr.mxu0 0.0
        %3215 = vmatpush1.msra.mxu0 0.0
        %3216 = vmatprep.subr.mxu0 0.0
        %3217 = vmatpush1.msra.mxu0 0.0
        %3218 = vmatprep.subr.mxu0 0.0
        %3219 = vmatpush1.msra.mxu0 0.0
        %3220 = vmatprep.subr.mxu0 0.0
        %3221 = vmatpush1.msra.mxu0 0.0
        %3222 = vmatprep.mubr.f32.mxu0 0.0
        %3223 = vmatmul.mubr.f32.gmra.mrb[0].mxu0 %v2367
        %v3224 = vpop.f32.mrb[0].mxu0
        %v3225 = vadd.f32 %v3155, %v3224
        %v3226 = vpop.f32.mrb[0].mxu0
        %3227 = vdwg.mxu0
        %s3228 = scalar_lea.vmem %s6, 256
        %v3229 = vld [vmem:[%s3228] sm:$0xff]
        %v3230 = vld [vmem:[%s3228 + $0x8] sm:$0xff]
        %v3231 = vld [vmem:[%s3228 + $0x10] sm:$0xff]
        %v3232 = vld [vmem:[%s3228 + $0x18] sm:$0xff]
        %v3233 = vld [vmem:[%s3228 + $0x20] sm:$0xff]
        %v3234 = vld [vmem:[%s3228 + $0x28] sm:$0xff]
        %v3235 = vld [vmem:[%s3228 + $0x30] sm:$0xff]
        %v3236 = vld [vmem:[%s3228 + $0x38] sm:$0xff]
        %v3237 = vld [vmem:[%s3228 + $0x40] sm:$0xff]
        %v3238 = vld [vmem:[%s3228 + $0x48] sm:$0xff]
        %v3239 = vld [vmem:[%s3228 + $0x50] sm:$0xff]
        %v3240 = vld [vmem:[%s3228 + $0x58] sm:$0xff]
        %v3241 = vld [vmem:[%s3228 + $0x60] sm:$0xff]
        %v3242 = vld [vmem:[%s3228 + $0x68] sm:$0xff]
        %v3243 = vld [vmem:[%s3228 + $0x70] sm:$0xff]
        %v3244 = vld [vmem:[%s3228 + $0x78] sm:$0xff]
        %v3245 = vrot.slane %v2367, 2
        %3247 = vmatprep.subr.mxu0 0.0
        %3248 = vmatpush1.msra.mxu0 %v3229
        %3249 = vmatprep.subr.mxu0 0.0
        %3250 = vmatpush1.msra.mxu0 %v3230
        %3251 = vmatprep.subr.mxu0 0.0
        %3252 = vmatpush1.msra.mxu0 %v3231
        %3253 = vmatprep.subr.mxu0 0.0
        %3254 = vmatpush1.msra.mxu0 %v3232
        %3255 = vmatprep.subr.mxu0 0.0
        %3256 = vmatpush1.msra.mxu0 %v3233
        %3257 = vmatprep.subr.mxu0 0.0
        %3258 = vmatpush1.msra.mxu0 %v3234
        %3259 = vmatprep.subr.mxu0 0.0
        %3260 = vmatpush1.msra.mxu0 %v3235
        %3261 = vmatprep.subr.mxu0 0.0
        %3262 = vmatpush1.msra.mxu0 %v3236
        %3263 = vmatprep.subr.mxu0 0.0
        %3264 = vmatpush1.msra.mxu0 %v3237
        %3265 = vmatprep.subr.mxu0 0.0
        %3266 = vmatpush1.msra.mxu0 %v3238
        %3267 = vmatprep.subr.mxu0 0.0
        %3268 = vmatpush1.msra.mxu0 %v3239
        %3269 = vmatprep.subr.mxu0 0.0
        %3270 = vmatpush1.msra.mxu0 %v3240
        %3271 = vmatprep.subr.mxu0 0.0
        %3272 = vmatpush1.msra.mxu0 %v3241
        %3273 = vmatprep.subr.mxu0 0.0
        %3274 = vmatpush1.msra.mxu0 %v3242
        %3275 = vmatprep.subr.mxu0 0.0
        %3276 = vmatpush1.msra.mxu0 %v3243
        %3277 = vmatprep.subr.mxu0 0.0
        %3278 = vmatpush1.msra.mxu0 %v3244
        %3279 = vmatprep.subr.mxu0 0.0
        %3280 = vmatpush1.msra.mxu0 0.0
        %3281 = vmatprep.subr.mxu0 0.0
        %3282 = vmatpush1.msra.mxu0 0.0
        %3283 = vmatprep.subr.mxu0 0.0
        %3284 = vmatpush1.msra.mxu0 0.0
        %3285 = vmatprep.subr.mxu0 0.0
        %3286 = vmatpush1.msra.mxu0 0.0
        %3287 = vmatprep.subr.mxu0 0.0
        %3288 = vmatpush1.msra.mxu0 0.0
        %3289 = vmatprep.subr.mxu0 0.0
        %3290 = vmatpush1.msra.mxu0 0.0
        %3291 = vmatprep.subr.mxu0 0.0
        %3292 = vmatpush1.msra.mxu0 0.0
        %3293 = vmatprep.subr.mxu0 0.0
        %3294 = vmatpush1.msra.mxu0 0.0
        %3295 = vmatprep.subr.mxu0 0.0
        %3296 = vmatpush1.msra.mxu0 0.0
        %3297 = vmatprep.subr.mxu0 0.0
        %3298 = vmatpush1.msra.mxu0 0.0
        %3299 = vmatprep.subr.mxu0 0.0
        %3300 = vmatpush1.msra.mxu0 0.0
        %3301 = vmatprep.subr.mxu0 0.0
        %3302 = vmatpush1.msra.mxu0 0.0
        %3303 = vmatprep.subr.mxu0 0.0
        %3304 = vmatpush1.msra.mxu0 0.0
        %3305 = vmatprep.subr.mxu0 0.0
        %3306 = vmatpush1.msra.mxu0 0.0
        %3307 = vmatprep.subr.mxu0 0.0
        %3308 = vmatpush1.msra.mxu0 0.0
        %3309 = vmatprep.subr.mxu0 0.0
        %3310 = vmatpush1.msra.mxu0 0.0
        %3311 = vmatprep.mubr.f32.mxu0 0.0
        %3312 = vmatmul.mubr.f32.gmra.mrb[0].mxu0 %v3245
        %v3313 = vpop.f32.mrb[0].mxu0
        %v3314 = vadd.f32 0.0, %v3313
        %v3315 = vpop.f32.mrb[0].mxu0
        %3316 = vdwg.mxu0
        %v3317 = vadd.f32 %v3068, %v3314
        %s3318 = scalar_lea.vmem %s10, 256
        %v3319 = vld [vmem:[%s3318] sm:$0xff]
        %v3320 = vld [vmem:[%s3318 + $0x8] sm:$0xff]
        %v3321 = vld [vmem:[%s3318 + $0x10] sm:$0xff]
        %v3322 = vld [vmem:[%s3318 + $0x18] sm:$0xff]
        %v3323 = vld [vmem:[%s3318 + $0x20] sm:$0xff]
        %v3324 = vld [vmem:[%s3318 + $0x28] sm:$0xff]
        %v3325 = vld [vmem:[%s3318 + $0x30] sm:$0xff]
        %v3326 = vld [vmem:[%s3318 + $0x38] sm:$0xff]
        %v3327 = vld [vmem:[%s3318 + $0x40] sm:$0xff]
        %v3328 = vld [vmem:[%s3318 + $0x48] sm:$0xff]
        %v3329 = vld [vmem:[%s3318 + $0x50] sm:$0xff]
        %v3330 = vld [vmem:[%s3318 + $0x58] sm:$0xff]
        %v3331 = vld [vmem:[%s3318 + $0x60] sm:$0xff]
        %v3332 = vld [vmem:[%s3318 + $0x68] sm:$0xff]
        %v3333 = vld [vmem:[%s3318 + $0x70] sm:$0xff]
        %v3334 = vld [vmem:[%s3318 + $0x78] sm:$0xff]
        %3335 = vmatprep.subr.mxu0 0.0
        %3336 = vmatpush1.msra.mxu0 %v3319
        %3337 = vmatprep.subr.mxu0 0.0
        %3338 = vmatpush1.msra.mxu0 %v3320
        %3339 = vmatprep.subr.mxu0 0.0
        %3340 = vmatpush1.msra.mxu0 %v3321
        %3341 = vmatprep.subr.mxu0 0.0
        %3342 = vmatpush1.msra.mxu0 %v3322
        %3343 = vmatprep.subr.mxu0 0.0
        %3344 = vmatpush1.msra.mxu0 %v3323
        %3345 = vmatprep.subr.mxu0 0.0
        %3346 = vmatpush1.msra.mxu0 %v3324
        %3347 = vmatprep.subr.mxu0 0.0
        %3348 = vmatpush1.msra.mxu0 %v3325
        %3349 = vmatprep.subr.mxu0 0.0
        %3350 = vmatpush1.msra.mxu0 %v3326
        %3351 = vmatprep.subr.mxu0 0.0
        %3352 = vmatpush1.msra.mxu0 %v3327
        %3353 = vmatprep.subr.mxu0 0.0
        %3354 = vmatpush1.msra.mxu0 %v3328
        %3355 = vmatprep.subr.mxu0 0.0
        %3356 = vmatpush1.msra.mxu0 %v3329
        %3357 = vmatprep.subr.mxu0 0.0
        %3358 = vmatpush1.msra.mxu0 %v3330
        %3359 = vmatprep.subr.mxu0 0.0
        %3360 = vmatpush1.msra.mxu0 %v3331
        %3361 = vmatprep.subr.mxu0 0.0
        %3362 = vmatpush1.msra.mxu0 %v3332
        %3363 = vmatprep.subr.mxu0 0.0
        %3364 = vmatpush1.msra.mxu0 %v3333
        %3365 = vmatprep.subr.mxu0 0.0
        %3366 = vmatpush1.msra.mxu0 %v3334
        %3367 = vmatprep.subr.mxu0 0.0
        %3368 = vmatpush1.msra.mxu0 0.0
        %3369 = vmatprep.subr.mxu0 0.0
        %3370 = vmatpush1.msra.mxu0 0.0
        %3371 = vmatprep.subr.mxu0 0.0
        %3372 = vmatpush1.msra.mxu0 0.0
        %3373 = vmatprep.subr.mxu0 0.0
        %3374 = vmatpush1.msra.mxu0 0.0
        %3375 = vmatprep.subr.mxu0 0.0
        %3376 = vmatpush1.msra.mxu0 0.0
        %3377 = vmatprep.subr.mxu0 0.0
        %3378 = vmatpush1.msra.mxu0 0.0
        %3379 = vmatprep.subr.mxu0 0.0
        %3380 = vmatpush1.msra.mxu0 0.0
        %3381 = vmatprep.subr.mxu0 0.0
        %3382 = vmatpush1.msra.mxu0 0.0
        %3383 = vmatprep.subr.mxu0 0.0
        %3384 = vmatpush1.msra.mxu0 0.0
        %3385 = vmatprep.subr.mxu0 0.0
        %3386 = vmatpush1.msra.mxu0 0.0
        %3387 = vmatprep.subr.mxu0 0.0
        %3388 = vmatpush1.msra.mxu0 0.0
        %3389 = vmatprep.subr.mxu0 0.0
        %3390 = vmatpush1.msra.mxu0 0.0
        %3391 = vmatprep.subr.mxu0 0.0
        %3392 = vmatpush1.msra.mxu0 0.0
        %3393 = vmatprep.subr.mxu0 0.0
        %3394 = vmatpush1.msra.mxu0 0.0
        %3395 = vmatprep.subr.mxu0 0.0
        %3396 = vmatpush1.msra.mxu0 0.0
        %3397 = vmatprep.subr.mxu0 0.0
        %3398 = vmatpush1.msra.mxu0 0.0
        %3399 = vmatprep.mubr.f32.mxu0 0.0
        %3400 = vmatmul.mubr.f32.gmra.mrb[0].mxu0 %v3245
        %v3401 = vpop.f32.mrb[0].mxu0
        %v3402 = vadd.f32 0.0, %v3401
        %v3403 = vpop.f32.mrb[0].mxu0
        %3404 = vdwg.mxu0
        %v3405 = vadd.f32 %v3225, %v3402
        %s3406 = scalar_lea.vmem %s6, 384
        %v3407 = vld [vmem:[%s3406] sm:$0xff]
        %v3408 = vld [vmem:[%s3406 + $0x8] sm:$0xff]
        %v3409 = vld [vmem:[%s3406 + $0x10] sm:$0xff]
        %v3410 = vld [vmem:[%s3406 + $0x18] sm:$0xff]
        %v3411 = vld [vmem:[%s3406 + $0x20] sm:$0xff]
        %v3412 = vld [vmem:[%s3406 + $0x28] sm:$0xff]
        %v3413 = vld [vmem:[%s3406 + $0x30] sm:$0xff]
        %v3414 = vld [vmem:[%s3406 + $0x38] sm:$0xff]
        %v3415 = vld [vmem:[%s3406 + $0x40] sm:$0xff]
        %v3416 = vld [vmem:[%s3406 + $0x48] sm:$0xff]
        %v3417 = vld [vmem:[%s3406 + $0x50] sm:$0xff]
        %v3418 = vld [vmem:[%s3406 + $0x58] sm:$0xff]
        %v3419 = vld [vmem:[%s3406 + $0x60] sm:$0xff]
        %v3420 = vld [vmem:[%s3406 + $0x68] sm:$0xff]
        %v3421 = vld [vmem:[%s3406 + $0x70] sm:$0xff]
        %v3422 = vld [vmem:[%s3406 + $0x78] sm:$0xff]
        %v3423 = vrot.slane %v2367, 3
        %3425 = vmatprep.subr.mxu0 0.0
        %3426 = vmatpush1.msra.mxu0 %v3407
        %3427 = vmatprep.subr.mxu0 0.0
        %3428 = vmatpush1.msra.mxu0 %v3408
        %3429 = vmatprep.subr.mxu0 0.0
        %3430 = vmatpush1.msra.mxu0 %v3409
        %3431 = vmatprep.subr.mxu0 0.0
        %3432 = vmatpush1.msra.mxu0 %v3410
        %3433 = vmatprep.subr.mxu0 0.0
        %3434 = vmatpush1.msra.mxu0 %v3411
        %3435 = vmatprep.subr.mxu0 0.0
        %3436 = vmatpush1.msra.mxu0 %v3412
        %3437 = vmatprep.subr.mxu0 0.0
        %3438 = vmatpush1.msra.mxu0 %v3413
        %3439 = vmatprep.subr.mxu0 0.0
        %3440 = vmatpush1.msra.mxu0 %v3414
        %3441 = vmatprep.subr.mxu0 0.0
        %3442 = vmatpush1.msra.mxu0 %v3415
        %3443 = vmatprep.subr.mxu0 0.0
        %3444 = vmatpush1.msra.mxu0 %v3416
        %3445 = vmatprep.subr.mxu0 0.0
        %3446 = vmatpush1.msra.mxu0 %v3417
        %3447 = vmatprep.subr.mxu0 0.0
        %3448 = vmatpush1.msra.mxu0 %v3418
        %3449 = vmatprep.subr.mxu0 0.0
        %3450 = vmatpush1.msra.mxu0 %v3419
        %3451 = vmatprep.subr.mxu0 0.0
        %3452 = vmatpush1.msra.mxu0 %v3420
        %3453 = vmatprep.subr.mxu0 0.0
        %3454 = vmatpush1.msra.mxu0 %v3421
        %3455 = vmatprep.subr.mxu0 0.0
        %3456 = vmatpush1.msra.mxu0 %v3422
        %3457 = vmatprep.subr.mxu0 0.0
        %3458 = vmatpush1.msra.mxu0 0.0
        %3459 = vmatprep.subr.mxu0 0.0
        %3460 = vmatpush1.msra.mxu0 0.0
        %3461 = vmatprep.subr.mxu0 0.0
        %3462 = vmatpush1.msra.mxu0 0.0
        %3463 = vmatprep.subr.mxu0 0.0
        %3464 = vmatpush1.msra.mxu0 0.0
        %3465 = vmatprep.subr.mxu0 0.0
        %3466 = vmatpush1.msra.mxu0 0.0
        %3467 = vmatprep.subr.mxu0 0.0
        %3468 = vmatpush1.msra.mxu0 0.0
        %3469 = vmatprep.subr.mxu0 0.0
        %3470 = vmatpush1.msra.mxu0 0.0
        %3471 = vmatprep.subr.mxu0 0.0
        %3472 = vmatpush1.msra.mxu0 0.0
        %3473 = vmatprep.subr.mxu0 0.0
        %3474 = vmatpush1.msra.mxu0 0.0
        %3475 = vmatprep.subr.mxu0 0.0
        %3476 = vmatpush1.msra.mxu0 0.0
        %3477 = vmatprep.subr.mxu0 0.0
        %3478 = vmatpush1.msra.mxu0 0.0
        %3479 = vmatprep.subr.mxu0 0.0
        %3480 = vmatpush1.msra.mxu0 0.0
        %3481 = vmatprep.subr.mxu0 0.0
        %3482 = vmatpush1.msra.mxu0 0.0
        %3483 = vmatprep.subr.mxu0 0.0
        %3484 = vmatpush1.msra.mxu0 0.0
        %3485 = vmatprep.subr.mxu0 0.0
        %3486 = vmatpush1.msra.mxu0 0.0
        %3487 = vmatprep.subr.mxu0 0.0
        %3488 = vmatpush1.msra.mxu0 0.0
        %3489 = vmatprep.mubr.f32.mxu0 0.0
        %3490 = vmatmul.mubr.f32.gmra.mrb[0].mxu0 %v3423
        %v3491 = vpop.f32.mrb[0].mxu0
        %v3492 = vadd.f32 0.0, %v3491
        %v3493 = vpop.f32.mrb[0].mxu0
        %3494 = vdwg.mxu0
        %v3495 = vadd.f32 %v3317, %v3492
        %s3496 = scalar_lea.vmem %s10, 384
        %v3497 = vld [vmem:[%s3496] sm:$0xff]
        %v3498 = vld [vmem:[%s3496 + $0x8] sm:$0xff]
        %v3499 = vld [vmem:[%s3496 + $0x10] sm:$0xff]
        %v3500 = vld [vmem:[%s3496 + $0x18] sm:$0xff]
        %v3501 = vld [vmem:[%s3496 + $0x20] sm:$0xff]
        %v3502 = vld [vmem:[%s3496 + $0x28] sm:$0xff]
        %v3503 = vld [vmem:[%s3496 + $0x30] sm:$0xff]
        %v3504 = vld [vmem:[%s3496 + $0x38] sm:$0xff]
        %v3505 = vld [vmem:[%s3496 + $0x40] sm:$0xff]
        %v3506 = vld [vmem:[%s3496 + $0x48] sm:$0xff]
        %v3507 = vld [vmem:[%s3496 + $0x50] sm:$0xff]
        %v3508 = vld [vmem:[%s3496 + $0x58] sm:$0xff]
        %v3509 = vld [vmem:[%s3496 + $0x60] sm:$0xff]
        %v3510 = vld [vmem:[%s3496 + $0x68] sm:$0xff]
        %v3511 = vld [vmem:[%s3496 + $0x70] sm:$0xff]
        %v3512 = vld [vmem:[%s3496 + $0x78] sm:$0xff]
        %3513 = vmatprep.subr.mxu0 0.0
        %3514 = vmatpush1.msra.mxu0 %v3497
        %3515 = vmatprep.subr.mxu0 0.0
        %3516 = vmatpush1.msra.mxu0 %v3498
        %3517 = vmatprep.subr.mxu0 0.0
        %3518 = vmatpush1.msra.mxu0 %v3499
        %3519 = vmatprep.subr.mxu0 0.0
        %3520 = vmatpush1.msra.mxu0 %v3500
        %3521 = vmatprep.subr.mxu0 0.0
        %3522 = vmatpush1.msra.mxu0 %v3501
        %3523 = vmatprep.subr.mxu0 0.0
        %3524 = vmatpush1.msra.mxu0 %v3502
        %3525 = vmatprep.subr.mxu0 0.0
        %3526 = vmatpush1.msra.mxu0 %v3503
        %3527 = vmatprep.subr.mxu0 0.0
        %3528 = vmatpush1.msra.mxu0 %v3504
        %3529 = vmatprep.subr.mxu0 0.0
        %3530 = vmatpush1.msra.mxu0 %v3505
        %3531 = vmatprep.subr.mxu0 0.0
        %3532 = vmatpush1.msra.mxu0 %v3506
        %3533 = vmatprep.subr.mxu0 0.0
        %3534 = vmatpush1.msra.mxu0 %v3507
        %3535 = vmatprep.subr.mxu0 0.0
        %3536 = vmatpush1.msra.mxu0 %v3508
        %3537 = vmatprep.subr.mxu0 0.0
        %3538 = vmatpush1.msra.mxu0 %v3509
        %3539 = vmatprep.subr.mxu0 0.0
        %3540 = vmatpush1.msra.mxu0 %v3510
        %3541 = vmatprep.subr.mxu0 0.0
        %3542 = vmatpush1.msra.mxu0 %v3511
        %3543 = vmatprep.subr.mxu0 0.0
        %3544 = vmatpush1.msra.mxu0 %v3512
        %3545 = vmatprep.subr.mxu0 0.0
        %3546 = vmatpush1.msra.mxu0 0.0
        %3547 = vmatprep.subr.mxu0 0.0
        %3548 = vmatpush1.msra.mxu0 0.0
        %3549 = vmatprep.subr.mxu0 0.0
        %3550 = vmatpush1.msra.mxu0 0.0
        %3551 = vmatprep.subr.mxu0 0.0
        %3552 = vmatpush1.msra.mxu0 0.0
        %3553 = vmatprep.subr.mxu0 0.0
        %3554 = vmatpush1.msra.mxu0 0.0
        %3555 = vmatprep.subr.mxu0 0.0
        %3556 = vmatpush1.msra.mxu0 0.0
        %3557 = vmatprep.subr.mxu0 0.0
        %3558 = vmatpush1.msra.mxu0 0.0
        %3559 = vmatprep.subr.mxu0 0.0
        %3560 = vmatpush1.msra.mxu0 0.0
        %3561 = vmatprep.subr.mxu0 0.0
        %3562 = vmatpush1.msra.mxu0 0.0
        %3563 = vmatprep.subr.mxu0 0.0
        %3564 = vmatpush1.msra.mxu0 0.0
        %3565 = vmatprep.subr.mxu0 0.0
        %3566 = vmatpush1.msra.mxu0 0.0
        %3567 = vmatprep.subr.mxu0 0.0
        %3568 = vmatpush1.msra.mxu0 0.0
        %3569 = vmatprep.subr.mxu0 0.0
        %3570 = vmatpush1.msra.mxu0 0.0
        %3571 = vmatprep.subr.mxu0 0.0
        %3572 = vmatpush1.msra.mxu0 0.0
        %3573 = vmatprep.subr.mxu0 0.0
        %3574 = vmatpush1.msra.mxu0 0.0
        %3575 = vmatprep.subr.mxu0 0.0
        %3576 = vmatpush1.msra.mxu0 0.0
        %3577 = vmatprep.mubr.f32.mxu0 0.0
        %3578 = vmatmul.mubr.f32.gmra.mrb[0].mxu0 %v3423
        %v3579 = vpop.f32.mrb[0].mxu0
        %v3580 = vadd.f32 0.0, %v3579
        %v3581 = vpop.f32.mrb[0].mxu0
        %3582 = vdwg.mxu0
        %v3583 = vadd.f32 %v3405, %v3580
        %s3584 = scalar_lea.vmem %s6, 512
        %v3585 = vld [vmem:[%s3584] sm:$0xff]
        %v3586 = vld [vmem:[%s3584 + $0x8] sm:$0xff]
        %v3587 = vld [vmem:[%s3584 + $0x10] sm:$0xff]
        %v3588 = vld [vmem:[%s3584 + $0x18] sm:$0xff]
        %v3589 = vld [vmem:[%s3584 + $0x20] sm:$0xff]
        %v3590 = vld [vmem:[%s3584 + $0x28] sm:$0xff]
        %v3591 = vld [vmem:[%s3584 + $0x30] sm:$0xff]
        %v3592 = vld [vmem:[%s3584 + $0x38] sm:$0xff]
        %v3593 = vld [vmem:[%s3584 + $0x40] sm:$0xff]
        %v3594 = vld [vmem:[%s3584 + $0x48] sm:$0xff]
        %v3595 = vld [vmem:[%s3584 + $0x50] sm:$0xff]
        %v3596 = vld [vmem:[%s3584 + $0x58] sm:$0xff]
        %v3597 = vld [vmem:[%s3584 + $0x60] sm:$0xff]
        %v3598 = vld [vmem:[%s3584 + $0x68] sm:$0xff]
        %v3599 = vld [vmem:[%s3584 + $0x70] sm:$0xff]
        %v3600 = vld [vmem:[%s3584 + $0x78] sm:$0xff]
        %v3601 = vrot.slane %v2367, 4
        %3603 = vmatprep.subr.mxu0 0.0
        %3604 = vmatpush1.msra.mxu0 %v3585
        %3605 = vmatprep.subr.mxu0 0.0
        %3606 = vmatpush1.msra.mxu0 %v3586
        %3607 = vmatprep.subr.mxu0 0.0
        %3608 = vmatpush1.msra.mxu0 %v3587
        %3609 = vmatprep.subr.mxu0 0.0
        %3610 = vmatpush1.msra.mxu0 %v3588
        %3611 = vmatprep.subr.mxu0 0.0
        %3612 = vmatpush1.msra.mxu0 %v3589
        %3613 = vmatprep.subr.mxu0 0.0
        %3614 = vmatpush1.msra.mxu0 %v3590
        %3615 = vmatprep.subr.mxu0 0.0
        %3616 = vmatpush1.msra.mxu0 %v3591
        %3617 = vmatprep.subr.mxu0 0.0
        %3618 = vmatpush1.msra.mxu0 %v3592
        %3619 = vmatprep.subr.mxu0 0.0
        %3620 = vmatpush1.msra.mxu0 %v3593
        %3621 = vmatprep.subr.mxu0 0.0
        %3622 = vmatpush1.msra.mxu0 %v3594
        %3623 = vmatprep.subr.mxu0 0.0
        %3624 = vmatpush1.msra.mxu0 %v3595
        %3625 = vmatprep.subr.mxu0 0.0
        %3626 = vmatpush1.msra.mxu0 %v3596
        %3627 = vmatprep.subr.mxu0 0.0
        %3628 = vmatpush1.msra.mxu0 %v3597
        %3629 = vmatprep.subr.mxu0 0.0
        %3630 = vmatpush1.msra.mxu0 %v3598
        %3631 = vmatprep.subr.mxu0 0.0
        %3632 = vmatpush1.msra.mxu0 %v3599
        %3633 = vmatprep.subr.mxu0 0.0
        %3634 = vmatpush1.msra.mxu0 %v3600
        %3635 = vmatprep.subr.mxu0 0.0
        %3636 = vmatpush1.msra.mxu0 0.0
        %3637 = vmatprep.subr.mxu0 0.0
        %3638 = vmatpush1.msra.mxu0 0.0
        %3639 = vmatprep.subr.mxu0 0.0
        %3640 = vmatpush1.msra.mxu0 0.0
        %3641 = vmatprep.subr.mxu0 0.0
        %3642 = vmatpush1.msra.mxu0 0.0
        %3643 = vmatprep.subr.mxu0 0.0
        %3644 = vmatpush1.msra.mxu0 0.0
        %3645 = vmatprep.subr.mxu0 0.0
        %3646 = vmatpush1.msra.mxu0 0.0
        %3647 = vmatprep.subr.mxu0 0.0
        %3648 = vmatpush1.msra.mxu0 0.0
        %3649 = vmatprep.subr.mxu0 0.0
        %3650 = vmatpush1.msra.mxu0 0.0
        %3651 = vmatprep.subr.mxu0 0.0
        %3652 = vmatpush1.msra.mxu0 0.0
        %3653 = vmatprep.subr.mxu0 0.0
        %3654 = vmatpush1.msra.mxu0 0.0
        %3655 = vmatprep.subr.mxu0 0.0
        %3656 = vmatpush1.msra.mxu0 0.0
        %3657 = vmatprep.subr.mxu0 0.0
        %3658 = vmatpush1.msra.mxu0 0.0
        %3659 = vmatprep.subr.mxu0 0.0
        %3660 = vmatpush1.msra.mxu0 0.0
        %3661 = vmatprep.subr.mxu0 0.0
        %3662 = vmatpush1.msra.mxu0 0.0
        %3663 = vmatprep.subr.mxu0 0.0
        %3664 = vmatpush1.msra.mxu0 0.0
        %3665 = vmatprep.subr.mxu0 0.0
        %3666 = vmatpush1.msra.mxu0 0.0
        %3667 = vmatprep.mubr.f32.mxu0 0.0
        %3668 = vmatmul.mubr.f32.gmra.mrb[0].mxu0 %v3601
        %v3669 = vpop.f32.mrb[0].mxu0
        %v3670 = vadd.f32 0.0, %v3669
        %v3671 = vpop.f32.mrb[0].mxu0
        %3672 = vdwg.mxu0
        %v3673 = vadd.f32 %v3495, %v3670
        %s3674 = scalar_lea.vmem %s10, 512
        %v3675 = vld [vmem:[%s3674] sm:$0xff]
        %v3676 = vld [vmem:[%s3674 + $0x8] sm:$0xff]
        %v3677 = vld [vmem:[%s3674 + $0x10] sm:$0xff]
        %v3678 = vld [vmem:[%s3674 + $0x18] sm:$0xff]
        %v3679 = vld [vmem:[%s3674 + $0x20] sm:$0xff]
        %v3680 = vld [vmem:[%s3674 + $0x28] sm:$0xff]
        %v3681 = vld [vmem:[%s3674 + $0x30] sm:$0xff]
        %v3682 = vld [vmem:[%s3674 + $0x38] sm:$0xff]
        %v3683 = vld [vmem:[%s3674 + $0x40] sm:$0xff]
        %v3684 = vld [vmem:[%s3674 + $0x48] sm:$0xff]
        %v3685 = vld [vmem:[%s3674 + $0x50] sm:$0xff]
        %v3686 = vld [vmem:[%s3674 + $0x58] sm:$0xff]
        %v3687 = vld [vmem:[%s3674 + $0x60] sm:$0xff]
        %v3688 = vld [vmem:[%s3674 + $0x68] sm:$0xff]
        %v3689 = vld [vmem:[%s3674 + $0x70] sm:$0xff]
        %v3690 = vld [vmem:[%s3674 + $0x78] sm:$0xff]
        %3691 = vmatprep.subr.mxu0 0.0
        %3692 = vmatpush1.msra.mxu0 %v3675
        %3693 = vmatprep.subr.mxu0 0.0
        %3694 = vmatpush1.msra.mxu0 %v3676
        %3695 = vmatprep.subr.mxu0 0.0
        %3696 = vmatpush1.msra.mxu0 %v3677
        %3697 = vmatprep.subr.mxu0 0.0
        %3698 = vmatpush1.msra.mxu0 %v3678
        %3699 = vmatprep.subr.mxu0 0.0
        %3700 = vmatpush1.msra.mxu0 %v3679
        %3701 = vmatprep.subr.mxu0 0.0
        %3702 = vmatpush1.msra.mxu0 %v3680
        %3703 = vmatprep.subr.mxu0 0.0
        %3704 = vmatpush1.msra.mxu0 %v3681
        %3705 = vmatprep.subr.mxu0 0.0
        %3706 = vmatpush1.msra.mxu0 %v3682
        %3707 = vmatprep.subr.mxu0 0.0
        %3708 = vmatpush1.msra.mxu0 %v3683
        %3709 = vmatprep.subr.mxu0 0.0
        %3710 = vmatpush1.msra.mxu0 %v3684
        %3711 = vmatprep.subr.mxu0 0.0
        %3712 = vmatpush1.msra.mxu0 %v3685
        %3713 = vmatprep.subr.mxu0 0.0
        %3714 = vmatpush1.msra.mxu0 %v3686
        %3715 = vmatprep.subr.mxu0 0.0
        %3716 = vmatpush1.msra.mxu0 %v3687
        %3717 = vmatprep.subr.mxu0 0.0
        %3718 = vmatpush1.msra.mxu0 %v3688
        %3719 = vmatprep.subr.mxu0 0.0
        %3720 = vmatpush1.msra.mxu0 %v3689
        %3721 = vmatprep.subr.mxu0 0.0
        %3722 = vmatpush1.msra.mxu0 %v3690
        %3723 = vmatprep.subr.mxu0 0.0
        %3724 = vmatpush1.msra.mxu0 0.0
        %3725 = vmatprep.subr.mxu0 0.0
        %3726 = vmatpush1.msra.mxu0 0.0
        %3727 = vmatprep.subr.mxu0 0.0
        %3728 = vmatpush1.msra.mxu0 0.0
        %3729 = vmatprep.subr.mxu0 0.0
        %3730 = vmatpush1.msra.mxu0 0.0
        %3731 = vmatprep.subr.mxu0 0.0
        %3732 = vmatpush1.msra.mxu0 0.0
        %3733 = vmatprep.subr.mxu0 0.0
        %3734 = vmatpush1.msra.mxu0 0.0
        %3735 = vmatprep.subr.mxu0 0.0
        %3736 = vmatpush1.msra.mxu0 0.0
        %3737 = vmatprep.subr.mxu0 0.0
        %3738 = vmatpush1.msra.mxu0 0.0
        %3739 = vmatprep.subr.mxu0 0.0
        %3740 = vmatpush1.msra.mxu0 0.0
        %3741 = vmatprep.subr.mxu0 0.0
        %3742 = vmatpush1.msra.mxu0 0.0
        %3743 = vmatprep.subr.mxu0 0.0
        %3744 = vmatpush1.msra.mxu0 0.0
        %3745 = vmatprep.subr.mxu0 0.0
        %3746 = vmatpush1.msra.mxu0 0.0
        %3747 = vmatprep.subr.mxu0 0.0
        %3748 = vmatpush1.msra.mxu0 0.0
        %3749 = vmatprep.subr.mxu0 0.0
        %3750 = vmatpush1.msra.mxu0 0.0
        %3751 = vmatprep.subr.mxu0 0.0
        %3752 = vmatpush1.msra.mxu0 0.0
        %3753 = vmatprep.subr.mxu0 0.0
        %3754 = vmatpush1.msra.mxu0 0.0
        %3755 = vmatprep.mubr.f32.mxu0 0.0
        %3756 = vmatmul.mubr.f32.gmra.mrb[0].mxu0 %v3601
        %v3757 = vpop.f32.mrb[0].mxu0
        %v3758 = vadd.f32 0.0, %v3757
        %v3759 = vpop.f32.mrb[0].mxu0
        %3760 = vdwg.mxu0
        %v3761 = vadd.f32 %v3583, %v3758
        %s3762 = scalar_lea.vmem %s6, 640
        %v3763 = vld [vmem:[%s3762] sm:$0xff]
        %v3764 = vld [vmem:[%s3762 + $0x8] sm:$0xff]
        %v3765 = vld [vmem:[%s3762 + $0x10] sm:$0xff]
        %v3766 = vld [vmem:[%s3762 + $0x18] sm:$0xff]
        %v3767 = vld [vmem:[%s3762 + $0x20] sm:$0xff]
        %v3768 = vld [vmem:[%s3762 + $0x28] sm:$0xff]
        %v3769 = vld [vmem:[%s3762 + $0x30] sm:$0xff]
        %v3770 = vld [vmem:[%s3762 + $0x38] sm:$0xff]
        %v3771 = vld [vmem:[%s3762 + $0x40] sm:$0xff]
        %v3772 = vld [vmem:[%s3762 + $0x48] sm:$0xff]
        %v3773 = vld [vmem:[%s3762 + $0x50] sm:$0xff]
        %v3774 = vld [vmem:[%s3762 + $0x58] sm:$0xff]
        %v3775 = vld [vmem:[%s3762 + $0x60] sm:$0xff]
        %v3776 = vld [vmem:[%s3762 + $0x68] sm:$0xff]
        %v3777 = vld [vmem:[%s3762 + $0x70] sm:$0xff]
        %v3778 = vld [vmem:[%s3762 + $0x78] sm:$0xff]
        %v3779 = vrot.slane %v2367, 5
        %3781 = vmatprep.subr.mxu0 0.0
        %3782 = vmatpush1.msra.mxu0 %v3763
        %3783 = vmatprep.subr.mxu0 0.0
        %3784 = vmatpush1.msra.mxu0 %v3764
        %3785 = vmatprep.subr.mxu0 0.0
        %3786 = vmatpush1.msra.mxu0 %v3765
        %3787 = vmatprep.subr.mxu0 0.0
        %3788 = vmatpush1.msra.mxu0 %v3766
        %3789 = vmatprep.subr.mxu0 0.0
        %3790 = vmatpush1.msra.mxu0 %v3767
        %3791 = vmatprep.subr.mxu0 0.0
        %3792 = vmatpush1.msra.mxu0 %v3768
        %3793 = vmatprep.subr.mxu0 0.0
        %3794 = vmatpush1.msra.mxu0 %v3769
        %3795 = vmatprep.subr.mxu0 0.0
        %3796 = vmatpush1.msra.mxu0 %v3770
        %3797 = vmatprep.subr.mxu0 0.0
        %3798 = vmatpush1.msra.mxu0 %v3771
        %3799 = vmatprep.subr.mxu0 0.0
        %3800 = vmatpush1.msra.mxu0 %v3772
        %3801 = vmatprep.subr.mxu0 0.0
        %3802 = vmatpush1.msra.mxu0 %v3773
        %3803 = vmatprep.subr.mxu0 0.0
        %3804 = vmatpush1.msra.mxu0 %v3774
        %3805 = vmatprep.subr.mxu0 0.0
        %3806 = vmatpush1.msra.mxu0 %v3775
        %3807 = vmatprep.subr.mxu0 0.0
        %3808 = vmatpush1.msra.mxu0 %v3776
        %3809 = vmatprep.subr.mxu0 0.0
        %3810 = vmatpush1.msra.mxu0 %v3777
        %3811 = vmatprep.subr.mxu0 0.0
        %3812 = vmatpush1.msra.mxu0 %v3778
        %3813 = vmatprep.subr.mxu0 0.0
        %3814 = vmatpush1.msra.mxu0 0.0
        %3815 = vmatprep.subr.mxu0 0.0
        %3816 = vmatpush1.msra.mxu0 0.0
        %3817 = vmatprep.subr.mxu0 0.0
        %3818 = vmatpush1.msra.mxu0 0.0
        %3819 = vmatprep.subr.mxu0 0.0
        %3820 = vmatpush1.msra.mxu0 0.0
        %3821 = vmatprep.subr.mxu0 0.0
        %3822 = vmatpush1.msra.mxu0 0.0
        %3823 = vmatprep.subr.mxu0 0.0
        %3824 = vmatpush1.msra.mxu0 0.0
        %3825 = vmatprep.subr.mxu0 0.0
        %3826 = vmatpush1.msra.mxu0 0.0
        %3827 = vmatprep.subr.mxu0 0.0
        %3828 = vmatpush1.msra.mxu0 0.0
        %3829 = vmatprep.subr.mxu0 0.0
        %3830 = vmatpush1.msra.mxu0 0.0
        %3831 = vmatprep.subr.mxu0 0.0
        %3832 = vmatpush1.msra.mxu0 0.0
        %3833 = vmatprep.subr.mxu0 0.0
        %3834 = vmatpush1.msra.mxu0 0.0
        %3835 = vmatprep.subr.mxu0 0.0
        %3836 = vmatpush1.msra.mxu0 0.0
        %3837 = vmatprep.subr.mxu0 0.0
        %3838 = vmatpush1.msra.mxu0 0.0
        %3839 = vmatprep.subr.mxu0 0.0
        %3840 = vmatpush1.msra.mxu0 0.0
        %3841 = vmatprep.subr.mxu0 0.0
        %3842 = vmatpush1.msra.mxu0 0.0
        %3843 = vmatprep.subr.mxu0 0.0
        %3844 = vmatpush1.msra.mxu0 0.0
        %3845 = vmatprep.mubr.f32.mxu0 0.0
        %3846 = vmatmul.mubr.f32.gmra.mrb[0].mxu0 %v3779
        %v3847 = vpop.f32.mrb[0].mxu0
        %v3848 = vadd.f32 0.0, %v3847
        %v3849 = vpop.f32.mrb[0].mxu0
        %3850 = vdwg.mxu0
        %v3851 = vadd.f32 %v3673, %v3848
        %s3852 = scalar_lea.vmem %s10, 640
        %v3853 = vld [vmem:[%s3852] sm:$0xff]
        %v3854 = vld [vmem:[%s3852 + $0x8] sm:$0xff]
        %v3855 = vld [vmem:[%s3852 + $0x10] sm:$0xff]
        %v3856 = vld [vmem:[%s3852 + $0x18] sm:$0xff]
        %v3857 = vld [vmem:[%s3852 + $0x20] sm:$0xff]
        %v3858 = vld [vmem:[%s3852 + $0x28] sm:$0xff]
        %v3859 = vld [vmem:[%s3852 + $0x30] sm:$0xff]
        %v3860 = vld [vmem:[%s3852 + $0x38] sm:$0xff]
        %v3861 = vld [vmem:[%s3852 + $0x40] sm:$0xff]
        %v3862 = vld [vmem:[%s3852 + $0x48] sm:$0xff]
        %v3863 = vld [vmem:[%s3852 + $0x50] sm:$0xff]
        %v3864 = vld [vmem:[%s3852 + $0x58] sm:$0xff]
        %v3865 = vld [vmem:[%s3852 + $0x60] sm:$0xff]
        %v3866 = vld [vmem:[%s3852 + $0x68] sm:$0xff]
        %v3867 = vld [vmem:[%s3852 + $0x70] sm:$0xff]
        %v3868 = vld [vmem:[%s3852 + $0x78] sm:$0xff]
        %3869 = vmatprep.subr.mxu0 0.0
        %3870 = vmatpush1.msra.mxu0 %v3853
        %3871 = vmatprep.subr.mxu0 0.0
        %3872 = vmatpush1.msra.mxu0 %v3854
        %3873 = vmatprep.subr.mxu0 0.0
        %3874 = vmatpush1.msra.mxu0 %v3855
        %3875 = vmatprep.subr.mxu0 0.0
        %3876 = vmatpush1.msra.mxu0 %v3856
        %3877 = vmatprep.subr.mxu0 0.0
        %3878 = vmatpush1.msra.mxu0 %v3857
        %3879 = vmatprep.subr.mxu0 0.0
        %3880 = vmatpush1.msra.mxu0 %v3858
        %3881 = vmatprep.subr.mxu0 0.0
        %3882 = vmatpush1.msra.mxu0 %v3859
        %3883 = vmatprep.subr.mxu0 0.0
        %3884 = vmatpush1.msra.mxu0 %v3860
        %3885 = vmatprep.subr.mxu0 0.0
        %3886 = vmatpush1.msra.mxu0 %v3861
        %3887 = vmatprep.subr.mxu0 0.0
        %3888 = vmatpush1.msra.mxu0 %v3862
        %3889 = vmatprep.subr.mxu0 0.0
        %3890 = vmatpush1.msra.mxu0 %v3863
        %3891 = vmatprep.subr.mxu0 0.0
        %3892 = vmatpush1.msra.mxu0 %v3864
        %3893 = vmatprep.subr.mxu0 0.0
        %3894 = vmatpush1.msra.mxu0 %v3865
        %3895 = vmatprep.subr.mxu0 0.0
        %3896 = vmatpush1.msra.mxu0 %v3866
        %3897 = vmatprep.subr.mxu0 0.0
        %3898 = vmatpush1.msra.mxu0 %v3867
        %3899 = vmatprep.subr.mxu0 0.0
        %3900 = vmatpush1.msra.mxu0 %v3868
        %3901 = vmatprep.subr.mxu0 0.0
        %3902 = vmatpush1.msra.mxu0 0.0
        %3903 = vmatprep.subr.mxu0 0.0
        %3904 = vmatpush1.msra.mxu0 0.0
        %3905 = vmatprep.subr.mxu0 0.0
        %3906 = vmatpush1.msra.mxu0 0.0
        %3907 = vmatprep.subr.mxu0 0.0
        %3908 = vmatpush1.msra.mxu0 0.0
        %3909 = vmatprep.subr.mxu0 0.0
        %3910 = vmatpush1.msra.mxu0 0.0
        %3911 = vmatprep.subr.mxu0 0.0
        %3912 = vmatpush1.msra.mxu0 0.0
        %3913 = vmatprep.subr.mxu0 0.0
        %3914 = vmatpush1.msra.mxu0 0.0
        %3915 = vmatprep.subr.mxu0 0.0
        %3916 = vmatpush1.msra.mxu0 0.0
        %3917 = vmatprep.subr.mxu0 0.0
        %3918 = vmatpush1.msra.mxu0 0.0
        %3919 = vmatprep.subr.mxu0 0.0
        %3920 = vmatpush1.msra.mxu0 0.0
        %3921 = vmatprep.subr.mxu0 0.0
        %3922 = vmatpush1.msra.mxu0 0.0
        %3923 = vmatprep.subr.mxu0 0.0
        %3924 = vmatpush1.msra.mxu0 0.0
        %3925 = vmatprep.subr.mxu0 0.0
        %3926 = vmatpush1.msra.mxu0 0.0
        %3927 = vmatprep.subr.mxu0 0.0
        %3928 = vmatpush1.msra.mxu0 0.0
        %3929 = vmatprep.subr.mxu0 0.0
        %3930 = vmatpush1.msra.mxu0 0.0
        %3931 = vmatprep.subr.mxu0 0.0
        %3932 = vmatpush1.msra.mxu0 0.0
        %3933 = vmatprep.mubr.f32.mxu0 0.0
        %3934 = vmatmul.mubr.f32.gmra.mrb[0].mxu0 %v3779
        %v3935 = vpop.f32.mrb[0].mxu0
        %v3936 = vadd.f32 0.0, %v3935
        %v3937 = vpop.f32.mrb[0].mxu0
        %3938 = vdwg.mxu0
        %v3939 = vadd.f32 %v3761, %v3936
        %v3940 = vld [vmem:[%s7] sm:$0x1]
        %v3941 = vadd.f32 %v3851, %v3940
        %v3942 = vmax.f32 %v3941, 0.0
        %v3943 = vld [vmem:[%s8] sm:$0xff]
        %v3944 = vld [vmem:[%s8 + $0x8] sm:$0xff]
        %v3945 = vld [vmem:[%s8 + $0x10] sm:$0xf]
        %v3946 = vld [vmem:[%s9] sm:$0x1]
        %vm3947 = vcmask 162816
        %v3949 = vsel %vm3947, %v3942, 0
        %vm3951 = vcmask 1043456
        %v3953 = vsel %vm3951, %v3945, 0
        %3955 = vmatprep.subr.mxu0 0.0
        %3956 = vmatpush1.msra.mxu0 %v3943
        %3957 = vmatprep.subr.mxu0 0.0
        %3958 = vmatpush1.msra.mxu0 %v3944
        %3959 = vmatprep.subr.mxu0 0.0
        %3960 = vmatpush1.msra.mxu0 %v3953
        %3961 = vmatprep.subr.mxu0 0.0
        %3962 = vmatpush1.msra.mxu0 0.0
        %3963 = vmatprep.subr.mxu0 0.0
        %3964 = vmatpush1.msra.mxu0 0.0
        %3965 = vmatprep.subr.mxu0 0.0
        %3966 = vmatpush1.msra.mxu0 0.0
        %3967 = vmatprep.subr.mxu0 0.0
        %3968 = vmatpush1.msra.mxu0 0.0
        %3969 = vmatprep.subr.mxu0 0.0
        %3970 = vmatpush1.msra.mxu0 0.0
        %3971 = vmatprep.subr.mxu0 0.0
        %3972 = vmatpush1.msra.mxu0 0.0
        %3973 = vmatprep.subr.mxu0 0.0
        %3974 = vmatpush1.msra.mxu0 0.0
        %3975 = vmatprep.subr.mxu0 0.0
        %3976 = vmatpush1.msra.mxu0 0.0
        %3977 = vmatprep.subr.mxu0 0.0
        %3978 = vmatpush1.msra.mxu0 0.0
        %3979 = vmatprep.subr.mxu0 0.0
        %3980 = vmatpush1.msra.mxu0 0.0
        %3981 = vmatprep.subr.mxu0 0.0
        %3982 = vmatpush1.msra.mxu0 0.0
        %3983 = vmatprep.subr.mxu0 0.0
        %3984 = vmatpush1.msra.mxu0 0.0
        %3985 = vmatprep.subr.mxu0 0.0
        %3986 = vmatpush1.msra.mxu0 0.0
        %3987 = vmatprep.subr.mxu0 0.0
        %3988 = vmatpush1.msra.mxu0 0.0
        %3989 = vmatprep.subr.mxu0 0.0
        %3990 = vmatpush1.msra.mxu0 0.0
        %3991 = vmatprep.subr.mxu0 0.0
        %3992 = vmatpush1.msra.mxu0 0.0
        %3993 = vmatprep.subr.mxu0 0.0
        %3994 = vmatpush1.msra.mxu0 0.0
        %3995 = vmatprep.subr.mxu0 0.0
        %3996 = vmatpush1.msra.mxu0 0.0
        %3997 = vmatprep.subr.mxu0 0.0
        %3998 = vmatpush1.msra.mxu0 0.0
        %3999 = vmatprep.subr.mxu0 0.0
        %4000 = vmatpush1.msra.mxu0 0.0
        %4001 = vmatprep.subr.mxu0 0.0
        %4002 = vmatpush1.msra.mxu0 0.0
        %4003 = vmatprep.subr.mxu0 0.0
        %4004 = vmatpush1.msra.mxu0 0.0
        %4005 = vmatprep.subr.mxu0 0.0
        %4006 = vmatpush1.msra.mxu0 0.0
        %4007 = vmatprep.subr.mxu0 0.0
        %4008 = vmatpush1.msra.mxu0 0.0
        %4009 = vmatprep.subr.mxu0 0.0
        %4010 = vmatpush1.msra.mxu0 0.0
        %4011 = vmatprep.subr.mxu0 0.0
        %4012 = vmatpush1.msra.mxu0 0.0
        %4013 = vmatprep.subr.mxu0 0.0
        %4014 = vmatpush1.msra.mxu0 0.0
        %4015 = vmatprep.subr.mxu0 0.0
        %4016 = vmatpush1.msra.mxu0 0.0
        %4017 = vmatprep.subr.mxu0 0.0
        %4018 = vmatpush1.msra.mxu0 0.0
        %4019 = vmatprep.mubr.f32.mxu0 0.0
        %4020 = vmatmul.mubr.f32.gmra.mrb[0].mxu0 %v3949
        %v4021 = vpop.f32.mrb[0].mxu0
        %v4022 = vadd.f32 %v3946, %v4021
        %v4023 = vpop.f32.mrb[0].mxu0
        %4024 = vdwg.mxu0
        %vm4025 = vcmask 8192
        %v4026 = vsel %vm4025, %v4022, -inf
        %4027 = vmax.xlane.f32.xlu0 %v4026
        %v4028 = vpop.xlane.xlu0 %4027
        %v4029 = vsub.f32 %v4022, %v4028
        %v4030 = vmul.f32 %v4029, 1.442695
        %v4031 = vpow.pop %v4030
        %v4032 = vsel %vm4025, %v4031, 0.0
        %4033 = vadd.xlane.f32.xlu0 %v4032
        %v4034 = vpop.xlane.xlu0 %4033
        %v4035 = vlog2.pop %v4034
        %v4036 = vmul.f32 %v4035, 0.6931472
        %v4037 = vadd.f32 %v4028, %v4036
        %v4038 = vsub.f32 %v4022, %v4037
        %v4039 = vld [vmem:[%s11] sm:$0x1]
        %v4040 = vadd.f32 %v3939, %v4039
        %vm4041 = vcmask 48128
        %v4043 = vsel %vm4041, 0.16666667, 0
        %v4046 = vsel %vm4041, %v2878, 0
        %4048 = vmatprep.subr.mxu0 0.0
        %4049 = vmatpush1.xpose.msra.mxu0 %v4046
        %4050 = vmatprep.subr.mxu0 0.0
        %4051 = vmatpush1.xpose.msra.mxu0 0.0
        %4052 = vmatprep.subr.mxu0 0.0
        %4053 = vmatpush1.xpose.msra.mxu0 0.0
        %4054 = vmatprep.subr.mxu0 0.0
        %4055 = vmatpush1.xpose.msra.mxu0 0.0
        %4056 = vmatprep.subr.mxu0 0.0
        %4057 = vmatpush1.xpose.msra.mxu0 0.0
        %4058 = vmatprep.subr.mxu0 0.0
        %4059 = vmatpush1.xpose.msra.mxu0 0.0
        %4060 = vmatprep.subr.mxu0 0.0
        %4061 = vmatpush1.xpose.msra.mxu0 0.0
        %4062 = vmatprep.subr.mxu0 0.0
        %4063 = vmatpush1.xpose.msra.mxu0 0.0
        %4064 = vmatprep.subr.mxu0 0.0
        %4065 = vmatpush1.xpose.msra.mxu0 0.0
        %4066 = vmatprep.subr.mxu0 0.0
        %4067 = vmatpush1.xpose.msra.mxu0 0.0
        %4068 = vmatprep.subr.mxu0 0.0
        %4069 = vmatpush1.xpose.msra.mxu0 0.0
        %4070 = vmatprep.subr.mxu0 0.0
        %4071 = vmatpush1.xpose.msra.mxu0 0.0
        %4072 = vmatprep.subr.mxu0 0.0
        %4073 = vmatpush1.xpose.msra.mxu0 0.0
        %4074 = vmatprep.subr.mxu0 0.0
        %4075 = vmatpush1.xpose.msra.mxu0 0.0
        %4076 = vmatprep.subr.mxu0 0.0
        %4077 = vmatpush1.xpose.msra.mxu0 0.0
        %4078 = vmatprep.subr.mxu0 0.0
        %4079 = vmatpush1.xpose.msra.mxu0 0.0
        %4080 = vmatprep.subr.mxu0 0.0
        %4081 = vmatpush1.xpose.msra.mxu0 0.0
        %4082 = vmatprep.subr.mxu0 0.0
        %4083 = vmatpush1.xpose.msra.mxu0 0.0
        %4084 = vmatprep.subr.mxu0 0.0
        %4085 = vmatpush1.xpose.msra.mxu0 0.0
        %4086 = vmatprep.subr.mxu0 0.0
        %4087 = vmatpush1.xpose.msra.mxu0 0.0
        %4088 = vmatprep.subr.mxu0 0.0
        %4089 = vmatpush1.xpose.msra.mxu0 0.0
        %4090 = vmatprep.subr.mxu0 0.0
        %4091 = vmatpush1.xpose.msra.mxu0 0.0
        %4092 = vmatprep.subr.mxu0 0.0
        %4093 = vmatpush1.xpose.msra.mxu0 0.0
        %4094 = vmatprep.subr.mxu0 0.0
        %4095 = vmatpush1.xpose.msra.mxu0 0.0
        %4096 = vmatprep.subr.mxu0 0.0
        %4097 = vmatpush1.xpose.msra.mxu0 0.0
        %4098 = vmatprep.subr.mxu0 0.0
        %4099 = vmatpush1.xpose.msra.mxu0 0.0
        %4100 = vmatprep.subr.mxu0 0.0
        %4101 = vmatpush1.xpose.msra.mxu0 0.0
        %4102 = vmatprep.subr.mxu0 0.0
        %4103 = vmatpush1.xpose.msra.mxu0 0.0
        %4104 = vmatprep.subr.mxu0 0.0
        %4105 = vmatpush1.xpose.msra.mxu0 0.0
        %4106 = vmatprep.subr.mxu0 0.0
        %4107 = vmatpush1.xpose.msra.mxu0 0.0
        %4108 = vmatprep.subr.mxu0 0.0
        %4109 = vmatpush1.xpose.msra.mxu0 0.0
        %4110 = vmatprep.subr.mxu0 0.0
        %4111 = vmatpush1.xpose.msra.mxu0 0.0
        %4112 = vmatprep.mubr.f32.mxu0 0.0
        %4113 = vmatmul.mubr.f32.gmra.mrb[0].mxu0 %v4043
        %v4114 = vpop.f32.mrb[0].mxu0
        %v4115 = vadd.f32 0.0, %v4114
        %v4116 = vpop.f32.mrb[0].mxu0
        %4117 = vdwg.mxu0
        %v4118 = vmul.f32 %v4115, %v4040
        %v4119 = vld [vmem:[%s12] sm:$0x3f]
        %v4120 = vld [vmem:[%s13] sm:$0x1]
        %v4122 = vsel %vm4041, %v4118, 0
        %vm4124 = vcmask 1045504
        %v4126 = vsel %vm4124, %v4119, 0
        %4128 = vmatprep.subr.mxu0 0.0
        %4129 = vmatpush1.msra.mxu0 %v4126
        %4130 = vmatprep.subr.mxu0 0.0
        %4131 = vmatpush1.msra.mxu0 0.0
        %4132 = vmatprep.subr.mxu0 0.0
        %4133 = vmatpush1.msra.mxu0 0.0
        %4134 = vmatprep.subr.mxu0 0.0
        %4135 = vmatpush1.msra.mxu0 0.0
        %4136 = vmatprep.subr.mxu0 0.0
        %4137 = vmatpush1.msra.mxu0 0.0
        %4138 = vmatprep.subr.mxu0 0.0
        %4139 = vmatpush1.msra.mxu0 0.0
        %4140 = vmatprep.subr.mxu0 0.0
        %4141 = vmatpush1.msra.mxu0 0.0
        %4142 = vmatprep.subr.mxu0 0.0
        %4143 = vmatpush1.msra.mxu0 0.0
        %4144 = vmatprep.subr.mxu0 0.0
        %4145 = vmatpush1.msra.mxu0 0.0
        %4146 = vmatprep.subr.mxu0 0.0
        %4147 = vmatpush1.msra.mxu0 0.0
        %4148 = vmatprep.subr.mxu0 0.0
        %4149 = vmatpush1.msra.mxu0 0.0
        %4150 = vmatprep.subr.mxu0 0.0
        %4151 = vmatpush1.msra.mxu0 0.0
        %4152 = vmatprep.subr.mxu0 0.0
        %4153 = vmatpush1.msra.mxu0 0.0
        %4154 = vmatprep.subr.mxu0 0.0
        %4155 = vmatpush1.msra.mxu0 0.0
        %4156 = vmatprep.subr.mxu0 0.0
        %4157 = vmatpush1.msra.mxu0 0.0
        %4158 = vmatprep.subr.mxu0 0.0
        %4159 = vmatpush1.msra.mxu0 0.0
        %4160 = vmatprep.subr.mxu0 0.0
        %4161 = vmatpush1.msra.mxu0 0.0
        %4162 = vmatprep.subr.mxu0 0.0
        %4163 = vmatpush1.msra.mxu0 0.0
        %4164 = vmatprep.subr.mxu0 0.0
        %4165 = vmatpush1.msra.mxu0 0.0
        %4166 = vmatprep.subr.mxu0 0.0
        %4167 = vmatpush1.msra.mxu0 0.0
        %4168 = vmatprep.subr.mxu0 0.0
        %4169 = vmatpush1.msra.mxu0 0.0
        %4170 = vmatprep.subr.mxu0 0.0
        %4171 = vmatpush1.msra.mxu0 0.0
        %4172 = vmatprep.subr.mxu0 0.0
        %4173 = vmatpush1.msra.mxu0 0.0
        %4174 = vmatprep.subr.mxu0 0.0
        %4175 = vmatpush1.msra.mxu0 0.0
        %4176 = vmatprep.subr.mxu0 0.0
        %4177 = vmatpush1.msra.mxu0 0.0
        %4178 = vmatprep.subr.mxu0 0.0
        %4179 = vmatpush1.msra.mxu0 0.0
        %4180 = vmatprep.subr.mxu0 0.0
        %4181 = vmatpush1.msra.mxu0 0.0
        %4182 = vmatprep.subr.mxu0 0.0
        %4183 = vmatpush1.msra.mxu0 0.0
        %4184 = vmatprep.subr.mxu0 0.0
        %4185 = vmatpush1.msra.mxu0 0.0
        %4186 = vmatprep.subr.mxu0 0.0
        %4187 = vmatpush1.msra.mxu0 0.0
        %4188 = vmatprep.subr.mxu0 0.0
        %4189 = vmatpush1.msra.mxu0 0.0
        %4190 = vmatprep.subr.mxu0 0.0
        %4191 = vmatpush1.msra.mxu0 0.0
        %4192 = vmatprep.mubr.f32.mxu0 0.0
        %4193 = vmatmul.mubr.f32.gmra.mrb[0].mxu0 %v4122
        %v4194 = vpop.f32.mrb[0].mxu0
        %v4195 = vadd.f32 %v4120, %v4194
        %v4196 = vpop.f32.mrb[0].mxu0
        %4197 = vdwg.mxu0
        %v4198 = vsel %vm4025, %v4195, -inf
        %4199 = vmax.xlane.f32.xlu0 %v4198
        %v4200 = vpop.xlane.xlu0 %4199
        %v4201 = vsub.f32 %v4195, %v4200
        %v4202 = vmul.f32 %v4201, 1.442695
        %v4203 = vpow.pop %v4202
        %v4204 = vsel %vm4025, %v4203, 0.0
        %4205 = vadd.xlane.f32.xlu0 %v4204
        %v4206 = vpop.xlane.xlu0 %4205
        %v4207 = vlog2.pop %v4206
        %v4208 = vmul.f32 %v4207, 0.6931472
        %v4209 = vadd.f32 %v4200, %v4208
        %v4210 = vsub.f32 %v4195, %v4209
        %v4211 = vmul.f32 %v4038, 0.4
        %v4212 = vmul.f32 %v4210, 0.6
        %v4213 = vadd.f32 %v4211, %v4212
        %4214 = vst.msk [vmem:[%s474] sm:$0x1] %vm4025, %v4213
        %s4215 = sand.u32 %s340, 1
        %s4216 = scalar_lea.sflag [#allocation3], %s4215
        %s4217 = sand.u32 %s340, 1
        %s4218 = scalar_lea.vmem [#allocation2], %s4217
        // Predicated region
        $region77: #{net_forward.1} parent=75 // pred_check
          %p4219 = pneg %p350
        $region78: #{net_forward.1} parent=75 // pred_check_branch
          %4221 = sbr.rel (%p4219) target = $region80
        $region79: #{net_forward.1} parent=75 // pred_region
          %s4223 = ssub.s32 16, 16
          %4224 = vsyncadd %s4216, %s4223
          %s4225 = smul.addr %s28, 16
          %s4226 = scalar_lea.hbm %s14, %s4225
          %s4228 = sshll.u32 %s4218, 4
          %s4229 = int_to_ptr.vmem [resolvable:$true] %s4228
          %4231 = dma.vmem_to_hbm [thread:$0]  %s4229, 16, %s4226, %s4216
        $region80: #{net_forward.1} parent=75 // pred_fallthru
          _
      $region76: #{net_forward.1} parent=5 // pred_fallthru
        _
      %p4232 = scmp.le.s32.totalorder 2, %s23
      // Predicated region
      $region81: #{net_forward.1} parent=5 // pred_check
        %p4233 = pneg %p4232
      $region82: #{net_forward.1} parent=5 // pred_check_branch
        %4235 = sbr.rel (%p4233) target = $region84
      $region83: #{net_forward.1} parent=5 // pred_region
        %s4236 = ssub.s32 %s23, 2
        // Predicated region
        $region85: #{net_forward.1} parent=83 // pred_check
          %p4237 = pneg %p356
        $region86: #{net_forward.1} parent=83 // pred_check_branch
          %4239 = sbr.rel (%p4237) target = $region88
        $region87: #{net_forward.1} parent=83 // pred_region
          %s4240 = sand.u32 %s341, 1
          %s4241 = scalar_lea.sflag [#allocation3], %s4240
          %s4242 = sand.u32 %s341, 1
          %s4243 = scalar_lea.vmem [#allocation2], %s4242
          %4244 = dma.done %s4241, 16
        $region88: #{net_forward.1} parent=83 // pred_fallthru
          _
      $region84: #{net_forward.1} parent=5 // pred_fallthru
        _
    $region6: #{net_forward.1} parent=1 // loop_footer
      %s27 = sadd.s32 1, %s23
    $region7: #{net_forward.1} parent=1 // loop_footer_branch
      %22 = sbr.rel target = $region3
    $region8: #{net_forward.1} parent=1 // loop_exit
      _
    %4245 = vsyncpa [#allocation3], 1
    %s4246 = scalar_lea.sflag [#allocation3], 1
    %4247 = vsyncpa %s4246, 1

</llo_original>
